<compile_context>
chip_gen: v7x
topology: tpu7x:2x2x1
jax: 0.10.0
libtpu: 0.0.40
codegen_flags: <defaults>
</compile_context>

<pallas_src>
import functools

import jax
import jax.numpy as jnp
from jax.experimental import pallas as pl
from jax.experimental.pallas import tpu as pltpu


_LANE = 128     # lane-dense channel / embedding padding
_K_PAD = 32     # contraction dim 27 -> 32 (small K: don't blow up HBM bytes)


# ----------------------------- Pallas kernel ------------------------------ #

def _backbone_kernel(p, patches_ref, wconv_ref, bconv_ref, alpha_ref,
                     wfc_ref, bfc_ref, out_ref):
    """One fused backbone tile: rows = tb images x p spatial positions."""
    rows, _ = patches_ref.shape
    c = wconv_ref.shape[1]
    tb = rows // p

    # Conv2d as a single lane-dense im2col matmul (bf16 in, f32 accumulation).
    conv = jnp.dot(patches_ref[...], wconv_ref[...],
                   preferred_element_type=jnp.float32)           # (rows, Cp)
    conv = conv + bconv_ref[...]                                 # (1, Cp) bcast

    # Per-channel PReLU in f32 (padded channels are exactly zero).
    act = jnp.where(conv > 0, conv, alpha_ref[...] * conv)

    # Global pool as a SUM over spatial positions (1/P folded into wfc).
    pooled = jnp.sum(act.reshape(tb, p, c), axis=1)              # (tb, Cp)

    # FC + folded BatchNorm1d(eval): emb = pooled @ wfc' + bfc'.
    emb = jnp.dot(pooled, wfc_ref[...],
                  preferred_element_type=jnp.float32) + bfc_ref[...]
    out_ref[...] = emb.astype(out_ref.dtype)


# ------------------------------- Wrappers --------------------------------- #

def _pad_last(x, target):
    pad = target - x.shape[-1]
    if pad == 0:
        return x
    return jnp.pad(x, [(0, 0)] * (x.ndim - 1) + [(0, pad)])


def _im2col(x, kh=3, kw=3):
    """NCHW -> (B, H*W, Cin*kh*kw), PyTorch (Cin, kh, kw) flattening order."""
    B, Cin, H, W = x.shape
    xp = jnp.pad(x, ((0, 0), (0, 0), (1, 1), (1, 1)))
    cols = [xp[:, :, di:di + H, dj:dj + W]
            for di in range(kh) for dj in range(kw)]
    patches = jnp.stack(cols, axis=2)              # (B, Cin, kh*kw, H, W)
    patches = patches.transpose(0, 3, 4, 1, 2)     # (B, H, W, Cin, kh*kw)
    return patches.reshape(B, H * W, Cin * kh * kw)


def fold_and_pad_params(raw, spatial_p, eps=1e-5,
                        k_pad=_K_PAD, c_pad=_LANE, e_pad=_LANE):
    """Fold BN(eval) + mean-pool scale into FC weights; pad to lane shapes."""
    wconv_oihw = raw['wconv_oihw']                           # (C, Cin, kh, kw)
    cout = wconv_oihw.shape[0]
    k = wconv_oihw.shape[1] * wconv_oihw.shape[2] * wconv_oihw.shape[3]
    emb_dim = raw['wfc'].shape[1]

    wconv = wconv_oihw.reshape(cout, k).T                    # (K, C)
    scale = raw['gamma'] * jax.lax.rsqrt(raw['var'] + eps)   # (E,)
    wfc_f = raw['wfc'] * scale[None, :] / float(spatial_p)   # (C, E) folded
    bfc_f = (raw['bfc'] - raw['mean']) * scale + raw['beta'] # (E,)  folded

    pad2 = lambda a, r, c: jnp.pad(a, ((0, r - a.shape[0]), (0, c - a.shape[1])))
    row = lambda a, c: jnp.pad(a[None, :], ((0, 0), (0, c - a.shape[0])))

    return {
        'wconv': pad2(wconv, k_pad, c_pad).astype(jnp.bfloat16),  # (Kp, Cp)
        'bconv': row(raw['bconv'], c_pad),                        # (1, Cp) f32
        'alpha': row(raw['alpha'], c_pad),                        # (1, Cp) f32
        'wfc':   pad2(wfc_f, c_pad, e_pad),                       # (Cp, Ep) f32
        'bfc':   row(bfc_f, e_pad),                               # (1, Ep) f32
        'emb_dim': emb_dim,
    }


def kinship_forward(x1, x2, kparams):
    """Equivalent of KinshipVerificationModel.forward(x1, x2): both branches
    share the backbone, so they are fused into a single pallas_call."""
    x = jnp.concatenate([x1, x2], axis=0)          # one launch, one weight DMA
    n, _, h, w = x.shape
    p = h * w

    k_pad, c_pad = kparams['wconv'].shape
    e_pad = kparams['wfc'].shape[1]

    # Host-side im2col, zero-padded contraction dim, bf16 to halve HBM bytes,
    # pre-flattened to lane-dense (n*p, Kp) rows.
    # TODO(synk): at real InsightFace scale (112x112) build patches inside the
    # kernel from an NHWC tile (shifted adds / pltpu.roll) to avoid the 9x
    # HBM expansion of host-side im2col.
    patches = _pad_last(_im2col(x), k_pad).astype(jnp.bfloat16)
    patches = patches.reshape(n * p, k_pad)

    # Image tile: sublane-aligned (multiple of 8) so the output block is
    # unmasked; at real scale size this to VMEM (larger on v5e/v6e, ~half on
    # v7x's 64 MiB VMEM).
    tb = 8 if n % 8 == 0 else n
    grid = (n // tb,)

    full = lambda a: pl.BlockSpec(a.shape, lambda i: (0,) * a.ndim)
    weight_args = (kparams['wconv'], kparams['bconv'], kparams['alpha'],
                   kparams['wfc'], kparams['bfc'])

    out = pl.pallas_call(
        functools.partial(_backbone_kernel, p),
        out_shape=jax.ShapeDtypeStruct((n, e_pad), jnp.float32),
        grid=grid,
        in_specs=[pl.BlockSpec((tb * p, k_pad), lambda i: (i, 0))]
                 + [full(a) for a in weight_args],
        out_specs=pl.BlockSpec((tb, e_pad), lambda i: (i, 0)),
        compiler_params=pltpu.CompilerParams(
            dimension_semantics=("parallel",)),    # shards across v7x's 2 TCs
    )(patches, *weight_args)

    emb = out[:, :kparams['emb_dim']]
    b = x1.shape[0]
    return emb[:b], emb[b:]


# -------------------------- Params / reference ----------------------------- #

def init_raw_params(key, cin=3, cout=8, emb_dim=32, k=3):
    ks = jax.random.split(key, 8)
    return {
        'wconv_oihw': 0.1 * jax.random.normal(ks[0], (cout, cin, k, k), jnp.float32),
        'bconv': 0.1 * jax.random.normal(ks[1], (cout,), jnp.float32),
        'alpha': 0.25 * jnp.ones((cout,), jnp.float32),       # PReLU init
        'wfc':   0.1 * jax.random.normal(ks[2], (cout, emb_dim), jnp.float32),
        'bfc':   0.1 * jax.random.normal(ks[3], (emb_dim,), jnp.float32),
        'gamma': 1.0 + 0.1 * jax.random.normal(ks[4], (emb_dim,), jnp.float32),
        'beta':  0.1 * jax.random.normal(ks[5], (emb_dim,), jnp.float32),
        'mean':  0.1 * jax.random.normal(ks[6], (emb_dim,), jnp.float32),
        'var':   jnp.abs(1.0 + 0.1 * jax.random.normal(ks[7], (emb_dim,), jnp.float32)),
    }


def backbone_ref(x, raw, eps=1e-5):
    """Pure-JAX f32 reference with PyTorch semantics (correctness check)."""
    conv = jax.lax.conv_general_dilated(
        x, raw['wconv_oihw'], (1, 1), ((1, 1), (1, 1)),
        dimension_numbers=('NCHW', 'OIHW', 'NCHW'))
    conv = conv + raw['bconv'].reshape(1, -1, 1, 1)
    alpha = raw['alpha'].reshape(1, -1, 1, 1)
    act = jnp.where(conv > 0, conv, alpha * conv)
    pooled = act.mean(axis=(2, 3))
    emb = pooled @ raw['wfc'] + raw['bfc']
    emb = ((emb - raw['mean']) * jax.lax.rsqrt(raw['var'] + eps)
           * raw['gamma'] + raw['beta'])
    return emb


# --------------------------------- Main ------------------------------------ #

if __name__ == "__main__":
    key = jax.random.PRNGKey(0)
    kp_key, k1, k2 = jax.random.split(key, 3)

    B, Cin, H, W = 8, 3, 16, 16
    Cout, E = 8, 32

    raw = init_raw_params(kp_key, cin=Cin, cout=Cout, emb_dim=E)
    kparams = fold_and_pad_params(raw, spatial_p=H * W)

    x1 = jax.random.normal(k1, (B, Cin, H, W), jnp.float32)
    x2 = jax.random.normal(k2, (B, Cin, H, W), jnp.float32)

    emb1, emb2 = kinship_forward(x1, x2, kparams)
    jax.block_until_ready((emb1, emb2))

    ref1 = backbone_ref(x1, raw)
    ref2 = backbone_ref(x2, raw)
    assert emb1.shape == (B, E) and emb2.shape == (B, E)
    assert jnp.allclose(emb1, ref1, atol=1e-2, rtol=1e-2)
    assert jnp.allclose(emb2, ref2, atol=1e-2, rtol=1e-2)

    print("KERNEL_OK")
</pallas_src>

<mosaic_0001>
module attributes {stable_mosaic.version = 11 : i64} {
  func.func @_backbone_kernel(%arg0: i32, %arg1: memref<2048x32xbf16, #tpu.memory_space<vmem>>, %arg2: memref<32x128xbf16, #tpu.memory_space<vmem>>, %arg3: memref<1x128xf32, #tpu.memory_space<vmem>>, %arg4: memref<1x128xf32, #tpu.memory_space<vmem>>, %arg5: memref<128x128xf32, #tpu.memory_space<vmem>>, %arg6: memref<1x128xf32, #tpu.memory_space<vmem>>, %arg7: memref<8x128xf32, #tpu.memory_space<vmem>>) attributes {dimension_semantics = [#tpu.dimension_semantics<parallel>], iteration_bounds = array<i64: 2>, scalar_prefetch = 0 : i64, scratch_operands = 0 : i64, tpu.core_type = #tpu.core_type<tc>, window_params = [{transform_indices = @transform_0, window_bounds = array<i64: 2048, 32>}, {pipeline_mode = #tpu.pipeline_mode<synchronous>, transform_indices = @transform_1, window_bounds = array<i64: 32, 128>}, {pipeline_mode = #tpu.pipeline_mode<synchronous>, transform_indices = @transform_2, window_bounds = array<i64: 1, 128>}, {pipeline_mode = #tpu.pipeline_mode<synchronous>, transform_indices = @transform_3, window_bounds = array<i64: 1, 128>}, {pipeline_mode = #tpu.pipeline_mode<synchronous>, transform_indices = @transform_4, window_bounds = array<i64: 128, 128>}, {pipeline_mode = #tpu.pipeline_mode<synchronous>, transform_indices = @transform_5, window_bounds = array<i64: 1, 128>}, {transform_indices = @transform_6, window_bounds = array<i64: 8, 128>}]} {
    %c0 = arith.constant 0 : index
    %c0_0 = arith.constant 0 : index
    %0 = vector.load %arg1[%c0, %c0_0] : memref<2048x32xbf16, #tpu.memory_space<vmem>>, vector<2048x32xbf16>
    %c0_1 = arith.constant 0 : index
    %c0_2 = arith.constant 0 : index
    %1 = vector.load %arg2[%c0_1, %c0_2] : memref<32x128xbf16, #tpu.memory_space<vmem>>, vector<32x128xbf16>
    %cst = arith.constant dense<0.000000e+00> : vector<2048x128xf32>
    %2 = tpu.matmul %0, %1, %cst {dimension_numbers = #tpu.dot_dimension_numbers<[1], [0], [0], [1], [0, 0, 1, 1], [], []>} : vector<2048x32xbf16>, vector<32x128xbf16>, vector<2048x128xf32> -> vector<2048x128xf32>
    %c0_3 = arith.constant 0 : index
    %c0_4 = arith.constant 0 : index
    %3 = vector.load %arg3[%c0_3, %c0_4] : memref<1x128xf32, #tpu.memory_space<vmem>>, vector<1x128xf32>
    %4 = vector.broadcast %3 : vector<1x128xf32> to vector<2048x128xf32>
    %5 = arith.addf %2, %4 : vector<2048x128xf32>
    %cst_5 = arith.constant 0.000000e+00 : f32
    %6 = vector.broadcast %cst_5 : f32 to vector<2048x128xf32>
    %7 = arith.cmpf ogt, %5, %6 : vector<2048x128xf32>
    %c0_6 = arith.constant 0 : index
    %c0_7 = arith.constant 0 : index
    %8 = vector.load %arg4[%c0_6, %c0_7] : memref<1x128xf32, #tpu.memory_space<vmem>>, vector<1x128xf32>
    %9 = vector.broadcast %8 : vector<1x128xf32> to vector<2048x128xf32>
    %10 = arith.mulf %9, %5 : vector<2048x128xf32>
    %11 = arith.select %7, %5, %10 : vector<2048x128xi1>, vector<2048x128xf32>
    %12 = vector.shape_cast %11 : vector<2048x128xf32> to vector<8x256x128xf32>
    %cst_8 = arith.constant dense<0.000000e+00> : vector<8x128xf32>
    %13 = vector.multi_reduction <add>, %12, %cst_8 [1] : vector<8x256x128xf32> to vector<8x128xf32>
    %c0_9 = arith.constant 0 : index
    %c0_10 = arith.constant 0 : index
    %14 = vector.load %arg5[%c0_9, %c0_10] : memref<128x128xf32, #tpu.memory_space<vmem>>, vector<128x128xf32>
    %cst_11 = arith.constant dense<0.000000e+00> : vector<8x128xf32>
    %15 = tpu.matmul %13, %14, %cst_11 {dimension_numbers = #tpu.dot_dimension_numbers<[1], [0], [0], [1], [0, 0, 1, 1], [], []>} : vector<8x128xf32>, vector<128x128xf32>, vector<8x128xf32> -> vector<8x128xf32>
    %c0_12 = arith.constant 0 : index
    %c0_13 = arith.constant 0 : index
    %16 = vector.load %arg6[%c0_12, %c0_13] : memref<1x128xf32, #tpu.memory_space<vmem>>, vector<1x128xf32>
    %17 = vector.broadcast %16 : vector<1x128xf32> to vector<8x128xf32>
    %18 = arith.addf %15, %17 : vector<8x128xf32>
    %c0_14 = arith.constant 0 : index
    %c0_15 = arith.constant 0 : index
    %19 = vector.load %arg7[%c0_14, %c0_15] : memref<8x128xf32, #tpu.memory_space<vmem>>, vector<8x128xf32>
    tpu.vector_store %arg7[%c0_14, %c0_15], %18 {strides = array<i32>} : memref<8x128xf32, #tpu.memory_space<vmem>>, vector<8x128xf32>,
    return
  }
  func.func @transform_0(%arg0: i32) -> (i32, i32) {
    %c0_i32 = arith.constant 0 : i32
    %c0_i32_0 = arith.constant 0 : i32
    return %arg0, %c0_i32 : i32, i32
  }
  func.func @transform_1(%arg0: i32) -> (i32, i32) {
    %c0_i32 = arith.constant 0 : i32
    %c0_i32_0 = arith.constant 0 : i32
    %c0_i32_1 = arith.constant 0 : i32
    return %c0_i32, %c0_i32_0 : i32, i32
  }
  func.func @transform_2(%arg0: i32) -> (i32, i32) {
    %c0_i32 = arith.constant 0 : i32
    %c0_i32_0 = arith.constant 0 : i32
    %c0_i32_1 = arith.constant 0 : i32
    return %c0_i32, %c0_i32_0 : i32, i32
  }
  func.func @transform_3(%arg0: i32) -> (i32, i32) {
    %c0_i32 = arith.constant 0 : i32
    %c0_i32_0 = arith.constant 0 : i32
    %c0_i32_1 = arith.constant 0 : i32
    return %c0_i32, %c0_i32_0 : i32, i32
  }
  func.func @transform_4(%arg0: i32) -> (i32, i32) {
    %c0_i32 = arith.constant 0 : i32
    %c0_i32_0 = arith.constant 0 : i32
    %c0_i32_1 = arith.constant 0 : i32
    return %c0_i32, %c0_i32_0 : i32, i32
  }
  func.func @transform_5(%arg0: i32) -> (i32, i32) {
    %c0_i32 = arith.constant 0 : i32
    %c0_i32_0 = arith.constant 0 : i32
    %c0_i32_1 = arith.constant 0 : i32
    return %c0_i32, %c0_i32_0 : i32, i32
  }
  func.func @transform_6(%arg0: i32) -> (i32, i32) {
    %c0_i32 = arith.constant 0 : i32
    %c0_i32_0 = arith.constant 0 : i32
    return %arg0, %c0_i32 : i32, i32
  }
}

</mosaic_0001>

<llo_original>
// kernel: tpu_custom_call.1
$region0: #{tpu_custom_call.1}
  #allocation0 [shape = 'u32[]', space=smem, size = 0x4, offset = 0x4, fixed_abs, tag = 'smem constant byte address 0x4 - core index']
  #allocation1 [shape = 'u32[144,128]{1,0:T(1,128)}', space=vmem, size = 0x12000, scoped, tag = 'internal scratch']
  %s0 = inlined_call_operand.vmem [shape: bf16[4096,32], index: 0, kind: input, shape index: {}]
  %s1 = inlined_call_operand.vmem [shape: bf16[32,128], index: 1, kind: input, shape index: {}]
  %s2 = inlined_call_operand.vmem [shape: f32[1,128], index: 2, kind: input, shape index: {}]
  %s3 = inlined_call_operand.vmem [shape: f32[1,128], index: 3, kind: input, shape index: {}]
  %s4 = inlined_call_operand.vmem [shape: f32[128,128], index: 4, kind: input, shape index: {}]
  %s5 = inlined_call_operand.vmem [shape: f32[1,128], index: 5, kind: input, shape index: {}]
  %s6 = inlined_call_operand.hbm [shape: f32[16,128], index: 6, kind: output, shape index: {}]
  %s7 = sld [smem:[#allocation0]]
  $region57: #{tpu_custom_call.1} parent=0
    _
  %s9 = ssub.s32 1, %s7
  %s10 = scalar_select 0, %s9, %s7
  $region1: #{tpu_custom_call.1} parent=0
    #allocation2 [shape = 'u8[8192]{0}', space=vmem, size = 0x2000, scoped, tag = 'output window, operand 0']
    #allocation3 [shape = 's32[2]{0}', space=sflag, size = 0x8, scoped, tag = 'scoped memory for tpu_custom_call.1']
    %11 = vsyncpa [#allocation3], 0
    %s12 = scalar_lea.sflag [#allocation3], 1
    %13 = vsyncpa %s12, 0
    loop: start=0, step=1, limit=4
    $region2: #{tpu_custom_call.1} parent=1 // loop_pre_header
      _
    $region3: #{tpu_custom_call.1} parent=1 // loop_header
      %s15 = sphi 0, %s19
      %p16 = scmp.ge.s32.totalorder %s15, 4
      %s25 = sphi 0, %s27
      %s28 = sphi 0, %s25
      %s29 = sphi 0, %s28
      %s45 = sphi 0, %s29
      %s49 = sphi 0, %s49
      %s51 = sphi 0, %s49
      %s52 = sphi 0, %s51
      %s66 = sphi 0, %s52
      %s70 = sphi 0, %s70
      %s72 = sphi 0, %s70
      %s73 = sphi 0, %s72
      %s87 = sphi 0, %s73
      %s91 = sphi 0, %s91
      %s93 = sphi 0, %s91
      %s94 = sphi 0, %s93
      %s108 = sphi 0, %s94
      %s112 = sphi 0, %s112
      %s114 = sphi 0, %s112
      %s115 = sphi 0, %s114
      %s129 = sphi 0, %s115
      %s133 = sphi 0, %s133
      %s135 = sphi 0, %s133
      %s136 = sphi 0, %s135
      %s150 = sphi 0, %s136
      %s156 = sphi 0, %s158
      %s159 = sphi 0, %s156
      %s160 = sphi 0, %s159
      %s176 = sphi 0, %s160
    $region4: #{tpu_custom_call.1} parent=1 // loop_header_branch
      %18 = sbr.rel (%p16) target = $region8
    $region5: #{tpu_custom_call.1} parent=1 // loop_body
      %s20 = ssub.s32 %s15, 1
      %s21 = ssub.s32 %s15, 2
      %s22 = sadd.s32 %s15, 1
      %s23 = ssub.s32 %s15, %s22
      %p24 = scmp.eq.s32.totalorder %s23, 0
      %s26 = sadd.s32 %s25, 1
      %s27 = scalar_select %p24, %s25, %s26
      %p30 = pneg %p24
      %p31 = scmp.eq.s32.totalorder %s15, 1
      %p32 = por %p30, %p31
      %p33 = scmp.ne.s32.totalorder %s25, %s28
      %p34 = scmp.eq.s32.totalorder %s15, 0
      %p35 = por %p33, %p34
      %p36 = scmp.ne.s32.totalorder %s25, %s28
      %p37 = scmp.eq.s32.totalorder %s20, 1
      %p38 = por %p36, %p37
      %p39 = scmp.ne.s32.totalorder %s28, %s29
      %p40 = scmp.eq.s32.totalorder %s20, 0
      %p41 = por %p39, %p40
      %p42 = scmp.ne.s32.totalorder %s28, %s29
      %p43 = scmp.eq.s32.totalorder %s21, 1
      %p44 = por %p42, %p43
      %p46 = scmp.ne.s32.totalorder %s29, %s45
      %p47 = scmp.eq.s32.totalorder %s21, 0
      %p48 = por %p46, %p47
      %s50 = sadd.s32 %s49, 1
      %p53 = scmp.eq.s32.totalorder %s15, 1
      %p54 = scmp.ne.s32.totalorder %s49, %s51
      %p55 = scmp.eq.s32.totalorder %s15, 0
      %p56 = por %p54, %p55
      %p57 = scmp.ne.s32.totalorder %s49, %s51
      %p58 = scmp.eq.s32.totalorder %s20, 1
      %p59 = por %p57, %p58
      %p60 = scmp.ne.s32.totalorder %s51, %s52
      %p61 = scmp.eq.s32.totalorder %s20, 0
      %p62 = por %p60, %p61
      %p63 = scmp.ne.s32.totalorder %s51, %s52
      %p64 = scmp.eq.s32.totalorder %s21, 1
      %p65 = por %p63, %p64
      %p67 = scmp.ne.s32.totalorder %s52, %s66
      %p68 = scmp.eq.s32.totalorder %s21, 0
      %p69 = por %p67, %p68
      %s71 = sadd.s32 %s70, 1
      %p74 = scmp.eq.s32.totalorder %s15, 1
      %p75 = scmp.ne.s32.totalorder %s70, %s72
      %p76 = scmp.eq.s32.totalorder %s15, 0
      %p77 = por %p75, %p76
      %p78 = scmp.ne.s32.totalorder %s70, %s72
      %p79 = scmp.eq.s32.totalorder %s20, 1
      %p80 = por %p78, %p79
      %p81 = scmp.ne.s32.totalorder %s72, %s73
      %p82 = scmp.eq.s32.totalorder %s20, 0
      %p83 = por %p81, %p82
      %p84 = scmp.ne.s32.totalorder %s72, %s73
      %p85 = scmp.eq.s32.totalorder %s21, 1
      %p86 = por %p84, %p85
      %p88 = scmp.ne.s32.totalorder %s73, %s87
      %p89 = scmp.eq.s32.totalorder %s21, 0
      %p90 = por %p88, %p89
      %s92 = sadd.s32 %s91, 1
      %p95 = scmp.eq.s32.totalorder %s15, 1
      %p96 = scmp.ne.s32.totalorder %s91, %s93
      %p97 = scmp.eq.s32.totalorder %s15, 0
      %p98 = por %p96, %p97
      %p99 = scmp.ne.s32.totalorder %s91, %s93
      %p100 = scmp.eq.s32.totalorder %s20, 1
      %p101 = por %p99, %p100
      %p102 = scmp.ne.s32.totalorder %s93, %s94
      %p103 = scmp.eq.s32.totalorder %s20, 0
      %p104 = por %p102, %p103
      %p105 = scmp.ne.s32.totalorder %s93, %s94
      %p106 = scmp.eq.s32.totalorder %s21, 1
      %p107 = por %p105, %p106
      %p109 = scmp.ne.s32.totalorder %s94, %s108
      %p110 = scmp.eq.s32.totalorder %s21, 0
      %p111 = por %p109, %p110
      %s113 = sadd.s32 %s112, 1
      %p116 = scmp.eq.s32.totalorder %s15, 1
      %p117 = scmp.ne.s32.totalorder %s112, %s114
      %p118 = scmp.eq.s32.totalorder %s15, 0
      %p119 = por %p117, %p118
      %p120 = scmp.ne.s32.totalorder %s112, %s114
      %p121 = scmp.eq.s32.totalorder %s20, 1
      %p122 = por %p120, %p121
      %p123 = scmp.ne.s32.totalorder %s114, %s115
      %p124 = scmp.eq.s32.totalorder %s20, 0
      %p125 = por %p123, %p124
      %p126 = scmp.ne.s32.totalorder %s114, %s115
      %p127 = scmp.eq.s32.totalorder %s21, 1
      %p128 = por %p126, %p127
      %p130 = scmp.ne.s32.totalorder %s115, %s129
      %p131 = scmp.eq.s32.totalorder %s21, 0
      %p132 = por %p130, %p131
      %s134 = sadd.s32 %s133, 1
      %p137 = scmp.eq.s32.totalorder %s15, 1
      %p138 = scmp.ne.s32.totalorder %s133, %s135
      %p139 = scmp.eq.s32.totalorder %s15, 0
      %p140 = por %p138, %p139
      %p141 = scmp.ne.s32.totalorder %s133, %s135
      %p142 = scmp.eq.s32.totalorder %s20, 1
      %p143 = por %p141, %p142
      %p144 = scmp.ne.s32.totalorder %s135, %s136
      %p145 = scmp.eq.s32.totalorder %s20, 0
      %p146 = por %p144, %p145
      %p147 = scmp.ne.s32.totalorder %s135, %s136
      %p148 = scmp.eq.s32.totalorder %s21, 1
      %p149 = por %p147, %p148
      %p151 = scmp.ne.s32.totalorder %s136, %s150
      %p152 = scmp.eq.s32.totalorder %s21, 0
      %p153 = por %p151, %p152
      %s154 = ssub.s32 %s15, %s22
      %p155 = scmp.eq.s32.totalorder %s154, 0
      %s157 = sadd.s32 %s156, 1
      %s158 = scalar_select %p155, %s156, %s157
      %p161 = pneg %p155
      %p162 = scmp.eq.s32.totalorder %s15, 1
      %p163 = por %p161, %p162
      %p164 = scmp.ne.s32.totalorder %s156, %s159
      %p165 = scmp.eq.s32.totalorder %s15, 0
      %p166 = por %p164, %p165
      %p167 = scmp.ne.s32.totalorder %s156, %s159
      %p168 = scmp.eq.s32.totalorder %s20, 1
      %p169 = por %p167, %p168
      %p170 = scmp.ne.s32.totalorder %s159, %s160
      %p171 = scmp.eq.s32.totalorder %s20, 0
      %p172 = por %p170, %p171
      %p173 = scmp.ne.s32.totalorder %s159, %s160
      %p174 = scmp.eq.s32.totalorder %s21, 1
      %p175 = por %p173, %p174
      %p177 = scmp.ne.s32.totalorder %s160, %s176
      %p178 = scmp.eq.s32.totalorder %s21, 0
      %p179 = por %p177, %p178
      %p180 = scmp.le.s32.totalorder 1, %s15
      %p181 = scmp.lt.s32.totalorder %s15, 3
      %p182 = pnand %p180, %p181
      %p183 = pneg %p182
      // Predicated region
      $region9: #{tpu_custom_call.1} parent=5 // pred_check
        _
      $region10: #{tpu_custom_call.1} parent=5 // pred_check_branch
        %185 = sbr.rel (%p182) target = $region12
      $region11: #{tpu_custom_call.1} parent=5 // pred_region
        %s186 = ssub.s32 %s15, 1
        // Predicated region
        $region13: #{tpu_custom_call.1} parent=11 // pred_check
          %p187 = pneg %p62
        $region14: #{tpu_custom_call.1} parent=11 // pred_check_branch
          %189 = sbr.rel (%p187) target = $region16
        $region15: #{tpu_custom_call.1} parent=11 // pred_region
          _
        $region16: #{tpu_custom_call.1} parent=11 // pred_fallthru
          _
        // Predicated region
        $region17: #{tpu_custom_call.1} parent=11 // pred_check
          %p190 = pneg %p83
        $region18: #{tpu_custom_call.1} parent=11 // pred_check_branch
          %192 = sbr.rel (%p190) target = $region20
        $region19: #{tpu_custom_call.1} parent=11 // pred_region
          _
        $region20: #{tpu_custom_call.1} parent=11 // pred_fallthru
          _
        // Predicated region
        $region21: #{tpu_custom_call.1} parent=11 // pred_check
          %p193 = pneg %p104
        $region22: #{tpu_custom_call.1} parent=11 // pred_check_branch
          %195 = sbr.rel (%p193) target = $region24
        $region23: #{tpu_custom_call.1} parent=11 // pred_region
          _
        $region24: #{tpu_custom_call.1} parent=11 // pred_fallthru
          _
        // Predicated region
        $region25: #{tpu_custom_call.1} parent=11 // pred_check
          %p196 = pneg %p125
        $region26: #{tpu_custom_call.1} parent=11 // pred_check_branch
          %198 = sbr.rel (%p196) target = $region28
        $region27: #{tpu_custom_call.1} parent=11 // pred_region
          _
        $region28: #{tpu_custom_call.1} parent=11 // pred_fallthru
          _
        // Predicated region
        $region29: #{tpu_custom_call.1} parent=11 // pred_check
          %p199 = pneg %p146
        $region30: #{tpu_custom_call.1} parent=11 // pred_check_branch
          %201 = sbr.rel (%p199) target = $region32
        $region31: #{tpu_custom_call.1} parent=11 // pred_region
          _
        $region32: #{tpu_custom_call.1} parent=11 // pred_fallthru
          _
      $region12: #{tpu_custom_call.1} parent=5 // pred_fallthru
        _
      %p202 = scmp.lt.s32.totalorder %s15, 2
      // Predicated region
      $region33: #{tpu_custom_call.1} parent=5 // pred_check
        %p203 = pneg %p202
      $region34: #{tpu_custom_call.1} parent=5 // pred_check_branch
        %205 = sbr.rel (%p203) target = $region36
      $region35: #{tpu_custom_call.1} parent=5 // pred_region
        // Predicated region
        $region37: #{tpu_custom_call.1} parent=35 // pred_check
          %p206 = pneg %p35
        $region38: #{tpu_custom_call.1} parent=35 // pred_check_branch
          %208 = sbr.rel (%p206) target = $region40
        $region39: #{tpu_custom_call.1} parent=35 // pred_region
          %s209 = smul.u32 256, %s15
          %p210 = scmp.lt.s32.totalorder %s209, 511
          %s211 = scalar_select %p210, %s209, 511
          %s212 = smul.addr %s211, 4
          %s213 = scalar_lea.vmem %s0, %s212
          %s214 = smul.u32 256, %s15
        $region40: #{tpu_custom_call.1} parent=35 // pred_fallthru
          _
      $region36: #{tpu_custom_call.1} parent=5 // pred_fallthru
        _
      %p215 = scmp.le.s32.totalorder 1, %s15
      %p216 = scmp.lt.s32.totalorder %s15, 3
      %p217 = pnand %p215, %p216
      %p218 = pneg %p217
      // Predicated region
      $region41: #{tpu_custom_call.1} parent=5 // pred_check
        _
      $region42: #{tpu_custom_call.1} parent=5 // pred_check_branch
        %220 = sbr.rel (%p217) target = $region44
      $region43: #{tpu_custom_call.1} parent=5 // pred_region
        %s221 = ssub.s32 %s15, 1
        %s222 = smul.u32 256, %s20
        %p223 = scmp.lt.s32.totalorder %s222, 511
        %s224 = scalar_select %p223, %s222, 511
        %s225 = smul.addr %s224, 4
        %s226 = scalar_lea.vmem %s0, %s225
        %p227 = pneg %p41
        %p228 = pneg %p38
        %p229 = pneg %p62
        %p230 = pneg %p59
        %p231 = pneg %p83
        %p232 = pneg %p80
        %p233 = pneg %p104
        %p234 = pneg %p101
        %p235 = pneg %p125
        %p236 = pneg %p122
        %p237 = pneg %p146
        %p238 = pneg %p143
        %p239 = pneg %p172
        %p240 = pneg %p169
        %s241 = sand.u32 %s159, 1
        %s242 = scalar_lea.sflag [#allocation3], %s241
        %s243 = sand.u32 %s159, 1
        %s244 = smul.addr %s243, 8
        %s245 = scalar_lea.vmem [#allocation2], %s244
        %s246 = smul.u32 256, %s20
        %p247 = scmp.lt.s32.totalorder %s246, 511
        %s248 = scalar_select %p247, %s246, 511
        %s249 = smul.addr %s248, 4
        %s250 = scalar_lea.vmem %s0, %s249
        %s251 = smul.u32 256, %s20
        %v253 = vld [vmem:[%s250] sm:$0xf]
        %v254 = vld [vmem:[%s250 + $0x4] sm:$0xf]
        %v255 = vld [vmem:[%s250 + $0x8] sm:$0xf]
        %v256 = vld [vmem:[%s250 + $0xc] sm:$0xf]
        %v257 = vld [vmem:[%s250 + $0x10] sm:$0xf]
        %v258 = vld [vmem:[%s250 + $0x14] sm:$0xf]
        %v259 = vld [vmem:[%s250 + $0x18] sm:$0xf]
        %v260 = vld [vmem:[%s250 + $0x1c] sm:$0xf]
        %v261 = vld [vmem:[%s250 + $0x20] sm:$0xf]
        %v262 = vld [vmem:[%s250 + $0x24] sm:$0xf]
        %v263 = vld [vmem:[%s250 + $0x28] sm:$0xf]
        %v264 = vld [vmem:[%s250 + $0x2c] sm:$0xf]
        %v265 = vld [vmem:[%s250 + $0x30] sm:$0xf]
        %v266 = vld [vmem:[%s250 + $0x34] sm:$0xf]
        %v267 = vld [vmem:[%s250 + $0x38] sm:$0xf]
        %v268 = vld [vmem:[%s250 + $0x3c] sm:$0xf]
        %v269 = vld [vmem:[%s250 + $0x40] sm:$0xf]
        %v270 = vld [vmem:[%s250 + $0x44] sm:$0xf]
        %v271 = vld [vmem:[%s250 + $0x48] sm:$0xf]
        %v272 = vld [vmem:[%s250 + $0x4c] sm:$0xf]
        %v273 = vld [vmem:[%s250 + $0x50] sm:$0xf]
        %v274 = vld [vmem:[%s250 + $0x54] sm:$0xf]
        %v275 = vld [vmem:[%s250 + $0x58] sm:$0xf]
        %v276 = vld [vmem:[%s250 + $0x5c] sm:$0xf]
        %v277 = vld [vmem:[%s250 + $0x60] sm:$0xf]
        %v278 = vld [vmem:[%s250 + $0x64] sm:$0xf]
        %v279 = vld [vmem:[%s250 + $0x68] sm:$0xf]
        %v280 = vld [vmem:[%s250 + $0x6c] sm:$0xf]
        %v281 = vld [vmem:[%s250 + $0x70] sm:$0xf]
        %v282 = vld [vmem:[%s250 + $0x74] sm:$0xf]
        %v283 = vld [vmem:[%s250 + $0x78] sm:$0xf]
        %v284 = vld [vmem:[%s250 + $0x7c] sm:$0xf]
        %v285 = vld [vmem:[%s250 + $0x80] sm:$0xf]
        %v286 = vld [vmem:[%s250 + $0x84] sm:$0xf]
        %v287 = vld [vmem:[%s250 + $0x88] sm:$0xf]
        %v288 = vld [vmem:[%s250 + $0x8c] sm:$0xf]
        %v289 = vld [vmem:[%s250 + $0x90] sm:$0xf]
        %v290 = vld [vmem:[%s250 + $0x94] sm:$0xf]
        %v291 = vld [vmem:[%s250 + $0x98] sm:$0xf]
        %v292 = vld [vmem:[%s250 + $0x9c] sm:$0xf]
        %v293 = vld [vmem:[%s250 + $0xa0] sm:$0xf]
        %v294 = vld [vmem:[%s250 + $0xa4] sm:$0xf]
        %v295 = vld [vmem:[%s250 + $0xa8] sm:$0xf]
        %v296 = vld [vmem:[%s250 + $0xac] sm:$0xf]
        %v297 = vld [vmem:[%s250 + $0xb0] sm:$0xf]
        %v298 = vld [vmem:[%s250 + $0xb4] sm:$0xf]
        %v299 = vld [vmem:[%s250 + $0xb8] sm:$0xf]
        %v300 = vld [vmem:[%s250 + $0xbc] sm:$0xf]
        %v301 = vld [vmem:[%s250 + $0xc0] sm:$0xf]
        %v302 = vld [vmem:[%s250 + $0xc4] sm:$0xf]
        %v303 = vld [vmem:[%s250 + $0xc8] sm:$0xf]
        %v304 = vld [vmem:[%s250 + $0xcc] sm:$0xf]
        %v305 = vld [vmem:[%s250 + $0xd0] sm:$0xf]
        %v306 = vld [vmem:[%s250 + $0xd4] sm:$0xf]
        %v307 = vld [vmem:[%s250 + $0xd8] sm:$0xf]
        %v308 = vld [vmem:[%s250 + $0xdc] sm:$0xf]
        %v309 = vld [vmem:[%s250 + $0xe0] sm:$0xf]
        %v310 = vld [vmem:[%s250 + $0xe4] sm:$0xf]
        %v311 = vld [vmem:[%s250 + $0xe8] sm:$0xf]
        %v312 = vld [vmem:[%s250 + $0xec] sm:$0xf]
        %v313 = vld [vmem:[%s250 + $0xf0] sm:$0xf]
        %v314 = vld [vmem:[%s250 + $0xf4] sm:$0xf]
        %v315 = vld [vmem:[%s250 + $0xf8] sm:$0xf]
        %v316 = vld [vmem:[%s250 + $0xfc] sm:$0xf]
        %v317 = vld [vmem:[%s250 + $0x100] sm:$0xf]
        %v318 = vld [vmem:[%s250 + $0x104] sm:$0xf]
        %v319 = vld [vmem:[%s250 + $0x108] sm:$0xf]
        %v320 = vld [vmem:[%s250 + $0x10c] sm:$0xf]
        %v321 = vld [vmem:[%s250 + $0x110] sm:$0xf]
        %v322 = vld [vmem:[%s250 + $0x114] sm:$0xf]
        %v323 = vld [vmem:[%s250 + $0x118] sm:$0xf]
        %v324 = vld [vmem:[%s250 + $0x11c] sm:$0xf]
        %v325 = vld [vmem:[%s250 + $0x120] sm:$0xf]
        %v326 = vld [vmem:[%s250 + $0x124] sm:$0xf]
        %v327 = vld [vmem:[%s250 + $0x128] sm:$0xf]
        %v328 = vld [vmem:[%s250 + $0x12c] sm:$0xf]
        %v329 = vld [vmem:[%s250 + $0x130] sm:$0xf]
        %v330 = vld [vmem:[%s250 + $0x134] sm:$0xf]
        %v331 = vld [vmem:[%s250 + $0x138] sm:$0xf]
        %v332 = vld [vmem:[%s250 + $0x13c] sm:$0xf]
        %v333 = vld [vmem:[%s250 + $0x140] sm:$0xf]
        %v334 = vld [vmem:[%s250 + $0x144] sm:$0xf]
        %v335 = vld [vmem:[%s250 + $0x148] sm:$0xf]
        %v336 = vld [vmem:[%s250 + $0x14c] sm:$0xf]
        %v337 = vld [vmem:[%s250 + $0x150] sm:$0xf]
        %v338 = vld [vmem:[%s250 + $0x154] sm:$0xf]
        %v339 = vld [vmem:[%s250 + $0x158] sm:$0xf]
        %v340 = vld [vmem:[%s250 + $0x15c] sm:$0xf]
        %v341 = vld [vmem:[%s250 + $0x160] sm:$0xf]
        %v342 = vld [vmem:[%s250 + $0x164] sm:$0xf]
        %v343 = vld [vmem:[%s250 + $0x168] sm:$0xf]
        %v344 = vld [vmem:[%s250 + $0x16c] sm:$0xf]
        %v345 = vld [vmem:[%s250 + $0x170] sm:$0xf]
        %v346 = vld [vmem:[%s250 + $0x174] sm:$0xf]
        %v347 = vld [vmem:[%s250 + $0x178] sm:$0xf]
        %v348 = vld [vmem:[%s250 + $0x17c] sm:$0xf]
        %v349 = vld [vmem:[%s250 + $0x180] sm:$0xf]
        %v350 = vld [vmem:[%s250 + $0x184] sm:$0xf]
        %v351 = vld [vmem:[%s250 + $0x188] sm:$0xf]
        %v352 = vld [vmem:[%s250 + $0x18c] sm:$0xf]
        %v353 = vld [vmem:[%s250 + $0x190] sm:$0xf]
        %v354 = vld [vmem:[%s250 + $0x194] sm:$0xf]
        %v355 = vld [vmem:[%s250 + $0x198] sm:$0xf]
        %v356 = vld [vmem:[%s250 + $0x19c] sm:$0xf]
        %v357 = vld [vmem:[%s250 + $0x1a0] sm:$0xf]
        %v358 = vld [vmem:[%s250 + $0x1a4] sm:$0xf]
        %v359 = vld [vmem:[%s250 + $0x1a8] sm:$0xf]
        %v360 = vld [vmem:[%s250 + $0x1ac] sm:$0xf]
        %v361 = vld [vmem:[%s250 + $0x1b0] sm:$0xf]
        %v362 = vld [vmem:[%s250 + $0x1b4] sm:$0xf]
        %v363 = vld [vmem:[%s250 + $0x1b8] sm:$0xf]
        %v364 = vld [vmem:[%s250 + $0x1bc] sm:$0xf]
        %v365 = vld [vmem:[%s250 + $0x1c0] sm:$0xf]
        %v366 = vld [vmem:[%s250 + $0x1c4] sm:$0xf]
        %v367 = vld [vmem:[%s250 + $0x1c8] sm:$0xf]
        %v368 = vld [vmem:[%s250 + $0x1cc] sm:$0xf]
        %v369 = vld [vmem:[%s250 + $0x1d0] sm:$0xf]
        %v370 = vld [vmem:[%s250 + $0x1d4] sm:$0xf]
        %v371 = vld [vmem:[%s250 + $0x1d8] sm:$0xf]
        %v372 = vld [vmem:[%s250 + $0x1dc] sm:$0xf]
        %v373 = vld [vmem:[%s250 + $0x1e0] sm:$0xf]
        %v374 = vld [vmem:[%s250 + $0x1e4] sm:$0xf]
        %v375 = vld [vmem:[%s250 + $0x1e8] sm:$0xf]
        %v376 = vld [vmem:[%s250 + $0x1ec] sm:$0xf]
        %v377 = vld [vmem:[%s250 + $0x1f0] sm:$0xf]
        %v378 = vld [vmem:[%s250 + $0x1f4] sm:$0xf]
        %v379 = vld [vmem:[%s250 + $0x1f8] sm:$0xf]
        %v380 = vld [vmem:[%s250 + $0x1fc] sm:$0xf]
        %v381 = vld [vmem:[%s250 + $0x200] sm:$0xf]
        %v382 = vld [vmem:[%s250 + $0x204] sm:$0xf]
        %v383 = vld [vmem:[%s250 + $0x208] sm:$0xf]
        %v384 = vld [vmem:[%s250 + $0x20c] sm:$0xf]
        %v385 = vld [vmem:[%s250 + $0x210] sm:$0xf]
        %v386 = vld [vmem:[%s250 + $0x214] sm:$0xf]
        %v387 = vld [vmem:[%s250 + $0x218] sm:$0xf]
        %v388 = vld [vmem:[%s250 + $0x21c] sm:$0xf]
        %v389 = vld [vmem:[%s250 + $0x220] sm:$0xf]
        %v390 = vld [vmem:[%s250 + $0x224] sm:$0xf]
        %v391 = vld [vmem:[%s250 + $0x228] sm:$0xf]
        %v392 = vld [vmem:[%s250 + $0x22c] sm:$0xf]
        %v393 = vld [vmem:[%s250 + $0x230] sm:$0xf]
        %v394 = vld [vmem:[%s250 + $0x234] sm:$0xf]
        %v395 = vld [vmem:[%s250 + $0x238] sm:$0xf]
        %v396 = vld [vmem:[%s250 + $0x23c] sm:$0xf]
        %v397 = vld [vmem:[%s250 + $0x240] sm:$0xf]
        %v398 = vld [vmem:[%s250 + $0x244] sm:$0xf]
        %v399 = vld [vmem:[%s250 + $0x248] sm:$0xf]
        %v400 = vld [vmem:[%s250 + $0x24c] sm:$0xf]
        %v401 = vld [vmem:[%s250 + $0x250] sm:$0xf]
        %v402 = vld [vmem:[%s250 + $0x254] sm:$0xf]
        %v403 = vld [vmem:[%s250 + $0x258] sm:$0xf]
        %v404 = vld [vmem:[%s250 + $0x25c] sm:$0xf]
        %v405 = vld [vmem:[%s250 + $0x260] sm:$0xf]
        %v406 = vld [vmem:[%s250 + $0x264] sm:$0xf]
        %v407 = vld [vmem:[%s250 + $0x268] sm:$0xf]
        %v408 = vld [vmem:[%s250 + $0x26c] sm:$0xf]
        %v409 = vld [vmem:[%s250 + $0x270] sm:$0xf]
        %v410 = vld [vmem:[%s250 + $0x274] sm:$0xf]
        %v411 = vld [vmem:[%s250 + $0x278] sm:$0xf]
        %v412 = vld [vmem:[%s250 + $0x27c] sm:$0xf]
        %v413 = vld [vmem:[%s250 + $0x280] sm:$0xf]
        %v414 = vld [vmem:[%s250 + $0x284] sm:$0xf]
        %v415 = vld [vmem:[%s250 + $0x288] sm:$0xf]
        %v416 = vld [vmem:[%s250 + $0x28c] sm:$0xf]
        %v417 = vld [vmem:[%s250 + $0x290] sm:$0xf]
        %v418 = vld [vmem:[%s250 + $0x294] sm:$0xf]
        %v419 = vld [vmem:[%s250 + $0x298] sm:$0xf]
        %v420 = vld [vmem:[%s250 + $0x29c] sm:$0xf]
        %v421 = vld [vmem:[%s250 + $0x2a0] sm:$0xf]
        %v422 = vld [vmem:[%s250 + $0x2a4] sm:$0xf]
        %v423 = vld [vmem:[%s250 + $0x2a8] sm:$0xf]
        %v424 = vld [vmem:[%s250 + $0x2ac] sm:$0xf]
        %v425 = vld [vmem:[%s250 + $0x2b0] sm:$0xf]
        %v426 = vld [vmem:[%s250 + $0x2b4] sm:$0xf]
        %v427 = vld [vmem:[%s250 + $0x2b8] sm:$0xf]
        %v428 = vld [vmem:[%s250 + $0x2bc] sm:$0xf]
        %v429 = vld [vmem:[%s250 + $0x2c0] sm:$0xf]
        %v430 = vld [vmem:[%s250 + $0x2c4] sm:$0xf]
        %v431 = vld [vmem:[%s250 + $0x2c8] sm:$0xf]
        %v432 = vld [vmem:[%s250 + $0x2cc] sm:$0xf]
        %v433 = vld [vmem:[%s250 + $0x2d0] sm:$0xf]
        %v434 = vld [vmem:[%s250 + $0x2d4] sm:$0xf]
        %v435 = vld [vmem:[%s250 + $0x2d8] sm:$0xf]
        %v436 = vld [vmem:[%s250 + $0x2dc] sm:$0xf]
        %v437 = vld [vmem:[%s250 + $0x2e0] sm:$0xf]
        %v438 = vld [vmem:[%s250 + $0x2e4] sm:$0xf]
        %v439 = vld [vmem:[%s250 + $0x2e8] sm:$0xf]
        %v440 = vld [vmem:[%s250 + $0x2ec] sm:$0xf]
        %v441 = vld [vmem:[%s250 + $0x2f0] sm:$0xf]
        %v442 = vld [vmem:[%s250 + $0x2f4] sm:$0xf]
        %v443 = vld [vmem:[%s250 + $0x2f8] sm:$0xf]
        %v444 = vld [vmem:[%s250 + $0x2fc] sm:$0xf]
        %v445 = vld [vmem:[%s250 + $0x300] sm:$0xf]
        %v446 = vld [vmem:[%s250 + $0x304] sm:$0xf]
        %v447 = vld [vmem:[%s250 + $0x308] sm:$0xf]
        %v448 = vld [vmem:[%s250 + $0x30c] sm:$0xf]
        %v449 = vld [vmem:[%s250 + $0x310] sm:$0xf]
        %v450 = vld [vmem:[%s250 + $0x314] sm:$0xf]
        %v451 = vld [vmem:[%s250 + $0x318] sm:$0xf]
        %v452 = vld [vmem:[%s250 + $0x31c] sm:$0xf]
        %v453 = vld [vmem:[%s250 + $0x320] sm:$0xf]
        %v454 = vld [vmem:[%s250 + $0x324] sm:$0xf]
        %v455 = vld [vmem:[%s250 + $0x328] sm:$0xf]
        %v456 = vld [vmem:[%s250 + $0x32c] sm:$0xf]
        %v457 = vld [vmem:[%s250 + $0x330] sm:$0xf]
        %v458 = vld [vmem:[%s250 + $0x334] sm:$0xf]
        %v459 = vld [vmem:[%s250 + $0x338] sm:$0xf]
        %v460 = vld [vmem:[%s250 + $0x33c] sm:$0xf]
        %v461 = vld [vmem:[%s250 + $0x340] sm:$0xf]
        %v462 = vld [vmem:[%s250 + $0x344] sm:$0xf]
        %v463 = vld [vmem:[%s250 + $0x348] sm:$0xf]
        %v464 = vld [vmem:[%s250 + $0x34c] sm:$0xf]
        %v465 = vld [vmem:[%s250 + $0x350] sm:$0xf]
        %v466 = vld [vmem:[%s250 + $0x354] sm:$0xf]
        %v467 = vld [vmem:[%s250 + $0x358] sm:$0xf]
        %v468 = vld [vmem:[%s250 + $0x35c] sm:$0xf]
        %v469 = vld [vmem:[%s250 + $0x360] sm:$0xf]
        %v470 = vld [vmem:[%s250 + $0x364] sm:$0xf]
        %v471 = vld [vmem:[%s250 + $0x368] sm:$0xf]
        %v472 = vld [vmem:[%s250 + $0x36c] sm:$0xf]
        %v473 = vld [vmem:[%s250 + $0x370] sm:$0xf]
        %v474 = vld [vmem:[%s250 + $0x374] sm:$0xf]
        %v475 = vld [vmem:[%s250 + $0x378] sm:$0xf]
        %v476 = vld [vmem:[%s250 + $0x37c] sm:$0xf]
        %v477 = vld [vmem:[%s250 + $0x380] sm:$0xf]
        %v478 = vld [vmem:[%s250 + $0x384] sm:$0xf]
        %v479 = vld [vmem:[%s250 + $0x388] sm:$0xf]
        %v480 = vld [vmem:[%s250 + $0x38c] sm:$0xf]
        %v481 = vld [vmem:[%s250 + $0x390] sm:$0xf]
        %v482 = vld [vmem:[%s250 + $0x394] sm:$0xf]
        %v483 = vld [vmem:[%s250 + $0x398] sm:$0xf]
        %v484 = vld [vmem:[%s250 + $0x39c] sm:$0xf]
        %v485 = vld [vmem:[%s250 + $0x3a0] sm:$0xf]
        %v486 = vld [vmem:[%s250 + $0x3a4] sm:$0xf]
        %v487 = vld [vmem:[%s250 + $0x3a8] sm:$0xf]
        %v488 = vld [vmem:[%s250 + $0x3ac] sm:$0xf]
        %v489 = vld [vmem:[%s250 + $0x3b0] sm:$0xf]
        %v490 = vld [vmem:[%s250 + $0x3b4] sm:$0xf]
        %v491 = vld [vmem:[%s250 + $0x3b8] sm:$0xf]
        %v492 = vld [vmem:[%s250 + $0x3bc] sm:$0xf]
        %v493 = vld [vmem:[%s250 + $0x3c0] sm:$0xf]
        %v494 = vld [vmem:[%s250 + $0x3c4] sm:$0xf]
        %v495 = vld [vmem:[%s250 + $0x3c8] sm:$0xf]
        %v496 = vld [vmem:[%s250 + $0x3cc] sm:$0xf]
        %v497 = vld [vmem:[%s250 + $0x3d0] sm:$0xf]
        %v498 = vld [vmem:[%s250 + $0x3d4] sm:$0xf]
        %v499 = vld [vmem:[%s250 + $0x3d8] sm:$0xf]
        %v500 = vld [vmem:[%s250 + $0x3dc] sm:$0xf]
        %v501 = vld [vmem:[%s250 + $0x3e0] sm:$0xf]
        %v502 = vld [vmem:[%s250 + $0x3e4] sm:$0xf]
        %v503 = vld [vmem:[%s250 + $0x3e8] sm:$0xf]
        %v504 = vld [vmem:[%s250 + $0x3ec] sm:$0xf]
        %v505 = vld [vmem:[%s250 + $0x3f0] sm:$0xf]
        %v506 = vld [vmem:[%s250 + $0x3f4] sm:$0xf]
        %v507 = vld [vmem:[%s250 + $0x3f8] sm:$0xf]
        %v508 = vld [vmem:[%s250 + $0x3fc] sm:$0xf]
        %v509 = vld [vmem:[%s1] sm:$0xf]
        %v510 = vld [vmem:[%s1 + $0x4] sm:$0xf]
        %v511 = vld [vmem:[%s1 + $0x8] sm:$0xf]
        %v512 = vld [vmem:[%s1 + $0xc] sm:$0xf]
        %v513 = vld [vmem:[%s2] sm:$0x1]
        %v515 = vlaneseq
        %v516 = vshrl.u32 %v515, 7
        %v517 = vsub.s32 0, %v516
        %v518 = vrot.slane %v513, %v517
        %v776 = vunpack.c.l.b16 %v253
        %v777 = vunpack.c.l.b16 %v254
        %v778 = vunpack.c.l.b16 %v255
        %v779 = vunpack.c.l.b16 %v256
        %v780 = vunpack.c.l.b16 %v257
        %v781 = vunpack.c.l.b16 %v258
        %v782 = vunpack.c.l.b16 %v259
        %v783 = vunpack.c.l.b16 %v260
        %v784 = vunpack.c.l.b16 %v261
        %v785 = vunpack.c.l.b16 %v262
        %v786 = vunpack.c.l.b16 %v263
        %v787 = vunpack.c.l.b16 %v264
        %v788 = vunpack.c.l.b16 %v265
        %v789 = vunpack.c.l.b16 %v266
        %v790 = vunpack.c.l.b16 %v267
        %v791 = vunpack.c.l.b16 %v268
        %v792 = vunpack.c.l.b16 %v269
        %v793 = vunpack.c.l.b16 %v270
        %v794 = vunpack.c.l.b16 %v271
        %v795 = vunpack.c.l.b16 %v272
        %v796 = vunpack.c.l.b16 %v273
        %v797 = vunpack.c.l.b16 %v274
        %v798 = vunpack.c.l.b16 %v275
        %v799 = vunpack.c.l.b16 %v276
        %v800 = vunpack.c.l.b16 %v277
        %v801 = vunpack.c.l.b16 %v278
        %v802 = vunpack.c.l.b16 %v279
        %v803 = vunpack.c.l.b16 %v280
        %v804 = vunpack.c.l.b16 %v281
        %v805 = vunpack.c.l.b16 %v282
        %v806 = vunpack.c.l.b16 %v283
        %v807 = vunpack.c.l.b16 %v284
        %v808 = vunpack.c.l.b16 %v285
        %v809 = vunpack.c.l.b16 %v286
        %v810 = vunpack.c.l.b16 %v287
        %v811 = vunpack.c.l.b16 %v288
        %v812 = vunpack.c.l.b16 %v289
        %v813 = vunpack.c.l.b16 %v290
        %v814 = vunpack.c.l.b16 %v291
        %v815 = vunpack.c.l.b16 %v292
        %v816 = vunpack.c.l.b16 %v293
        %v817 = vunpack.c.l.b16 %v294
        %v818 = vunpack.c.l.b16 %v295
        %v819 = vunpack.c.l.b16 %v296
        %v820 = vunpack.c.l.b16 %v297
        %v821 = vunpack.c.l.b16 %v298
        %v822 = vunpack.c.l.b16 %v299
        %v823 = vunpack.c.l.b16 %v300
        %v824 = vunpack.c.l.b16 %v301
        %v825 = vunpack.c.l.b16 %v302
        %v826 = vunpack.c.l.b16 %v303
        %v827 = vunpack.c.l.b16 %v304
        %v828 = vunpack.c.l.b16 %v305
        %v829 = vunpack.c.l.b16 %v306
        %v830 = vunpack.c.l.b16 %v307
        %v831 = vunpack.c.l.b16 %v308
        %v832 = vunpack.c.l.b16 %v309
        %v833 = vunpack.c.l.b16 %v310
        %v834 = vunpack.c.l.b16 %v311
        %v835 = vunpack.c.l.b16 %v312
        %v836 = vunpack.c.l.b16 %v313
        %v837 = vunpack.c.l.b16 %v314
        %v838 = vunpack.c.l.b16 %v315
        %v839 = vunpack.c.l.b16 %v316
        %v840 = vunpack.c.l.b16 %v317
        %v841 = vunpack.c.l.b16 %v318
        %v842 = vunpack.c.l.b16 %v319
        %v843 = vunpack.c.l.b16 %v320
        %v844 = vunpack.c.l.b16 %v321
        %v845 = vunpack.c.l.b16 %v322
        %v846 = vunpack.c.l.b16 %v323
        %v847 = vunpack.c.l.b16 %v324
        %v848 = vunpack.c.l.b16 %v325
        %v849 = vunpack.c.l.b16 %v326
        %v850 = vunpack.c.l.b16 %v327
        %v851 = vunpack.c.l.b16 %v328
        %v852 = vunpack.c.l.b16 %v329
        %v853 = vunpack.c.l.b16 %v330
        %v854 = vunpack.c.l.b16 %v331
        %v855 = vunpack.c.l.b16 %v332
        %v856 = vunpack.c.l.b16 %v333
        %v857 = vunpack.c.l.b16 %v334
        %v858 = vunpack.c.l.b16 %v335
        %v859 = vunpack.c.l.b16 %v336
        %v860 = vunpack.c.l.b16 %v337
        %v861 = vunpack.c.l.b16 %v338
        %v862 = vunpack.c.l.b16 %v339
        %v863 = vunpack.c.l.b16 %v340
        %v864 = vunpack.c.l.b16 %v341
        %v865 = vunpack.c.l.b16 %v342
        %v866 = vunpack.c.l.b16 %v343
        %v867 = vunpack.c.l.b16 %v344
        %v868 = vunpack.c.l.b16 %v345
        %v869 = vunpack.c.l.b16 %v346
        %v870 = vunpack.c.l.b16 %v347
        %v871 = vunpack.c.l.b16 %v348
        %v872 = vunpack.c.l.b16 %v349
        %v873 = vunpack.c.l.b16 %v350
        %v874 = vunpack.c.l.b16 %v351
        %v875 = vunpack.c.l.b16 %v352
        %v876 = vunpack.c.l.b16 %v353
        %v877 = vunpack.c.l.b16 %v354
        %v878 = vunpack.c.l.b16 %v355
        %v879 = vunpack.c.l.b16 %v356
        %v880 = vunpack.c.l.b16 %v357
        %v881 = vunpack.c.l.b16 %v358
        %v882 = vunpack.c.l.b16 %v359
        %v883 = vunpack.c.l.b16 %v360
        %v884 = vunpack.c.l.b16 %v361
        %v885 = vunpack.c.l.b16 %v362
        %v886 = vunpack.c.l.b16 %v363
        %v887 = vunpack.c.l.b16 %v364
        %v888 = vunpack.c.l.b16 %v365
        %v889 = vunpack.c.l.b16 %v366
        %v890 = vunpack.c.l.b16 %v367
        %v891 = vunpack.c.l.b16 %v368
        %v892 = vunpack.c.l.b16 %v369
        %v893 = vunpack.c.l.b16 %v370
        %v894 = vunpack.c.l.b16 %v371
        %v895 = vunpack.c.l.b16 %v372
        %v896 = vunpack.c.l.b16 %v373
        %v897 = vunpack.c.l.b16 %v374
        %v898 = vunpack.c.l.b16 %v375
        %v899 = vunpack.c.l.b16 %v376
        %v900 = vunpack.c.l.b16 %v377
        %v901 = vunpack.c.l.b16 %v378
        %v902 = vunpack.c.l.b16 %v379
        %v903 = vunpack.c.l.b16 %v380
        %v904 = vunpack.c.l.b16 %v381
        %v905 = vunpack.c.l.b16 %v382
        %v906 = vunpack.c.l.b16 %v383
        %v907 = vunpack.c.l.b16 %v384
        %v908 = vunpack.c.l.b16 %v385
        %v909 = vunpack.c.l.b16 %v386
        %v910 = vunpack.c.l.b16 %v387
        %v911 = vunpack.c.l.b16 %v388
        %v912 = vunpack.c.l.b16 %v389
        %v913 = vunpack.c.l.b16 %v390
        %v914 = vunpack.c.l.b16 %v391
        %v915 = vunpack.c.l.b16 %v392
        %v916 = vunpack.c.l.b16 %v393
        %v917 = vunpack.c.l.b16 %v394
        %v918 = vunpack.c.l.b16 %v395
        %v919 = vunpack.c.l.b16 %v396
        %v920 = vunpack.c.l.b16 %v397
        %v921 = vunpack.c.l.b16 %v398
        %v922 = vunpack.c.l.b16 %v399
        %v923 = vunpack.c.l.b16 %v400
        %v924 = vunpack.c.l.b16 %v401
        %v925 = vunpack.c.l.b16 %v402
        %v926 = vunpack.c.l.b16 %v403
        %v927 = vunpack.c.l.b16 %v404
        %v928 = vunpack.c.l.b16 %v405
        %v929 = vunpack.c.l.b16 %v406
        %v930 = vunpack.c.l.b16 %v407
        %v931 = vunpack.c.l.b16 %v408
        %v932 = vunpack.c.l.b16 %v409
        %v933 = vunpack.c.l.b16 %v410
        %v934 = vunpack.c.l.b16 %v411
        %v935 = vunpack.c.l.b16 %v412
        %v936 = vunpack.c.l.b16 %v413
        %v937 = vunpack.c.l.b16 %v414
        %v938 = vunpack.c.l.b16 %v415
        %v939 = vunpack.c.l.b16 %v416
        %v940 = vunpack.c.l.b16 %v417
        %v941 = vunpack.c.l.b16 %v418
        %v942 = vunpack.c.l.b16 %v419
        %v943 = vunpack.c.l.b16 %v420
        %v944 = vunpack.c.l.b16 %v421
        %v945 = vunpack.c.l.b16 %v422
        %v946 = vunpack.c.l.b16 %v423
        %v947 = vunpack.c.l.b16 %v424
        %v948 = vunpack.c.l.b16 %v425
        %v949 = vunpack.c.l.b16 %v426
        %v950 = vunpack.c.l.b16 %v427
        %v951 = vunpack.c.l.b16 %v428
        %v952 = vunpack.c.l.b16 %v429
        %v953 = vunpack.c.l.b16 %v430
        %v954 = vunpack.c.l.b16 %v431
        %v955 = vunpack.c.l.b16 %v432
        %v956 = vunpack.c.l.b16 %v433
        %v957 = vunpack.c.l.b16 %v434
        %v958 = vunpack.c.l.b16 %v435
        %v959 = vunpack.c.l.b16 %v436
        %v960 = vunpack.c.l.b16 %v437
        %v961 = vunpack.c.l.b16 %v438
        %v962 = vunpack.c.l.b16 %v439
        %v963 = vunpack.c.l.b16 %v440
        %v964 = vunpack.c.l.b16 %v441
        %v965 = vunpack.c.l.b16 %v442
        %v966 = vunpack.c.l.b16 %v443
        %v967 = vunpack.c.l.b16 %v444
        %v968 = vunpack.c.l.b16 %v445
        %v969 = vunpack.c.l.b16 %v446
        %v970 = vunpack.c.l.b16 %v447
        %v971 = vunpack.c.l.b16 %v448
        %v972 = vunpack.c.l.b16 %v449
        %v973 = vunpack.c.l.b16 %v450
        %v974 = vunpack.c.l.b16 %v451
        %v975 = vunpack.c.l.b16 %v452
        %v976 = vunpack.c.l.b16 %v453
        %v977 = vunpack.c.l.b16 %v454
        %v978 = vunpack.c.l.b16 %v455
        %v979 = vunpack.c.l.b16 %v456
        %v980 = vunpack.c.l.b16 %v457
        %v981 = vunpack.c.l.b16 %v458
        %v982 = vunpack.c.l.b16 %v459
        %v983 = vunpack.c.l.b16 %v460
        %v984 = vunpack.c.l.b16 %v461
        %v985 = vunpack.c.l.b16 %v462
        %v986 = vunpack.c.l.b16 %v463
        %v987 = vunpack.c.l.b16 %v464
        %v988 = vunpack.c.l.b16 %v465
        %v989 = vunpack.c.l.b16 %v466
        %v990 = vunpack.c.l.b16 %v467
        %v991 = vunpack.c.l.b16 %v468
        %v992 = vunpack.c.l.b16 %v469
        %v993 = vunpack.c.l.b16 %v470
        %v994 = vunpack.c.l.b16 %v471
        %v995 = vunpack.c.l.b16 %v472
        %v996 = vunpack.c.l.b16 %v473
        %v997 = vunpack.c.l.b16 %v474
        %v998 = vunpack.c.l.b16 %v475
        %v999 = vunpack.c.l.b16 %v476
        %v1000 = vunpack.c.l.b16 %v477
        %v1001 = vunpack.c.l.b16 %v478
        %v1002 = vunpack.c.l.b16 %v479
        %v1003 = vunpack.c.l.b16 %v480
        %v1004 = vunpack.c.l.b16 %v481
        %v1005 = vunpack.c.l.b16 %v482
        %v1006 = vunpack.c.l.b16 %v483
        %v1007 = vunpack.c.l.b16 %v484
        %v1008 = vunpack.c.l.b16 %v485
        %v1009 = vunpack.c.l.b16 %v486
        %v1010 = vunpack.c.l.b16 %v487
        %v1011 = vunpack.c.l.b16 %v488
        %v1012 = vunpack.c.l.b16 %v489
        %v1013 = vunpack.c.l.b16 %v490
        %v1014 = vunpack.c.l.b16 %v491
        %v1015 = vunpack.c.l.b16 %v492
        %v1016 = vunpack.c.l.b16 %v493
        %v1017 = vunpack.c.l.b16 %v494
        %v1018 = vunpack.c.l.b16 %v495
        %v1019 = vunpack.c.l.b16 %v496
        %v1020 = vunpack.c.l.b16 %v497
        %v1021 = vunpack.c.l.b16 %v498
        %v1022 = vunpack.c.l.b16 %v499
        %v1023 = vunpack.c.l.b16 %v500
        %v1024 = vunpack.c.l.b16 %v501
        %v1025 = vunpack.c.l.b16 %v502
        %v1026 = vunpack.c.l.b16 %v503
        %v1027 = vunpack.c.l.b16 %v504
        %v1028 = vunpack.c.l.b16 %v505
        %v1029 = vunpack.c.l.b16 %v506
        %v1030 = vunpack.c.l.b16 %v507
        %v1031 = vunpack.c.l.b16 %v508
        %v1032 = vpack.c.b16 %v777, %v776
        %v1033 = vpack.c.b16 %v779, %v778
        %v1034 = vpack.c.b16 %v781, %v780
        %v1035 = vpack.c.b16 %v783, %v782
        %v1036 = vpack.c.b16 %v785, %v784
        %v1037 = vpack.c.b16 %v787, %v786
        %v1038 = vpack.c.b16 %v789, %v788
        %v1039 = vpack.c.b16 %v791, %v790
        %v1040 = vpack.c.b16 %v793, %v792
        %v1041 = vpack.c.b16 %v795, %v794
        %v1042 = vpack.c.b16 %v797, %v796
        %v1043 = vpack.c.b16 %v799, %v798
        %v1044 = vpack.c.b16 %v801, %v800
        %v1045 = vpack.c.b16 %v803, %v802
        %v1046 = vpack.c.b16 %v805, %v804
        %v1047 = vpack.c.b16 %v807, %v806
        %v1048 = vpack.c.b16 %v809, %v808
        %v1049 = vpack.c.b16 %v811, %v810
        %v1050 = vpack.c.b16 %v813, %v812
        %v1051 = vpack.c.b16 %v815, %v814
        %v1052 = vpack.c.b16 %v817, %v816
        %v1053 = vpack.c.b16 %v819, %v818
        %v1054 = vpack.c.b16 %v821, %v820
        %v1055 = vpack.c.b16 %v823, %v822
        %v1056 = vpack.c.b16 %v825, %v824
        %v1057 = vpack.c.b16 %v827, %v826
        %v1058 = vpack.c.b16 %v829, %v828
        %v1059 = vpack.c.b16 %v831, %v830
        %v1060 = vpack.c.b16 %v833, %v832
        %v1061 = vpack.c.b16 %v835, %v834
        %v1062 = vpack.c.b16 %v837, %v836
        %v1063 = vpack.c.b16 %v839, %v838
        %v1064 = vpack.c.b16 %v841, %v840
        %v1065 = vpack.c.b16 %v843, %v842
        %v1066 = vpack.c.b16 %v845, %v844
        %v1067 = vpack.c.b16 %v847, %v846
        %v1068 = vpack.c.b16 %v849, %v848
        %v1069 = vpack.c.b16 %v851, %v850
        %v1070 = vpack.c.b16 %v853, %v852
        %v1071 = vpack.c.b16 %v855, %v854
        %v1072 = vpack.c.b16 %v857, %v856
        %v1073 = vpack.c.b16 %v859, %v858
        %v1074 = vpack.c.b16 %v861, %v860
        %v1075 = vpack.c.b16 %v863, %v862
        %v1076 = vpack.c.b16 %v865, %v864
        %v1077 = vpack.c.b16 %v867, %v866
        %v1078 = vpack.c.b16 %v869, %v868
        %v1079 = vpack.c.b16 %v871, %v870
        %v1080 = vpack.c.b16 %v873, %v872
        %v1081 = vpack.c.b16 %v875, %v874
        %v1082 = vpack.c.b16 %v877, %v876
        %v1083 = vpack.c.b16 %v879, %v878
        %v1084 = vpack.c.b16 %v881, %v880
        %v1085 = vpack.c.b16 %v883, %v882
        %v1086 = vpack.c.b16 %v885, %v884
        %v1087 = vpack.c.b16 %v887, %v886
        %v1088 = vpack.c.b16 %v889, %v888
        %v1089 = vpack.c.b16 %v891, %v890
        %v1090 = vpack.c.b16 %v893, %v892
        %v1091 = vpack.c.b16 %v895, %v894
        %v1092 = vpack.c.b16 %v897, %v896
        %v1093 = vpack.c.b16 %v899, %v898
        %v1094 = vpack.c.b16 %v901, %v900
        %v1095 = vpack.c.b16 %v903, %v902
        %v1096 = vpack.c.b16 %v905, %v904
        %v1097 = vpack.c.b16 %v907, %v906
        %v1098 = vpack.c.b16 %v909, %v908
        %v1099 = vpack.c.b16 %v911, %v910
        %v1100 = vpack.c.b16 %v913, %v912
        %v1101 = vpack.c.b16 %v915, %v914
        %v1102 = vpack.c.b16 %v917, %v916
        %v1103 = vpack.c.b16 %v919, %v918
        %v1104 = vpack.c.b16 %v921, %v920
        %v1105 = vpack.c.b16 %v923, %v922
        %v1106 = vpack.c.b16 %v925, %v924
        %v1107 = vpack.c.b16 %v927, %v926
        %v1108 = vpack.c.b16 %v929, %v928
        %v1109 = vpack.c.b16 %v931, %v930
        %v1110 = vpack.c.b16 %v933, %v932
        %v1111 = vpack.c.b16 %v935, %v934
        %v1112 = vpack.c.b16 %v937, %v936
        %v1113 = vpack.c.b16 %v939, %v938
        %v1114 = vpack.c.b16 %v941, %v940
        %v1115 = vpack.c.b16 %v943, %v942
        %v1116 = vpack.c.b16 %v945, %v944
        %v1117 = vpack.c.b16 %v947, %v946
        %v1118 = vpack.c.b16 %v949, %v948
        %v1119 = vpack.c.b16 %v951, %v950
        %v1120 = vpack.c.b16 %v953, %v952
        %v1121 = vpack.c.b16 %v955, %v954
        %v1122 = vpack.c.b16 %v957, %v956
        %v1123 = vpack.c.b16 %v959, %v958
        %v1124 = vpack.c.b16 %v961, %v960
        %v1125 = vpack.c.b16 %v963, %v962
        %v1126 = vpack.c.b16 %v965, %v964
        %v1127 = vpack.c.b16 %v967, %v966
        %v1128 = vpack.c.b16 %v969, %v968
        %v1129 = vpack.c.b16 %v971, %v970
        %v1130 = vpack.c.b16 %v973, %v972
        %v1131 = vpack.c.b16 %v975, %v974
        %v1132 = vpack.c.b16 %v977, %v976
        %v1133 = vpack.c.b16 %v979, %v978
        %v1134 = vpack.c.b16 %v981, %v980
        %v1135 = vpack.c.b16 %v983, %v982
        %v1136 = vpack.c.b16 %v985, %v984
        %v1137 = vpack.c.b16 %v987, %v986
        %v1138 = vpack.c.b16 %v989, %v988
        %v1139 = vpack.c.b16 %v991, %v990
        %v1140 = vpack.c.b16 %v993, %v992
        %v1141 = vpack.c.b16 %v995, %v994
        %v1142 = vpack.c.b16 %v997, %v996
        %v1143 = vpack.c.b16 %v999, %v998
        %v1144 = vpack.c.b16 %v1001, %v1000
        %v1145 = vpack.c.b16 %v1003, %v1002
        %v1146 = vpack.c.b16 %v1005, %v1004
        %v1147 = vpack.c.b16 %v1007, %v1006
        %v1148 = vpack.c.b16 %v1009, %v1008
        %v1149 = vpack.c.b16 %v1011, %v1010
        %v1150 = vpack.c.b16 %v1013, %v1012
        %v1151 = vpack.c.b16 %v1015, %v1014
        %v1152 = vpack.c.b16 %v1017, %v1016
        %v1153 = vpack.c.b16 %v1019, %v1018
        %v1154 = vpack.c.b16 %v1021, %v1020
        %v1155 = vpack.c.b16 %v1023, %v1022
        %v1156 = vpack.c.b16 %v1025, %v1024
        %v1157 = vpack.c.b16 %v1027, %v1026
        %v1158 = vpack.c.b16 %v1029, %v1028
        %v1159 = vpack.c.b16 %v1031, %v1030
        %v1164 = vunpack.c.l.b16 %v509
        %v1165 = vunpack.c.l.b16 %v510
        %v1166 = vunpack.c.l.b16 %v511
        %v1167 = vunpack.c.l.b16 %v512
        %v1168 = vpack.c.b16 %v1165, %v1164
        %v1169 = vpack.c.b16 %v1167, %v1166
        %vm1172 = vcmask 261120
        %v1174 = vsel %vm1172, %v1032, 0
        %v1177 = vsel %vm1172, %v1033, 0
        %v1180 = vsel %vm1172, %v1034, 0
        %v1183 = vsel %vm1172, %v1035, 0
        %v1186 = vsel %vm1172, %v1036, 0
        %v1189 = vsel %vm1172, %v1037, 0
        %v1192 = vsel %vm1172, %v1038, 0
        %v1195 = vsel %vm1172, %v1039, 0
        %v1198 = vsel %vm1172, %v1040, 0
        %v1201 = vsel %vm1172, %v1041, 0
        %v1204 = vsel %vm1172, %v1042, 0
        %v1207 = vsel %vm1172, %v1043, 0
        %v1210 = vsel %vm1172, %v1044, 0
        %v1213 = vsel %vm1172, %v1045, 0
        %v1216 = vsel %vm1172, %v1046, 0
        %v1219 = vsel %vm1172, %v1047, 0
        %v1222 = vsel %vm1172, %v1048, 0
        %v1225 = vsel %vm1172, %v1049, 0
        %v1228 = vsel %vm1172, %v1050, 0
        %v1231 = vsel %vm1172, %v1051, 0
        %v1234 = vsel %vm1172, %v1052, 0
        %v1237 = vsel %vm1172, %v1053, 0
        %v1240 = vsel %vm1172, %v1054, 0
        %v1243 = vsel %vm1172, %v1055, 0
        %v1246 = vsel %vm1172, %v1056, 0
        %v1249 = vsel %vm1172, %v1057, 0
        %v1252 = vsel %vm1172, %v1058, 0
        %v1255 = vsel %vm1172, %v1059, 0
        %v1258 = vsel %vm1172, %v1060, 0
        %v1261 = vsel %vm1172, %v1061, 0
        %v1264 = vsel %vm1172, %v1062, 0
        %v1267 = vsel %vm1172, %v1063, 0
        %v1270 = vsel %vm1172, %v1064, 0
        %v1273 = vsel %vm1172, %v1065, 0
        %v1276 = vsel %vm1172, %v1066, 0
        %v1279 = vsel %vm1172, %v1067, 0
        %v1282 = vsel %vm1172, %v1068, 0
        %v1285 = vsel %vm1172, %v1069, 0
        %v1288 = vsel %vm1172, %v1070, 0
        %v1291 = vsel %vm1172, %v1071, 0
        %v1294 = vsel %vm1172, %v1072, 0
        %v1297 = vsel %vm1172, %v1073, 0
        %v1300 = vsel %vm1172, %v1074, 0
        %v1303 = vsel %vm1172, %v1075, 0
        %v1306 = vsel %vm1172, %v1076, 0
        %v1309 = vsel %vm1172, %v1077, 0
        %v1312 = vsel %vm1172, %v1078, 0
        %v1315 = vsel %vm1172, %v1079, 0
        %v1318 = vsel %vm1172, %v1080, 0
        %v1321 = vsel %vm1172, %v1081, 0
        %v1324 = vsel %vm1172, %v1082, 0
        %v1327 = vsel %vm1172, %v1083, 0
        %v1330 = vsel %vm1172, %v1084, 0
        %v1333 = vsel %vm1172, %v1085, 0
        %v1336 = vsel %vm1172, %v1086, 0
        %v1339 = vsel %vm1172, %v1087, 0
        %v1342 = vsel %vm1172, %v1088, 0
        %v1345 = vsel %vm1172, %v1089, 0
        %v1348 = vsel %vm1172, %v1090, 0
        %v1351 = vsel %vm1172, %v1091, 0
        %v1354 = vsel %vm1172, %v1092, 0
        %v1357 = vsel %vm1172, %v1093, 0
        %v1360 = vsel %vm1172, %v1094, 0
        %v1363 = vsel %vm1172, %v1095, 0
        %v1366 = vsel %vm1172, %v1096, 0
        %v1369 = vsel %vm1172, %v1097, 0
        %v1372 = vsel %vm1172, %v1098, 0
        %v1375 = vsel %vm1172, %v1099, 0
        %v1378 = vsel %vm1172, %v1100, 0
        %v1381 = vsel %vm1172, %v1101, 0
        %v1384 = vsel %vm1172, %v1102, 0
        %v1387 = vsel %vm1172, %v1103, 0
        %v1390 = vsel %vm1172, %v1104, 0
        %v1393 = vsel %vm1172, %v1105, 0
        %v1396 = vsel %vm1172, %v1106, 0
        %v1399 = vsel %vm1172, %v1107, 0
        %v1402 = vsel %vm1172, %v1108, 0
        %v1405 = vsel %vm1172, %v1109, 0
        %v1408 = vsel %vm1172, %v1110, 0
        %v1411 = vsel %vm1172, %v1111, 0
        %v1414 = vsel %vm1172, %v1112, 0
        %v1417 = vsel %vm1172, %v1113, 0
        %v1420 = vsel %vm1172, %v1114, 0
        %v1423 = vsel %vm1172, %v1115, 0
        %v1426 = vsel %vm1172, %v1116, 0
        %v1429 = vsel %vm1172, %v1117, 0
        %v1432 = vsel %vm1172, %v1118, 0
        %v1435 = vsel %vm1172, %v1119, 0
        %v1438 = vsel %vm1172, %v1120, 0
        %v1441 = vsel %vm1172, %v1121, 0
        %v1444 = vsel %vm1172, %v1122, 0
        %v1447 = vsel %vm1172, %v1123, 0
        %v1450 = vsel %vm1172, %v1124, 0
        %v1453 = vsel %vm1172, %v1125, 0
        %v1456 = vsel %vm1172, %v1126, 0
        %v1459 = vsel %vm1172, %v1127, 0
        %v1462 = vsel %vm1172, %v1128, 0
        %v1465 = vsel %vm1172, %v1129, 0
        %v1468 = vsel %vm1172, %v1130, 0
        %v1471 = vsel %vm1172, %v1131, 0
        %v1474 = vsel %vm1172, %v1132, 0
        %v1477 = vsel %vm1172, %v1133, 0
        %v1480 = vsel %vm1172, %v1134, 0
        %v1483 = vsel %vm1172, %v1135, 0
        %v1486 = vsel %vm1172, %v1136, 0
        %v1489 = vsel %vm1172, %v1137, 0
        %v1492 = vsel %vm1172, %v1138, 0
        %v1495 = vsel %vm1172, %v1139, 0
        %v1498 = vsel %vm1172, %v1140, 0
        %v1501 = vsel %vm1172, %v1141, 0
        %v1504 = vsel %vm1172, %v1142, 0
        %v1507 = vsel %vm1172, %v1143, 0
        %v1510 = vsel %vm1172, %v1144, 0
        %v1513 = vsel %vm1172, %v1145, 0
        %v1516 = vsel %vm1172, %v1146, 0
        %v1519 = vsel %vm1172, %v1147, 0
        %v1522 = vsel %vm1172, %v1148, 0
        %v1525 = vsel %vm1172, %v1149, 0
        %v1528 = vsel %vm1172, %v1150, 0
        %v1531 = vsel %vm1172, %v1151, 0
        %v1534 = vsel %vm1172, %v1152, 0
        %v1537 = vsel %vm1172, %v1153, 0
        %v1540 = vsel %vm1172, %v1154, 0
        %v1543 = vsel %vm1172, %v1155, 0
        %v1546 = vsel %vm1172, %v1156, 0
        %v1549 = vsel %vm1172, %v1157, 0
        %v1552 = vsel %vm1172, %v1158, 0
        %v1555 = vsel %vm1172, %v1159, 0
        %1557 = vmatprep.subr.bf16.mxu0 0
        %1558 = vmatpush1.bf16.msra.mxu0 %v1168
        %1559 = vmatprep.subr.bf16.mxu0 0
        %1560 = vmatpush1.bf16.msra.mxu0 %v1169
        %1561 = vmatprep.subr.bf16.mxu0 0
        %1562 = vmatpush1.bf16.msra.mxu0 0
        %1563 = vmatprep.subr.bf16.mxu0 0
        %1564 = vmatpush1.bf16.msra.mxu0 0
        %1565 = vmatprep.subr.bf16.mxu0 0
        %1566 = vmatpush1.bf16.msra.mxu0 0
        %1567 = vmatprep.subr.bf16.mxu0 0
        %1568 = vmatpush1.bf16.msra.mxu0 0
        %1569 = vmatprep.subr.bf16.mxu0 0
        %1570 = vmatpush1.bf16.msra.mxu0 0
        %1571 = vmatprep.subr.bf16.mxu0 0
        %1572 = vmatpush1.bf16.msra.mxu0 0
        %1573 = vmatprep.subr.bf16.mxu0 0
        %1574 = vmatpush1.bf16.msra.mxu0 0
        %1575 = vmatprep.subr.bf16.mxu0 0
        %1576 = vmatpush1.bf16.msra.mxu0 0
        %1577 = vmatprep.subr.bf16.mxu0 0
        %1578 = vmatpush1.bf16.msra.mxu0 0
        %1579 = vmatprep.subr.bf16.mxu0 0
        %1580 = vmatpush1.bf16.msra.mxu0 0
        %1581 = vmatprep.subr.bf16.mxu0 0
        %1582 = vmatpush1.bf16.msra.mxu0 0
        %1583 = vmatprep.subr.bf16.mxu0 0
        %1584 = vmatpush1.bf16.msra.mxu0 0
        %1585 = vmatprep.subr.bf16.mxu0 0
        %1586 = vmatpush1.bf16.msra.mxu0 0
        %1587 = vmatprep.subr.bf16.mxu0 0
        %1588 = vmatpush1.bf16.msra.mxu0 0
        %1589 = vmatprep.mubr.bf16.mxu0 0
        %1590 = vmatmul.mubr.bf16.gmra.mrb[0].mxu0 %v1174
        %v1591 = vpop.f32.mrb[0].mxu0
        %v1592 = vadd.f32 %v518, %v1591
        %v1593 = vpop.f32.mrb[0].mxu0
        %v1594 = vpop.f32.mrb[0].mxu0
        %v1595 = vadd.f32 %v518, %v1594
        %v1596 = vpop.f32.mrb[0].mxu0
        %1597 = vmatprep.mubr.bf16.mxu0 0
        %1598 = vmatmul.mubr.bf16.gmra.mrb[0].mxu0 %v1177
        %v1599 = vpop.f32.mrb[0].mxu0
        %v1600 = vadd.f32 %v518, %v1599
        %v1601 = vpop.f32.mrb[0].mxu0
        %v1602 = vpop.f32.mrb[0].mxu0
        %v1603 = vadd.f32 %v518, %v1602
        %v1604 = vpop.f32.mrb[0].mxu0
        %1605 = vmatprep.mubr.bf16.mxu0 0
        %1606 = vmatmul.mubr.bf16.gmra.mrb[0].mxu0 %v1180
        %v1607 = vpop.f32.mrb[0].mxu0
        %v1608 = vadd.f32 %v518, %v1607
        %v1609 = vpop.f32.mrb[0].mxu0
        %v1610 = vpop.f32.mrb[0].mxu0
        %v1611 = vadd.f32 %v518, %v1610
        %v1612 = vpop.f32.mrb[0].mxu0
        %1613 = vmatprep.mubr.bf16.mxu0 0
        %1614 = vmatmul.mubr.bf16.gmra.mrb[0].mxu0 %v1183
        %v1615 = vpop.f32.mrb[0].mxu0
        %v1616 = vadd.f32 %v518, %v1615
        %v1617 = vpop.f32.mrb[0].mxu0
        %v1618 = vpop.f32.mrb[0].mxu0
        %v1619 = vadd.f32 %v518, %v1618
        %v1620 = vpop.f32.mrb[0].mxu0
        %1621 = vmatprep.mubr.bf16.mxu0 0
        %1622 = vmatmul.mubr.bf16.gmra.mrb[0].mxu0 %v1186
        %v1623 = vpop.f32.mrb[0].mxu0
        %v1624 = vadd.f32 %v518, %v1623
        %v1625 = vpop.f32.mrb[0].mxu0
        %v1626 = vpop.f32.mrb[0].mxu0
        %v1627 = vadd.f32 %v518, %v1626
        %v1628 = vpop.f32.mrb[0].mxu0
        %1629 = vmatprep.mubr.bf16.mxu0 0
        %1630 = vmatmul.mubr.bf16.gmra.mrb[0].mxu0 %v1189
        %v1631 = vpop.f32.mrb[0].mxu0
        %v1632 = vadd.f32 %v518, %v1631
        %v1633 = vpop.f32.mrb[0].mxu0
        %v1634 = vpop.f32.mrb[0].mxu0
        %v1635 = vadd.f32 %v518, %v1634
        %v1636 = vpop.f32.mrb[0].mxu0
        %1637 = vmatprep.mubr.bf16.mxu0 0
        %1638 = vmatmul.mubr.bf16.gmra.mrb[0].mxu0 %v1192
        %v1639 = vpop.f32.mrb[0].mxu0
        %v1640 = vadd.f32 %v518, %v1639
        %v1641 = vpop.f32.mrb[0].mxu0
        %v1642 = vpop.f32.mrb[0].mxu0
        %v1643 = vadd.f32 %v518, %v1642
        %v1644 = vpop.f32.mrb[0].mxu0
        %1645 = vmatprep.mubr.bf16.mxu0 0
        %1646 = vmatmul.mubr.bf16.gmra.mrb[0].mxu0 %v1195
        %v1647 = vpop.f32.mrb[0].mxu0
        %v1648 = vadd.f32 %v518, %v1647
        %v1649 = vpop.f32.mrb[0].mxu0
        %v1650 = vpop.f32.mrb[0].mxu0
        %v1651 = vadd.f32 %v518, %v1650
        %v1652 = vpop.f32.mrb[0].mxu0
        %1653 = vmatprep.mubr.bf16.mxu0 0
        %1654 = vmatmul.mubr.bf16.gmra.mrb[0].mxu0 %v1198
        %v1655 = vpop.f32.mrb[0].mxu0
        %v1656 = vadd.f32 %v518, %v1655
        %v1657 = vpop.f32.mrb[0].mxu0
        %v1658 = vpop.f32.mrb[0].mxu0
        %v1659 = vadd.f32 %v518, %v1658
        %v1660 = vpop.f32.mrb[0].mxu0
        %1661 = vmatprep.mubr.bf16.mxu0 0
        %1662 = vmatmul.mubr.bf16.gmra.mrb[0].mxu0 %v1201
        %v1663 = vpop.f32.mrb[0].mxu0
        %v1664 = vadd.f32 %v518, %v1663
        %v1665 = vpop.f32.mrb[0].mxu0
        %v1666 = vpop.f32.mrb[0].mxu0
        %v1667 = vadd.f32 %v518, %v1666
        %v1668 = vpop.f32.mrb[0].mxu0
        %1669 = vmatprep.mubr.bf16.mxu0 0
        %1670 = vmatmul.mubr.bf16.gmra.mrb[0].mxu0 %v1204
        %v1671 = vpop.f32.mrb[0].mxu0
        %v1672 = vadd.f32 %v518, %v1671
        %v1673 = vpop.f32.mrb[0].mxu0
        %v1674 = vpop.f32.mrb[0].mxu0
        %v1675 = vadd.f32 %v518, %v1674
        %v1676 = vpop.f32.mrb[0].mxu0
        %1677 = vmatprep.mubr.bf16.mxu0 0
        %1678 = vmatmul.mubr.bf16.gmra.mrb[0].mxu0 %v1207
        %v1679 = vpop.f32.mrb[0].mxu0
        %v1680 = vadd.f32 %v518, %v1679
        %v1681 = vpop.f32.mrb[0].mxu0
        %v1682 = vpop.f32.mrb[0].mxu0
        %v1683 = vadd.f32 %v518, %v1682
        %v1684 = vpop.f32.mrb[0].mxu0
        %1685 = vmatprep.mubr.bf16.mxu0 0
        %1686 = vmatmul.mubr.bf16.gmra.mrb[0].mxu0 %v1210
        %v1687 = vpop.f32.mrb[0].mxu0
        %v1688 = vadd.f32 %v518, %v1687
        %v1689 = vpop.f32.mrb[0].mxu0
        %v1690 = vpop.f32.mrb[0].mxu0
        %v1691 = vadd.f32 %v518, %v1690
        %v1692 = vpop.f32.mrb[0].mxu0
        %1693 = vmatprep.mubr.bf16.mxu0 0
        %1694 = vmatmul.mubr.bf16.gmra.mrb[0].mxu0 %v1213
        %v1695 = vpop.f32.mrb[0].mxu0
        %v1696 = vadd.f32 %v518, %v1695
        %v1697 = vpop.f32.mrb[0].mxu0
        %v1698 = vpop.f32.mrb[0].mxu0
        %v1699 = vadd.f32 %v518, %v1698
        %v1700 = vpop.f32.mrb[0].mxu0
        %1701 = vmatprep.mubr.bf16.mxu0 0
        %1702 = vmatmul.mubr.bf16.gmra.mrb[0].mxu0 %v1216
        %v1703 = vpop.f32.mrb[0].mxu0
        %v1704 = vadd.f32 %v518, %v1703
        %v1705 = vpop.f32.mrb[0].mxu0
        %v1706 = vpop.f32.mrb[0].mxu0
        %v1707 = vadd.f32 %v518, %v1706
        %v1708 = vpop.f32.mrb[0].mxu0
        %1709 = vmatprep.mubr.bf16.mxu0 0
        %1710 = vmatmul.mubr.bf16.gmra.mrb[0].mxu0 %v1219
        %v1711 = vpop.f32.mrb[0].mxu0
        %v1712 = vadd.f32 %v518, %v1711
        %v1713 = vpop.f32.mrb[0].mxu0
        %v1714 = vpop.f32.mrb[0].mxu0
        %v1715 = vadd.f32 %v518, %v1714
        %v1716 = vpop.f32.mrb[0].mxu0
        %1717 = vmatprep.mubr.bf16.mxu0 0
        %1718 = vmatmul.mubr.bf16.gmra.mrb[0].mxu0 %v1222
        %v1719 = vpop.f32.mrb[0].mxu0
        %v1720 = vadd.f32 %v518, %v1719
        %v1721 = vpop.f32.mrb[0].mxu0
        %v1722 = vpop.f32.mrb[0].mxu0
        %v1723 = vadd.f32 %v518, %v1722
        %v1724 = vpop.f32.mrb[0].mxu0
        %1725 = vmatprep.mubr.bf16.mxu0 0
        %1726 = vmatmul.mubr.bf16.gmra.mrb[0].mxu0 %v1225
        %v1727 = vpop.f32.mrb[0].mxu0
        %v1728 = vadd.f32 %v518, %v1727
        %v1729 = vpop.f32.mrb[0].mxu0
        %v1730 = vpop.f32.mrb[0].mxu0
        %v1731 = vadd.f32 %v518, %v1730
        %v1732 = vpop.f32.mrb[0].mxu0
        %1733 = vmatprep.mubr.bf16.mxu0 0
        %1734 = vmatmul.mubr.bf16.gmra.mrb[0].mxu0 %v1228
        %v1735 = vpop.f32.mrb[0].mxu0
        %v1736 = vadd.f32 %v518, %v1735
        %v1737 = vpop.f32.mrb[0].mxu0
        %v1738 = vpop.f32.mrb[0].mxu0
        %v1739 = vadd.f32 %v518, %v1738
        %v1740 = vpop.f32.mrb[0].mxu0
        %1741 = vmatprep.mubr.bf16.mxu0 0
        %1742 = vmatmul.mubr.bf16.gmra.mrb[0].mxu0 %v1231
        %v1743 = vpop.f32.mrb[0].mxu0
        %v1744 = vadd.f32 %v518, %v1743
        %v1745 = vpop.f32.mrb[0].mxu0
        %v1746 = vpop.f32.mrb[0].mxu0
        %v1747 = vadd.f32 %v518, %v1746
        %v1748 = vpop.f32.mrb[0].mxu0
        %1749 = vmatprep.mubr.bf16.mxu0 0
        %1750 = vmatmul.mubr.bf16.gmra.mrb[0].mxu0 %v1234
        %v1751 = vpop.f32.mrb[0].mxu0
        %v1752 = vadd.f32 %v518, %v1751
        %v1753 = vpop.f32.mrb[0].mxu0
        %v1754 = vpop.f32.mrb[0].mxu0
        %v1755 = vadd.f32 %v518, %v1754
        %v1756 = vpop.f32.mrb[0].mxu0
        %1757 = vmatprep.mubr.bf16.mxu0 0
        %1758 = vmatmul.mubr.bf16.gmra.mrb[0].mxu0 %v1237
        %v1759 = vpop.f32.mrb[0].mxu0
        %v1760 = vadd.f32 %v518, %v1759
        %v1761 = vpop.f32.mrb[0].mxu0
        %v1762 = vpop.f32.mrb[0].mxu0
        %v1763 = vadd.f32 %v518, %v1762
        %v1764 = vpop.f32.mrb[0].mxu0
        %1765 = vmatprep.mubr.bf16.mxu0 0
        %1766 = vmatmul.mubr.bf16.gmra.mrb[0].mxu0 %v1240
        %v1767 = vpop.f32.mrb[0].mxu0
        %v1768 = vadd.f32 %v518, %v1767
        %v1769 = vpop.f32.mrb[0].mxu0
        %v1770 = vpop.f32.mrb[0].mxu0
        %v1771 = vadd.f32 %v518, %v1770
        %v1772 = vpop.f32.mrb[0].mxu0
        %1773 = vmatprep.mubr.bf16.mxu0 0
        %1774 = vmatmul.mubr.bf16.gmra.mrb[0].mxu0 %v1243
        %v1775 = vpop.f32.mrb[0].mxu0
        %v1776 = vadd.f32 %v518, %v1775
        %v1777 = vpop.f32.mrb[0].mxu0
        %v1778 = vpop.f32.mrb[0].mxu0
        %v1779 = vadd.f32 %v518, %v1778
        %v1780 = vpop.f32.mrb[0].mxu0
        %1781 = vmatprep.mubr.bf16.mxu0 0
        %1782 = vmatmul.mubr.bf16.gmra.mrb[0].mxu0 %v1246
        %v1783 = vpop.f32.mrb[0].mxu0
        %v1784 = vadd.f32 %v518, %v1783
        %v1785 = vpop.f32.mrb[0].mxu0
        %v1786 = vpop.f32.mrb[0].mxu0
        %v1787 = vadd.f32 %v518, %v1786
        %v1788 = vpop.f32.mrb[0].mxu0
        %1789 = vmatprep.mubr.bf16.mxu0 0
        %1790 = vmatmul.mubr.bf16.gmra.mrb[0].mxu0 %v1249
        %v1791 = vpop.f32.mrb[0].mxu0
        %v1792 = vadd.f32 %v518, %v1791
        %v1793 = vpop.f32.mrb[0].mxu0
        %v1794 = vpop.f32.mrb[0].mxu0
        %v1795 = vadd.f32 %v518, %v1794
        %v1796 = vpop.f32.mrb[0].mxu0
        %1797 = vmatprep.mubr.bf16.mxu0 0
        %1798 = vmatmul.mubr.bf16.gmra.mrb[0].mxu0 %v1252
        %v1799 = vpop.f32.mrb[0].mxu0
        %v1800 = vadd.f32 %v518, %v1799
        %v1801 = vpop.f32.mrb[0].mxu0
        %v1802 = vpop.f32.mrb[0].mxu0
        %v1803 = vadd.f32 %v518, %v1802
        %v1804 = vpop.f32.mrb[0].mxu0
        %1805 = vmatprep.mubr.bf16.mxu0 0
        %1806 = vmatmul.mubr.bf16.gmra.mrb[0].mxu0 %v1255
        %v1807 = vpop.f32.mrb[0].mxu0
        %v1808 = vadd.f32 %v518, %v1807
        %v1809 = vpop.f32.mrb[0].mxu0
        %v1810 = vpop.f32.mrb[0].mxu0
        %v1811 = vadd.f32 %v518, %v1810
        %v1812 = vpop.f32.mrb[0].mxu0
        %1813 = vmatprep.mubr.bf16.mxu0 0
        %1814 = vmatmul.mubr.bf16.gmra.mrb[0].mxu0 %v1258
        %v1815 = vpop.f32.mrb[0].mxu0
        %v1816 = vadd.f32 %v518, %v1815
        %v1817 = vpop.f32.mrb[0].mxu0
        %v1818 = vpop.f32.mrb[0].mxu0
        %v1819 = vadd.f32 %v518, %v1818
        %v1820 = vpop.f32.mrb[0].mxu0
        %1821 = vmatprep.mubr.bf16.mxu0 0
        %1822 = vmatmul.mubr.bf16.gmra.mrb[0].mxu0 %v1261
        %v1823 = vpop.f32.mrb[0].mxu0
        %v1824 = vadd.f32 %v518, %v1823
        %v1825 = vpop.f32.mrb[0].mxu0
        %v1826 = vpop.f32.mrb[0].mxu0
        %v1827 = vadd.f32 %v518, %v1826
        %v1828 = vpop.f32.mrb[0].mxu0
        %1829 = vmatprep.mubr.bf16.mxu0 0
        %1830 = vmatmul.mubr.bf16.gmra.mrb[0].mxu0 %v1264
        %v1831 = vpop.f32.mrb[0].mxu0
        %v1832 = vadd.f32 %v518, %v1831
        %v1833 = vpop.f32.mrb[0].mxu0
        %v1834 = vpop.f32.mrb[0].mxu0
        %v1835 = vadd.f32 %v518, %v1834
        %v1836 = vpop.f32.mrb[0].mxu0
        %1837 = vmatprep.mubr.bf16.mxu0 0
        %1838 = vmatmul.mubr.bf16.gmra.mrb[0].mxu0 %v1267
        %v1839 = vpop.f32.mrb[0].mxu0
        %v1840 = vadd.f32 %v518, %v1839
        %v1841 = vpop.f32.mrb[0].mxu0
        %v1842 = vpop.f32.mrb[0].mxu0
        %v1843 = vadd.f32 %v518, %v1842
        %v1844 = vpop.f32.mrb[0].mxu0
        %1845 = vmatprep.mubr.bf16.mxu0 0
        %1846 = vmatmul.mubr.bf16.gmra.mrb[0].mxu0 %v1270
        %v1847 = vpop.f32.mrb[0].mxu0
        %v1848 = vadd.f32 %v518, %v1847
        %v1849 = vpop.f32.mrb[0].mxu0
        %v1850 = vpop.f32.mrb[0].mxu0
        %v1851 = vadd.f32 %v518, %v1850
        %v1852 = vpop.f32.mrb[0].mxu0
        %1853 = vmatprep.mubr.bf16.mxu0 0
        %1854 = vmatmul.mubr.bf16.gmra.mrb[0].mxu0 %v1273
        %v1855 = vpop.f32.mrb[0].mxu0
        %v1856 = vadd.f32 %v518, %v1855
        %v1857 = vpop.f32.mrb[0].mxu0
        %v1858 = vpop.f32.mrb[0].mxu0
        %v1859 = vadd.f32 %v518, %v1858
        %v1860 = vpop.f32.mrb[0].mxu0
        %1861 = vmatprep.mubr.bf16.mxu0 0
        %1862 = vmatmul.mubr.bf16.gmra.mrb[0].mxu0 %v1276
        %v1863 = vpop.f32.mrb[0].mxu0
        %v1864 = vadd.f32 %v518, %v1863
        %v1865 = vpop.f32.mrb[0].mxu0
        %v1866 = vpop.f32.mrb[0].mxu0
        %v1867 = vadd.f32 %v518, %v1866
        %v1868 = vpop.f32.mrb[0].mxu0
        %1869 = vmatprep.mubr.bf16.mxu0 0
        %1870 = vmatmul.mubr.bf16.gmra.mrb[0].mxu0 %v1279
        %v1871 = vpop.f32.mrb[0].mxu0
        %v1872 = vadd.f32 %v518, %v1871
        %v1873 = vpop.f32.mrb[0].mxu0
        %v1874 = vpop.f32.mrb[0].mxu0
        %v1875 = vadd.f32 %v518, %v1874
        %v1876 = vpop.f32.mrb[0].mxu0
        %1877 = vmatprep.mubr.bf16.mxu0 0
        %1878 = vmatmul.mubr.bf16.gmra.mrb[0].mxu0 %v1282
        %v1879 = vpop.f32.mrb[0].mxu0
        %v1880 = vadd.f32 %v518, %v1879
        %v1881 = vpop.f32.mrb[0].mxu0
        %v1882 = vpop.f32.mrb[0].mxu0
        %v1883 = vadd.f32 %v518, %v1882
        %v1884 = vpop.f32.mrb[0].mxu0
        %1885 = vmatprep.mubr.bf16.mxu0 0
        %1886 = vmatmul.mubr.bf16.gmra.mrb[0].mxu0 %v1285
        %v1887 = vpop.f32.mrb[0].mxu0
        %v1888 = vadd.f32 %v518, %v1887
        %v1889 = vpop.f32.mrb[0].mxu0
        %v1890 = vpop.f32.mrb[0].mxu0
        %v1891 = vadd.f32 %v518, %v1890
        %v1892 = vpop.f32.mrb[0].mxu0
        %1893 = vmatprep.mubr.bf16.mxu0 0
        %1894 = vmatmul.mubr.bf16.gmra.mrb[0].mxu0 %v1288
        %v1895 = vpop.f32.mrb[0].mxu0
        %v1896 = vadd.f32 %v518, %v1895
        %v1897 = vpop.f32.mrb[0].mxu0
        %v1898 = vpop.f32.mrb[0].mxu0
        %v1899 = vadd.f32 %v518, %v1898
        %v1900 = vpop.f32.mrb[0].mxu0
        %1901 = vmatprep.mubr.bf16.mxu0 0
        %1902 = vmatmul.mubr.bf16.gmra.mrb[0].mxu0 %v1291
        %v1903 = vpop.f32.mrb[0].mxu0
        %v1904 = vadd.f32 %v518, %v1903
        %v1905 = vpop.f32.mrb[0].mxu0
        %v1906 = vpop.f32.mrb[0].mxu0
        %v1907 = vadd.f32 %v518, %v1906
        %v1908 = vpop.f32.mrb[0].mxu0
        %1909 = vmatprep.mubr.bf16.mxu0 0
        %1910 = vmatmul.mubr.bf16.gmra.mrb[0].mxu0 %v1294
        %v1911 = vpop.f32.mrb[0].mxu0
        %v1912 = vadd.f32 %v518, %v1911
        %v1913 = vpop.f32.mrb[0].mxu0
        %v1914 = vpop.f32.mrb[0].mxu0
        %v1915 = vadd.f32 %v518, %v1914
        %v1916 = vpop.f32.mrb[0].mxu0
        %1917 = vmatprep.mubr.bf16.mxu0 0
        %1918 = vmatmul.mubr.bf16.gmra.mrb[0].mxu0 %v1297
        %v1919 = vpop.f32.mrb[0].mxu0
        %v1920 = vadd.f32 %v518, %v1919
        %v1921 = vpop.f32.mrb[0].mxu0
        %v1922 = vpop.f32.mrb[0].mxu0
        %v1923 = vadd.f32 %v518, %v1922
        %v1924 = vpop.f32.mrb[0].mxu0
        %1925 = vmatprep.mubr.bf16.mxu0 0
        %1926 = vmatmul.mubr.bf16.gmra.mrb[0].mxu0 %v1300
        %v1927 = vpop.f32.mrb[0].mxu0
        %v1928 = vadd.f32 %v518, %v1927
        %v1929 = vpop.f32.mrb[0].mxu0
        %v1930 = vpop.f32.mrb[0].mxu0
        %v1931 = vadd.f32 %v518, %v1930
        %v1932 = vpop.f32.mrb[0].mxu0
        %1933 = vmatprep.mubr.bf16.mxu0 0
        %1934 = vmatmul.mubr.bf16.gmra.mrb[0].mxu0 %v1303
        %v1935 = vpop.f32.mrb[0].mxu0
        %v1936 = vadd.f32 %v518, %v1935
        %v1937 = vpop.f32.mrb[0].mxu0
        %v1938 = vpop.f32.mrb[0].mxu0
        %v1939 = vadd.f32 %v518, %v1938
        %v1940 = vpop.f32.mrb[0].mxu0
        %1941 = vmatprep.mubr.bf16.mxu0 0
        %1942 = vmatmul.mubr.bf16.gmra.mrb[0].mxu0 %v1306
        %v1943 = vpop.f32.mrb[0].mxu0
        %v1944 = vadd.f32 %v518, %v1943
        %v1945 = vpop.f32.mrb[0].mxu0
        %v1946 = vpop.f32.mrb[0].mxu0
        %v1947 = vadd.f32 %v518, %v1946
        %v1948 = vpop.f32.mrb[0].mxu0
        %1949 = vmatprep.mubr.bf16.mxu0 0
        %1950 = vmatmul.mubr.bf16.gmra.mrb[0].mxu0 %v1309
        %v1951 = vpop.f32.mrb[0].mxu0
        %v1952 = vadd.f32 %v518, %v1951
        %v1953 = vpop.f32.mrb[0].mxu0
        %v1954 = vpop.f32.mrb[0].mxu0
        %v1955 = vadd.f32 %v518, %v1954
        %v1956 = vpop.f32.mrb[0].mxu0
        %1957 = vmatprep.mubr.bf16.mxu0 0
        %1958 = vmatmul.mubr.bf16.gmra.mrb[0].mxu0 %v1312
        %v1959 = vpop.f32.mrb[0].mxu0
        %v1960 = vadd.f32 %v518, %v1959
        %v1961 = vpop.f32.mrb[0].mxu0
        %v1962 = vpop.f32.mrb[0].mxu0
        %v1963 = vadd.f32 %v518, %v1962
        %v1964 = vpop.f32.mrb[0].mxu0
        %1965 = vmatprep.mubr.bf16.mxu0 0
        %1966 = vmatmul.mubr.bf16.gmra.mrb[0].mxu0 %v1315
        %v1967 = vpop.f32.mrb[0].mxu0
        %v1968 = vadd.f32 %v518, %v1967
        %v1969 = vpop.f32.mrb[0].mxu0
        %v1970 = vpop.f32.mrb[0].mxu0
        %v1971 = vadd.f32 %v518, %v1970
        %v1972 = vpop.f32.mrb[0].mxu0
        %1973 = vmatprep.mubr.bf16.mxu0 0
        %1974 = vmatmul.mubr.bf16.gmra.mrb[0].mxu0 %v1318
        %v1975 = vpop.f32.mrb[0].mxu0
        %v1976 = vadd.f32 %v518, %v1975
        %v1977 = vpop.f32.mrb[0].mxu0
        %v1978 = vpop.f32.mrb[0].mxu0
        %v1979 = vadd.f32 %v518, %v1978
        %v1980 = vpop.f32.mrb[0].mxu0
        %1981 = vmatprep.mubr.bf16.mxu0 0
        %1982 = vmatmul.mubr.bf16.gmra.mrb[0].mxu0 %v1321
        %v1983 = vpop.f32.mrb[0].mxu0
        %v1984 = vadd.f32 %v518, %v1983
        %v1985 = vpop.f32.mrb[0].mxu0
        %v1986 = vpop.f32.mrb[0].mxu0
        %v1987 = vadd.f32 %v518, %v1986
        %v1988 = vpop.f32.mrb[0].mxu0
        %1989 = vmatprep.mubr.bf16.mxu0 0
        %1990 = vmatmul.mubr.bf16.gmra.mrb[0].mxu0 %v1324
        %v1991 = vpop.f32.mrb[0].mxu0
        %v1992 = vadd.f32 %v518, %v1991
        %v1993 = vpop.f32.mrb[0].mxu0
        %v1994 = vpop.f32.mrb[0].mxu0
        %v1995 = vadd.f32 %v518, %v1994
        %v1996 = vpop.f32.mrb[0].mxu0
        %1997 = vmatprep.mubr.bf16.mxu0 0
        %1998 = vmatmul.mubr.bf16.gmra.mrb[0].mxu0 %v1327
        %v1999 = vpop.f32.mrb[0].mxu0
        %v2000 = vadd.f32 %v518, %v1999
        %v2001 = vpop.f32.mrb[0].mxu0
        %v2002 = vpop.f32.mrb[0].mxu0
        %v2003 = vadd.f32 %v518, %v2002
        %v2004 = vpop.f32.mrb[0].mxu0
        %2005 = vmatprep.mubr.bf16.mxu0 0
        %2006 = vmatmul.mubr.bf16.gmra.mrb[0].mxu0 %v1330
        %v2007 = vpop.f32.mrb[0].mxu0
        %v2008 = vadd.f32 %v518, %v2007
        %v2009 = vpop.f32.mrb[0].mxu0
        %v2010 = vpop.f32.mrb[0].mxu0
        %v2011 = vadd.f32 %v518, %v2010
        %v2012 = vpop.f32.mrb[0].mxu0
        %2013 = vmatprep.mubr.bf16.mxu0 0
        %2014 = vmatmul.mubr.bf16.gmra.mrb[0].mxu0 %v1333
        %v2015 = vpop.f32.mrb[0].mxu0
        %v2016 = vadd.f32 %v518, %v2015
        %v2017 = vpop.f32.mrb[0].mxu0
        %v2018 = vpop.f32.mrb[0].mxu0
        %v2019 = vadd.f32 %v518, %v2018
        %v2020 = vpop.f32.mrb[0].mxu0
        %2021 = vmatprep.mubr.bf16.mxu0 0
        %2022 = vmatmul.mubr.bf16.gmra.mrb[0].mxu0 %v1336
        %v2023 = vpop.f32.mrb[0].mxu0
        %v2024 = vadd.f32 %v518, %v2023
        %v2025 = vpop.f32.mrb[0].mxu0
        %v2026 = vpop.f32.mrb[0].mxu0
        %v2027 = vadd.f32 %v518, %v2026
        %v2028 = vpop.f32.mrb[0].mxu0
        %2029 = vmatprep.mubr.bf16.mxu0 0
        %2030 = vmatmul.mubr.bf16.gmra.mrb[0].mxu0 %v1339
        %v2031 = vpop.f32.mrb[0].mxu0
        %v2032 = vadd.f32 %v518, %v2031
        %v2033 = vpop.f32.mrb[0].mxu0
        %v2034 = vpop.f32.mrb[0].mxu0
        %v2035 = vadd.f32 %v518, %v2034
        %v2036 = vpop.f32.mrb[0].mxu0
        %2037 = vmatprep.mubr.bf16.mxu0 0
        %2038 = vmatmul.mubr.bf16.gmra.mrb[0].mxu0 %v1342
        %v2039 = vpop.f32.mrb[0].mxu0
        %v2040 = vadd.f32 %v518, %v2039
        %v2041 = vpop.f32.mrb[0].mxu0
        %v2042 = vpop.f32.mrb[0].mxu0
        %v2043 = vadd.f32 %v518, %v2042
        %v2044 = vpop.f32.mrb[0].mxu0
        %2045 = vmatprep.mubr.bf16.mxu0 0
        %2046 = vmatmul.mubr.bf16.gmra.mrb[0].mxu0 %v1345
        %v2047 = vpop.f32.mrb[0].mxu0
        %v2048 = vadd.f32 %v518, %v2047
        %v2049 = vpop.f32.mrb[0].mxu0
        %v2050 = vpop.f32.mrb[0].mxu0
        %v2051 = vadd.f32 %v518, %v2050
        %v2052 = vpop.f32.mrb[0].mxu0
        %2053 = vmatprep.mubr.bf16.mxu0 0
        %2054 = vmatmul.mubr.bf16.gmra.mrb[0].mxu0 %v1348
        %v2055 = vpop.f32.mrb[0].mxu0
        %v2056 = vadd.f32 %v518, %v2055
        %v2057 = vpop.f32.mrb[0].mxu0
        %v2058 = vpop.f32.mrb[0].mxu0
        %v2059 = vadd.f32 %v518, %v2058
        %v2060 = vpop.f32.mrb[0].mxu0
        %2061 = vmatprep.mubr.bf16.mxu0 0
        %2062 = vmatmul.mubr.bf16.gmra.mrb[0].mxu0 %v1351
        %v2063 = vpop.f32.mrb[0].mxu0
        %v2064 = vadd.f32 %v518, %v2063
        %v2065 = vpop.f32.mrb[0].mxu0
        %v2066 = vpop.f32.mrb[0].mxu0
        %v2067 = vadd.f32 %v518, %v2066
        %v2068 = vpop.f32.mrb[0].mxu0
        %2069 = vmatprep.mubr.bf16.mxu0 0
        %2070 = vmatmul.mubr.bf16.gmra.mrb[0].mxu0 %v1354
        %v2071 = vpop.f32.mrb[0].mxu0
        %v2072 = vadd.f32 %v518, %v2071
        %v2073 = vpop.f32.mrb[0].mxu0
        %v2074 = vpop.f32.mrb[0].mxu0
        %v2075 = vadd.f32 %v518, %v2074
        %v2076 = vpop.f32.mrb[0].mxu0
        %2077 = vmatprep.mubr.bf16.mxu0 0
        %2078 = vmatmul.mubr.bf16.gmra.mrb[0].mxu0 %v1357
        %v2079 = vpop.f32.mrb[0].mxu0
        %v2080 = vadd.f32 %v518, %v2079
        %v2081 = vpop.f32.mrb[0].mxu0
        %v2082 = vpop.f32.mrb[0].mxu0
        %v2083 = vadd.f32 %v518, %v2082
        %v2084 = vpop.f32.mrb[0].mxu0
        %2085 = vmatprep.mubr.bf16.mxu0 0
        %2086 = vmatmul.mubr.bf16.gmra.mrb[0].mxu0 %v1360
        %v2087 = vpop.f32.mrb[0].mxu0
        %v2088 = vadd.f32 %v518, %v2087
        %v2089 = vpop.f32.mrb[0].mxu0
        %v2090 = vpop.f32.mrb[0].mxu0
        %v2091 = vadd.f32 %v518, %v2090
        %v2092 = vpop.f32.mrb[0].mxu0
        %2093 = vmatprep.mubr.bf16.mxu0 0
        %2094 = vmatmul.mubr.bf16.gmra.mrb[0].mxu0 %v1363
        %v2095 = vpop.f32.mrb[0].mxu0
        %v2096 = vadd.f32 %v518, %v2095
        %v2097 = vpop.f32.mrb[0].mxu0
        %v2098 = vpop.f32.mrb[0].mxu0
        %v2099 = vadd.f32 %v518, %v2098
        %v2100 = vpop.f32.mrb[0].mxu0
        %2101 = vmatprep.mubr.bf16.mxu0 0
        %2102 = vmatmul.mubr.bf16.gmra.mrb[0].mxu0 %v1366
        %v2103 = vpop.f32.mrb[0].mxu0
        %v2104 = vadd.f32 %v518, %v2103
        %v2105 = vpop.f32.mrb[0].mxu0
        %v2106 = vpop.f32.mrb[0].mxu0
        %v2107 = vadd.f32 %v518, %v2106
        %v2108 = vpop.f32.mrb[0].mxu0
        %2109 = vmatprep.mubr.bf16.mxu0 0
        %2110 = vmatmul.mubr.bf16.gmra.mrb[0].mxu0 %v1369
        %v2111 = vpop.f32.mrb[0].mxu0
        %v2112 = vadd.f32 %v518, %v2111
        %v2113 = vpop.f32.mrb[0].mxu0
        %v2114 = vpop.f32.mrb[0].mxu0
        %v2115 = vadd.f32 %v518, %v2114
        %v2116 = vpop.f32.mrb[0].mxu0
        %2117 = vmatprep.mubr.bf16.mxu0 0
        %2118 = vmatmul.mubr.bf16.gmra.mrb[0].mxu0 %v1372
        %v2119 = vpop.f32.mrb[0].mxu0
        %v2120 = vadd.f32 %v518, %v2119
        %v2121 = vpop.f32.mrb[0].mxu0
        %v2122 = vpop.f32.mrb[0].mxu0
        %v2123 = vadd.f32 %v518, %v2122
        %v2124 = vpop.f32.mrb[0].mxu0
        %2125 = vmatprep.mubr.bf16.mxu0 0
        %2126 = vmatmul.mubr.bf16.gmra.mrb[0].mxu0 %v1375
        %v2127 = vpop.f32.mrb[0].mxu0
        %v2128 = vadd.f32 %v518, %v2127
        %v2129 = vpop.f32.mrb[0].mxu0
        %v2130 = vpop.f32.mrb[0].mxu0
        %v2131 = vadd.f32 %v518, %v2130
        %v2132 = vpop.f32.mrb[0].mxu0
        %2133 = vmatprep.mubr.bf16.mxu0 0
        %2134 = vmatmul.mubr.bf16.gmra.mrb[0].mxu0 %v1378
        %v2135 = vpop.f32.mrb[0].mxu0
        %v2136 = vadd.f32 %v518, %v2135
        %v2137 = vpop.f32.mrb[0].mxu0
        %v2138 = vpop.f32.mrb[0].mxu0
        %v2139 = vadd.f32 %v518, %v2138
        %v2140 = vpop.f32.mrb[0].mxu0
        %2141 = vmatprep.mubr.bf16.mxu0 0
        %2142 = vmatmul.mubr.bf16.gmra.mrb[0].mxu0 %v1381
        %v2143 = vpop.f32.mrb[0].mxu0
        %v2144 = vadd.f32 %v518, %v2143
        %v2145 = vpop.f32.mrb[0].mxu0
        %v2146 = vpop.f32.mrb[0].mxu0
        %v2147 = vadd.f32 %v518, %v2146
        %v2148 = vpop.f32.mrb[0].mxu0
        %2149 = vmatprep.mubr.bf16.mxu0 0
        %2150 = vmatmul.mubr.bf16.gmra.mrb[0].mxu0 %v1384
        %v2151 = vpop.f32.mrb[0].mxu0
        %v2152 = vadd.f32 %v518, %v2151
        %v2153 = vpop.f32.mrb[0].mxu0
        %v2154 = vpop.f32.mrb[0].mxu0
        %v2155 = vadd.f32 %v518, %v2154
        %v2156 = vpop.f32.mrb[0].mxu0
        %2157 = vmatprep.mubr.bf16.mxu0 0
        %2158 = vmatmul.mubr.bf16.gmra.mrb[0].mxu0 %v1387
        %v2159 = vpop.f32.mrb[0].mxu0
        %v2160 = vadd.f32 %v518, %v2159
        %v2161 = vpop.f32.mrb[0].mxu0
        %v2162 = vpop.f32.mrb[0].mxu0
        %v2163 = vadd.f32 %v518, %v2162
        %v2164 = vpop.f32.mrb[0].mxu0
        %2165 = vmatprep.mubr.bf16.mxu0 0
        %2166 = vmatmul.mubr.bf16.gmra.mrb[0].mxu0 %v1390
        %v2167 = vpop.f32.mrb[0].mxu0
        %v2168 = vadd.f32 %v518, %v2167
        %v2169 = vpop.f32.mrb[0].mxu0
        %v2170 = vpop.f32.mrb[0].mxu0
        %v2171 = vadd.f32 %v518, %v2170
        %v2172 = vpop.f32.mrb[0].mxu0
        %2173 = vmatprep.mubr.bf16.mxu0 0
        %2174 = vmatmul.mubr.bf16.gmra.mrb[0].mxu0 %v1393
        %v2175 = vpop.f32.mrb[0].mxu0
        %v2176 = vadd.f32 %v518, %v2175
        %v2177 = vpop.f32.mrb[0].mxu0
        %v2178 = vpop.f32.mrb[0].mxu0
        %v2179 = vadd.f32 %v518, %v2178
        %v2180 = vpop.f32.mrb[0].mxu0
        %2181 = vmatprep.mubr.bf16.mxu0 0
        %2182 = vmatmul.mubr.bf16.gmra.mrb[0].mxu0 %v1396
        %v2183 = vpop.f32.mrb[0].mxu0
        %v2184 = vadd.f32 %v518, %v2183
        %v2185 = vpop.f32.mrb[0].mxu0
        %v2186 = vpop.f32.mrb[0].mxu0
        %v2187 = vadd.f32 %v518, %v2186
        %v2188 = vpop.f32.mrb[0].mxu0
        %2189 = vmatprep.mubr.bf16.mxu0 0
        %2190 = vmatmul.mubr.bf16.gmra.mrb[0].mxu0 %v1399
        %v2191 = vpop.f32.mrb[0].mxu0
        %v2192 = vadd.f32 %v518, %v2191
        %v2193 = vpop.f32.mrb[0].mxu0
        %v2194 = vpop.f32.mrb[0].mxu0
        %v2195 = vadd.f32 %v518, %v2194
        %v2196 = vpop.f32.mrb[0].mxu0
        %2197 = vmatprep.mubr.bf16.mxu0 0
        %2198 = vmatmul.mubr.bf16.gmra.mrb[0].mxu0 %v1402
        %v2199 = vpop.f32.mrb[0].mxu0
        %v2200 = vadd.f32 %v518, %v2199
        %v2201 = vpop.f32.mrb[0].mxu0
        %v2202 = vpop.f32.mrb[0].mxu0
        %v2203 = vadd.f32 %v518, %v2202
        %v2204 = vpop.f32.mrb[0].mxu0
        %2205 = vmatprep.mubr.bf16.mxu0 0
        %2206 = vmatmul.mubr.bf16.gmra.mrb[0].mxu0 %v1405
        %v2207 = vpop.f32.mrb[0].mxu0
        %v2208 = vadd.f32 %v518, %v2207
        %v2209 = vpop.f32.mrb[0].mxu0
        %v2210 = vpop.f32.mrb[0].mxu0
        %v2211 = vadd.f32 %v518, %v2210
        %v2212 = vpop.f32.mrb[0].mxu0
        %2213 = vmatprep.mubr.bf16.mxu0 0
        %2214 = vmatmul.mubr.bf16.gmra.mrb[0].mxu0 %v1408
        %v2215 = vpop.f32.mrb[0].mxu0
        %v2216 = vadd.f32 %v518, %v2215
        %v2217 = vpop.f32.mrb[0].mxu0
        %v2218 = vpop.f32.mrb[0].mxu0
        %v2219 = vadd.f32 %v518, %v2218
        %v2220 = vpop.f32.mrb[0].mxu0
        %2221 = vmatprep.mubr.bf16.mxu0 0
        %2222 = vmatmul.mubr.bf16.gmra.mrb[0].mxu0 %v1411
        %v2223 = vpop.f32.mrb[0].mxu0
        %v2224 = vadd.f32 %v518, %v2223
        %v2225 = vpop.f32.mrb[0].mxu0
        %v2226 = vpop.f32.mrb[0].mxu0
        %v2227 = vadd.f32 %v518, %v2226
        %v2228 = vpop.f32.mrb[0].mxu0
        %2229 = vmatprep.mubr.bf16.mxu0 0
        %2230 = vmatmul.mubr.bf16.gmra.mrb[0].mxu0 %v1414
        %v2231 = vpop.f32.mrb[0].mxu0
        %v2232 = vadd.f32 %v518, %v2231
        %v2233 = vpop.f32.mrb[0].mxu0
        %v2234 = vpop.f32.mrb[0].mxu0
        %v2235 = vadd.f32 %v518, %v2234
        %v2236 = vpop.f32.mrb[0].mxu0
        %2237 = vmatprep.mubr.bf16.mxu0 0
        %2238 = vmatmul.mubr.bf16.gmra.mrb[0].mxu0 %v1417
        %v2239 = vpop.f32.mrb[0].mxu0
        %v2240 = vadd.f32 %v518, %v2239
        %v2241 = vpop.f32.mrb[0].mxu0
        %v2242 = vpop.f32.mrb[0].mxu0
        %v2243 = vadd.f32 %v518, %v2242
        %v2244 = vpop.f32.mrb[0].mxu0
        %2245 = vmatprep.mubr.bf16.mxu0 0
        %2246 = vmatmul.mubr.bf16.gmra.mrb[0].mxu0 %v1420
        %v2247 = vpop.f32.mrb[0].mxu0
        %v2248 = vadd.f32 %v518, %v2247
        %v2249 = vpop.f32.mrb[0].mxu0
        %v2250 = vpop.f32.mrb[0].mxu0
        %v2251 = vadd.f32 %v518, %v2250
        %v2252 = vpop.f32.mrb[0].mxu0
        %2253 = vmatprep.mubr.bf16.mxu0 0
        %2254 = vmatmul.mubr.bf16.gmra.mrb[0].mxu0 %v1423
        %v2255 = vpop.f32.mrb[0].mxu0
        %v2256 = vadd.f32 %v518, %v2255
        %v2257 = vpop.f32.mrb[0].mxu0
        %v2258 = vpop.f32.mrb[0].mxu0
        %v2259 = vadd.f32 %v518, %v2258
        %v2260 = vpop.f32.mrb[0].mxu0
        %2261 = vmatprep.mubr.bf16.mxu0 0
        %2262 = vmatmul.mubr.bf16.gmra.mrb[0].mxu0 %v1426
        %v2263 = vpop.f32.mrb[0].mxu0
        %v2264 = vadd.f32 %v518, %v2263
        %v2265 = vpop.f32.mrb[0].mxu0
        %v2266 = vpop.f32.mrb[0].mxu0
        %v2267 = vadd.f32 %v518, %v2266
        %v2268 = vpop.f32.mrb[0].mxu0
        %2269 = vmatprep.mubr.bf16.mxu0 0
        %2270 = vmatmul.mubr.bf16.gmra.mrb[0].mxu0 %v1429
        %v2271 = vpop.f32.mrb[0].mxu0
        %v2272 = vadd.f32 %v518, %v2271
        %v2273 = vpop.f32.mrb[0].mxu0
        %v2274 = vpop.f32.mrb[0].mxu0
        %v2275 = vadd.f32 %v518, %v2274
        %v2276 = vpop.f32.mrb[0].mxu0
        %2277 = vmatprep.mubr.bf16.mxu0 0
        %2278 = vmatmul.mubr.bf16.gmra.mrb[0].mxu0 %v1432
        %v2279 = vpop.f32.mrb[0].mxu0
        %v2280 = vadd.f32 %v518, %v2279
        %v2281 = vpop.f32.mrb[0].mxu0
        %v2282 = vpop.f32.mrb[0].mxu0
        %v2283 = vadd.f32 %v518, %v2282
        %v2284 = vpop.f32.mrb[0].mxu0
        %2285 = vmatprep.mubr.bf16.mxu0 0
        %2286 = vmatmul.mubr.bf16.gmra.mrb[0].mxu0 %v1435
        %v2287 = vpop.f32.mrb[0].mxu0
        %v2288 = vadd.f32 %v518, %v2287
        %v2289 = vpop.f32.mrb[0].mxu0
        %v2290 = vpop.f32.mrb[0].mxu0
        %v2291 = vadd.f32 %v518, %v2290
        %v2292 = vpop.f32.mrb[0].mxu0
        %2293 = vmatprep.mubr.bf16.mxu0 0
        %2294 = vmatmul.mubr.bf16.gmra.mrb[0].mxu0 %v1438
        %v2295 = vpop.f32.mrb[0].mxu0
        %v2296 = vadd.f32 %v518, %v2295
        %v2297 = vpop.f32.mrb[0].mxu0
        %v2298 = vpop.f32.mrb[0].mxu0
        %v2299 = vadd.f32 %v518, %v2298
        %v2300 = vpop.f32.mrb[0].mxu0
        %2301 = vmatprep.mubr.bf16.mxu0 0
        %2302 = vmatmul.mubr.bf16.gmra.mrb[0].mxu0 %v1441
        %v2303 = vpop.f32.mrb[0].mxu0
        %v2304 = vadd.f32 %v518, %v2303
        %v2305 = vpop.f32.mrb[0].mxu0
        %v2306 = vpop.f32.mrb[0].mxu0
        %v2307 = vadd.f32 %v518, %v2306
        %v2308 = vpop.f32.mrb[0].mxu0
        %2309 = vmatprep.mubr.bf16.mxu0 0
        %2310 = vmatmul.mubr.bf16.gmra.mrb[0].mxu0 %v1444
        %v2311 = vpop.f32.mrb[0].mxu0
        %v2312 = vadd.f32 %v518, %v2311
        %v2313 = vpop.f32.mrb[0].mxu0
        %v2314 = vpop.f32.mrb[0].mxu0
        %v2315 = vadd.f32 %v518, %v2314
        %v2316 = vpop.f32.mrb[0].mxu0
        %2317 = vmatprep.mubr.bf16.mxu0 0
        %2318 = vmatmul.mubr.bf16.gmra.mrb[0].mxu0 %v1447
        %v2319 = vpop.f32.mrb[0].mxu0
        %v2320 = vadd.f32 %v518, %v2319
        %v2321 = vpop.f32.mrb[0].mxu0
        %v2322 = vpop.f32.mrb[0].mxu0
        %v2323 = vadd.f32 %v518, %v2322
        %v2324 = vpop.f32.mrb[0].mxu0
        %2325 = vmatprep.mubr.bf16.mxu0 0
        %2326 = vmatmul.mubr.bf16.gmra.mrb[0].mxu0 %v1450
        %v2327 = vpop.f32.mrb[0].mxu0
        %v2328 = vadd.f32 %v518, %v2327
        %v2329 = vpop.f32.mrb[0].mxu0
        %v2330 = vpop.f32.mrb[0].mxu0
        %v2331 = vadd.f32 %v518, %v2330
        %v2332 = vpop.f32.mrb[0].mxu0
        %2333 = vmatprep.mubr.bf16.mxu0 0
        %2334 = vmatmul.mubr.bf16.gmra.mrb[0].mxu0 %v1453
        %v2335 = vpop.f32.mrb[0].mxu0
        %v2336 = vadd.f32 %v518, %v2335
        %v2337 = vpop.f32.mrb[0].mxu0
        %v2338 = vpop.f32.mrb[0].mxu0
        %v2339 = vadd.f32 %v518, %v2338
        %v2340 = vpop.f32.mrb[0].mxu0
        %2341 = vmatprep.mubr.bf16.mxu0 0
        %2342 = vmatmul.mubr.bf16.gmra.mrb[0].mxu0 %v1456
        %v2343 = vpop.f32.mrb[0].mxu0
        %v2344 = vadd.f32 %v518, %v2343
        %v2345 = vpop.f32.mrb[0].mxu0
        %v2346 = vpop.f32.mrb[0].mxu0
        %v2347 = vadd.f32 %v518, %v2346
        %v2348 = vpop.f32.mrb[0].mxu0
        %2349 = vmatprep.mubr.bf16.mxu0 0
        %2350 = vmatmul.mubr.bf16.gmra.mrb[0].mxu0 %v1459
        %v2351 = vpop.f32.mrb[0].mxu0
        %v2352 = vadd.f32 %v518, %v2351
        %v2353 = vpop.f32.mrb[0].mxu0
        %v2354 = vpop.f32.mrb[0].mxu0
        %v2355 = vadd.f32 %v518, %v2354
        %v2356 = vpop.f32.mrb[0].mxu0
        %2357 = vmatprep.mubr.bf16.mxu0 0
        %2358 = vmatmul.mubr.bf16.gmra.mrb[0].mxu0 %v1462
        %v2359 = vpop.f32.mrb[0].mxu0
        %v2360 = vadd.f32 %v518, %v2359
        %v2361 = vpop.f32.mrb[0].mxu0
        %v2362 = vpop.f32.mrb[0].mxu0
        %v2363 = vadd.f32 %v518, %v2362
        %v2364 = vpop.f32.mrb[0].mxu0
        %2365 = vmatprep.mubr.bf16.mxu0 0
        %2366 = vmatmul.mubr.bf16.gmra.mrb[0].mxu0 %v1465
        %v2367 = vpop.f32.mrb[0].mxu0
        %v2368 = vadd.f32 %v518, %v2367
        %v2369 = vpop.f32.mrb[0].mxu0
        %v2370 = vpop.f32.mrb[0].mxu0
        %v2371 = vadd.f32 %v518, %v2370
        %v2372 = vpop.f32.mrb[0].mxu0
        %2373 = vmatprep.mubr.bf16.mxu0 0
        %2374 = vmatmul.mubr.bf16.gmra.mrb[0].mxu0 %v1468
        %v2375 = vpop.f32.mrb[0].mxu0
        %v2376 = vadd.f32 %v518, %v2375
        %v2377 = vpop.f32.mrb[0].mxu0
        %v2378 = vpop.f32.mrb[0].mxu0
        %v2379 = vadd.f32 %v518, %v2378
        %v2380 = vpop.f32.mrb[0].mxu0
        %2381 = vmatprep.mubr.bf16.mxu0 0
        %2382 = vmatmul.mubr.bf16.gmra.mrb[0].mxu0 %v1471
        %v2383 = vpop.f32.mrb[0].mxu0
        %v2384 = vadd.f32 %v518, %v2383
        %v2385 = vpop.f32.mrb[0].mxu0
        %v2386 = vpop.f32.mrb[0].mxu0
        %v2387 = vadd.f32 %v518, %v2386
        %v2388 = vpop.f32.mrb[0].mxu0
        %2389 = vmatprep.mubr.bf16.mxu0 0
        %2390 = vmatmul.mubr.bf16.gmra.mrb[0].mxu0 %v1474
        %v2391 = vpop.f32.mrb[0].mxu0
        %v2392 = vadd.f32 %v518, %v2391
        %v2393 = vpop.f32.mrb[0].mxu0
        %v2394 = vpop.f32.mrb[0].mxu0
        %v2395 = vadd.f32 %v518, %v2394
        %v2396 = vpop.f32.mrb[0].mxu0
        %2397 = vmatprep.mubr.bf16.mxu0 0
        %2398 = vmatmul.mubr.bf16.gmra.mrb[0].mxu0 %v1477
        %v2399 = vpop.f32.mrb[0].mxu0
        %v2400 = vadd.f32 %v518, %v2399
        %v2401 = vpop.f32.mrb[0].mxu0
        %v2402 = vpop.f32.mrb[0].mxu0
        %v2403 = vadd.f32 %v518, %v2402
        %v2404 = vpop.f32.mrb[0].mxu0
        %2405 = vmatprep.mubr.bf16.mxu0 0
        %2406 = vmatmul.mubr.bf16.gmra.mrb[0].mxu0 %v1480
        %v2407 = vpop.f32.mrb[0].mxu0
        %v2408 = vadd.f32 %v518, %v2407
        %v2409 = vpop.f32.mrb[0].mxu0
        %v2410 = vpop.f32.mrb[0].mxu0
        %v2411 = vadd.f32 %v518, %v2410
        %v2412 = vpop.f32.mrb[0].mxu0
        %2413 = vmatprep.mubr.bf16.mxu0 0
        %2414 = vmatmul.mubr.bf16.gmra.mrb[0].mxu0 %v1483
        %v2415 = vpop.f32.mrb[0].mxu0
        %v2416 = vadd.f32 %v518, %v2415
        %v2417 = vpop.f32.mrb[0].mxu0
        %v2418 = vpop.f32.mrb[0].mxu0
        %v2419 = vadd.f32 %v518, %v2418
        %v2420 = vpop.f32.mrb[0].mxu0
        %2421 = vmatprep.mubr.bf16.mxu0 0
        %2422 = vmatmul.mubr.bf16.gmra.mrb[0].mxu0 %v1486
        %v2423 = vpop.f32.mrb[0].mxu0
        %v2424 = vadd.f32 %v518, %v2423
        %v2425 = vpop.f32.mrb[0].mxu0
        %v2426 = vpop.f32.mrb[0].mxu0
        %v2427 = vadd.f32 %v518, %v2426
        %v2428 = vpop.f32.mrb[0].mxu0
        %2429 = vmatprep.mubr.bf16.mxu0 0
        %2430 = vmatmul.mubr.bf16.gmra.mrb[0].mxu0 %v1489
        %v2431 = vpop.f32.mrb[0].mxu0
        %v2432 = vadd.f32 %v518, %v2431
        %v2433 = vpop.f32.mrb[0].mxu0
        %v2434 = vpop.f32.mrb[0].mxu0
        %v2435 = vadd.f32 %v518, %v2434
        %v2436 = vpop.f32.mrb[0].mxu0
        %2437 = vmatprep.mubr.bf16.mxu0 0
        %2438 = vmatmul.mubr.bf16.gmra.mrb[0].mxu0 %v1492
        %v2439 = vpop.f32.mrb[0].mxu0
        %v2440 = vadd.f32 %v518, %v2439
        %v2441 = vpop.f32.mrb[0].mxu0
        %v2442 = vpop.f32.mrb[0].mxu0
        %v2443 = vadd.f32 %v518, %v2442
        %v2444 = vpop.f32.mrb[0].mxu0
        %2445 = vmatprep.mubr.bf16.mxu0 0
        %2446 = vmatmul.mubr.bf16.gmra.mrb[0].mxu0 %v1495
        %v2447 = vpop.f32.mrb[0].mxu0
        %v2448 = vadd.f32 %v518, %v2447
        %v2449 = vpop.f32.mrb[0].mxu0
        %v2450 = vpop.f32.mrb[0].mxu0
        %v2451 = vadd.f32 %v518, %v2450
        %v2452 = vpop.f32.mrb[0].mxu0
        %2453 = vmatprep.mubr.bf16.mxu0 0
        %2454 = vmatmul.mubr.bf16.gmra.mrb[0].mxu0 %v1498
        %v2455 = vpop.f32.mrb[0].mxu0
        %v2456 = vadd.f32 %v518, %v2455
        %v2457 = vpop.f32.mrb[0].mxu0
        %v2458 = vpop.f32.mrb[0].mxu0
        %v2459 = vadd.f32 %v518, %v2458
        %v2460 = vpop.f32.mrb[0].mxu0
        %2461 = vmatprep.mubr.bf16.mxu0 0
        %2462 = vmatmul.mubr.bf16.gmra.mrb[0].mxu0 %v1501
        %v2463 = vpop.f32.mrb[0].mxu0
        %v2464 = vadd.f32 %v518, %v2463
        %v2465 = vpop.f32.mrb[0].mxu0
        %v2466 = vpop.f32.mrb[0].mxu0
        %v2467 = vadd.f32 %v518, %v2466
        %v2468 = vpop.f32.mrb[0].mxu0
        %2469 = vmatprep.mubr.bf16.mxu0 0
        %2470 = vmatmul.mubr.bf16.gmra.mrb[0].mxu0 %v1504
        %v2471 = vpop.f32.mrb[0].mxu0
        %v2472 = vadd.f32 %v518, %v2471
        %v2473 = vpop.f32.mrb[0].mxu0
        %v2474 = vpop.f32.mrb[0].mxu0
        %v2475 = vadd.f32 %v518, %v2474
        %v2476 = vpop.f32.mrb[0].mxu0
        %2477 = vmatprep.mubr.bf16.mxu0 0
        %2478 = vmatmul.mubr.bf16.gmra.mrb[0].mxu0 %v1507
        %v2479 = vpop.f32.mrb[0].mxu0
        %v2480 = vadd.f32 %v518, %v2479
        %v2481 = vpop.f32.mrb[0].mxu0
        %v2482 = vpop.f32.mrb[0].mxu0
        %v2483 = vadd.f32 %v518, %v2482
        %v2484 = vpop.f32.mrb[0].mxu0
        %2485 = vmatprep.mubr.bf16.mxu0 0
        %2486 = vmatmul.mubr.bf16.gmra.mrb[0].mxu0 %v1510
        %v2487 = vpop.f32.mrb[0].mxu0
        %v2488 = vadd.f32 %v518, %v2487
        %v2489 = vpop.f32.mrb[0].mxu0
        %v2490 = vpop.f32.mrb[0].mxu0
        %v2491 = vadd.f32 %v518, %v2490
        %v2492 = vpop.f32.mrb[0].mxu0
        %2493 = vmatprep.mubr.bf16.mxu0 0
        %2494 = vmatmul.mubr.bf16.gmra.mrb[0].mxu0 %v1513
        %v2495 = vpop.f32.mrb[0].mxu0
        %v2496 = vadd.f32 %v518, %v2495
        %v2497 = vpop.f32.mrb[0].mxu0
        %v2498 = vpop.f32.mrb[0].mxu0
        %v2499 = vadd.f32 %v518, %v2498
        %v2500 = vpop.f32.mrb[0].mxu0
        %2501 = vmatprep.mubr.bf16.mxu0 0
        %2502 = vmatmul.mubr.bf16.gmra.mrb[0].mxu0 %v1516
        %v2503 = vpop.f32.mrb[0].mxu0
        %v2504 = vadd.f32 %v518, %v2503
        %v2505 = vpop.f32.mrb[0].mxu0
        %v2506 = vpop.f32.mrb[0].mxu0
        %v2507 = vadd.f32 %v518, %v2506
        %v2508 = vpop.f32.mrb[0].mxu0
        %2509 = vmatprep.mubr.bf16.mxu0 0
        %2510 = vmatmul.mubr.bf16.gmra.mrb[0].mxu0 %v1519
        %v2511 = vpop.f32.mrb[0].mxu0
        %v2512 = vadd.f32 %v518, %v2511
        %v2513 = vpop.f32.mrb[0].mxu0
        %v2514 = vpop.f32.mrb[0].mxu0
        %v2515 = vadd.f32 %v518, %v2514
        %v2516 = vpop.f32.mrb[0].mxu0
        %2517 = vmatprep.mubr.bf16.mxu0 0
        %2518 = vmatmul.mubr.bf16.gmra.mrb[0].mxu0 %v1522
        %v2519 = vpop.f32.mrb[0].mxu0
        %v2520 = vadd.f32 %v518, %v2519
        %v2521 = vpop.f32.mrb[0].mxu0
        %v2522 = vpop.f32.mrb[0].mxu0
        %v2523 = vadd.f32 %v518, %v2522
        %v2524 = vpop.f32.mrb[0].mxu0
        %2525 = vmatprep.mubr.bf16.mxu0 0
        %2526 = vmatmul.mubr.bf16.gmra.mrb[0].mxu0 %v1525
        %v2527 = vpop.f32.mrb[0].mxu0
        %v2528 = vadd.f32 %v518, %v2527
        %v2529 = vpop.f32.mrb[0].mxu0
        %v2530 = vpop.f32.mrb[0].mxu0
        %v2531 = vadd.f32 %v518, %v2530
        %v2532 = vpop.f32.mrb[0].mxu0
        %2533 = vmatprep.mubr.bf16.mxu0 0
        %2534 = vmatmul.mubr.bf16.gmra.mrb[0].mxu0 %v1528
        %v2535 = vpop.f32.mrb[0].mxu0
        %v2536 = vadd.f32 %v518, %v2535
        %v2537 = vpop.f32.mrb[0].mxu0
        %v2538 = vpop.f32.mrb[0].mxu0
        %v2539 = vadd.f32 %v518, %v2538
        %v2540 = vpop.f32.mrb[0].mxu0
        %2541 = vmatprep.mubr.bf16.mxu0 0
        %2542 = vmatmul.mubr.bf16.gmra.mrb[0].mxu0 %v1531
        %v2543 = vpop.f32.mrb[0].mxu0
        %v2544 = vadd.f32 %v518, %v2543
        %v2545 = vpop.f32.mrb[0].mxu0
        %v2546 = vpop.f32.mrb[0].mxu0
        %v2547 = vadd.f32 %v518, %v2546
        %v2548 = vpop.f32.mrb[0].mxu0
        %2549 = vmatprep.mubr.bf16.mxu0 0
        %2550 = vmatmul.mubr.bf16.gmra.mrb[0].mxu0 %v1534
        %v2551 = vpop.f32.mrb[0].mxu0
        %v2552 = vadd.f32 %v518, %v2551
        %v2553 = vpop.f32.mrb[0].mxu0
        %v2554 = vpop.f32.mrb[0].mxu0
        %v2555 = vadd.f32 %v518, %v2554
        %v2556 = vpop.f32.mrb[0].mxu0
        %2557 = vmatprep.mubr.bf16.mxu0 0
        %2558 = vmatmul.mubr.bf16.gmra.mrb[0].mxu0 %v1537
        %v2559 = vpop.f32.mrb[0].mxu0
        %v2560 = vadd.f32 %v518, %v2559
        %v2561 = vpop.f32.mrb[0].mxu0
        %v2562 = vpop.f32.mrb[0].mxu0
        %v2563 = vadd.f32 %v518, %v2562
        %v2564 = vpop.f32.mrb[0].mxu0
        %2565 = vmatprep.mubr.bf16.mxu0 0
        %2566 = vmatmul.mubr.bf16.gmra.mrb[0].mxu0 %v1540
        %v2567 = vpop.f32.mrb[0].mxu0
        %v2568 = vadd.f32 %v518, %v2567
        %v2569 = vpop.f32.mrb[0].mxu0
        %v2570 = vpop.f32.mrb[0].mxu0
        %v2571 = vadd.f32 %v518, %v2570
        %v2572 = vpop.f32.mrb[0].mxu0
        %2573 = vmatprep.mubr.bf16.mxu0 0
        %2574 = vmatmul.mubr.bf16.gmra.mrb[0].mxu0 %v1543
        %v2575 = vpop.f32.mrb[0].mxu0
        %v2576 = vadd.f32 %v518, %v2575
        %v2577 = vpop.f32.mrb[0].mxu0
        %v2578 = vpop.f32.mrb[0].mxu0
        %v2579 = vadd.f32 %v518, %v2578
        %v2580 = vpop.f32.mrb[0].mxu0
        %2581 = vmatprep.mubr.bf16.mxu0 0
        %2582 = vmatmul.mubr.bf16.gmra.mrb[0].mxu0 %v1546
        %v2583 = vpop.f32.mrb[0].mxu0
        %v2584 = vadd.f32 %v518, %v2583
        %v2585 = vpop.f32.mrb[0].mxu0
        %v2586 = vpop.f32.mrb[0].mxu0
        %v2587 = vadd.f32 %v518, %v2586
        %v2588 = vpop.f32.mrb[0].mxu0
        %2589 = vmatprep.mubr.bf16.mxu0 0
        %2590 = vmatmul.mubr.bf16.gmra.mrb[0].mxu0 %v1549
        %v2591 = vpop.f32.mrb[0].mxu0
        %v2592 = vadd.f32 %v518, %v2591
        %v2593 = vpop.f32.mrb[0].mxu0
        %v2594 = vpop.f32.mrb[0].mxu0
        %v2595 = vadd.f32 %v518, %v2594
        %v2596 = vpop.f32.mrb[0].mxu0
        %2597 = vmatprep.mubr.bf16.mxu0 0
        %2598 = vmatmul.mubr.bf16.gmra.mrb[0].mxu0 %v1552
        %v2599 = vpop.f32.mrb[0].mxu0
        %v2600 = vadd.f32 %v518, %v2599
        %v2601 = vpop.f32.mrb[0].mxu0
        %v2602 = vpop.f32.mrb[0].mxu0
        %v2603 = vadd.f32 %v518, %v2602
        %v2604 = vpop.f32.mrb[0].mxu0
        %2605 = vmatprep.mubr.bf16.mxu0 0
        %2606 = vmatmul.mubr.bf16.gmra.mrb[0].mxu0 %v1555
        %v2607 = vpop.f32.mrb[0].mxu0
        %v2608 = vadd.f32 %v518, %v2607
        %v2609 = vpop.f32.mrb[0].mxu0
        %v2610 = vpop.f32.mrb[0].mxu0
        %v2611 = vadd.f32 %v518, %v2610
        %v2612 = vpop.f32.mrb[0].mxu0
        %2613 = vdwg.mxu0
        %vm2614 = vcmp.gt.f32.partialorder %v1592, 0.0
        %vm2615 = vcmp.gt.f32.partialorder %v1595, 0.0
        %vm2616 = vcmp.gt.f32.partialorder %v1600, 0.0
        %vm2617 = vcmp.gt.f32.partialorder %v1603, 0.0
        %vm2618 = vcmp.gt.f32.partialorder %v1608, 0.0
        %vm2619 = vcmp.gt.f32.partialorder %v1611, 0.0
        %vm2620 = vcmp.gt.f32.partialorder %v1616, 0.0
        %vm2621 = vcmp.gt.f32.partialorder %v1619, 0.0
        %vm2622 = vcmp.gt.f32.partialorder %v1624, 0.0
        %vm2623 = vcmp.gt.f32.partialorder %v1627, 0.0
        %vm2624 = vcmp.gt.f32.partialorder %v1632, 0.0
        %vm2625 = vcmp.gt.f32.partialorder %v1635, 0.0
        %vm2626 = vcmp.gt.f32.partialorder %v1640, 0.0
        %vm2627 = vcmp.gt.f32.partialorder %v1643, 0.0
        %vm2628 = vcmp.gt.f32.partialorder %v1648, 0.0
        %vm2629 = vcmp.gt.f32.partialorder %v1651, 0.0
        %vm2630 = vcmp.gt.f32.partialorder %v1656, 0.0
        %vm2631 = vcmp.gt.f32.partialorder %v1659, 0.0
        %vm2632 = vcmp.gt.f32.partialorder %v1664, 0.0
        %vm2633 = vcmp.gt.f32.partialorder %v1667, 0.0
        %vm2634 = vcmp.gt.f32.partialorder %v1672, 0.0
        %vm2635 = vcmp.gt.f32.partialorder %v1675, 0.0
        %vm2636 = vcmp.gt.f32.partialorder %v1680, 0.0
        %vm2637 = vcmp.gt.f32.partialorder %v1683, 0.0
        %vm2638 = vcmp.gt.f32.partialorder %v1688, 0.0
        %vm2639 = vcmp.gt.f32.partialorder %v1691, 0.0
        %vm2640 = vcmp.gt.f32.partialorder %v1696, 0.0
        %vm2641 = vcmp.gt.f32.partialorder %v1699, 0.0
        %vm2642 = vcmp.gt.f32.partialorder %v1704, 0.0
        %vm2643 = vcmp.gt.f32.partialorder %v1707, 0.0
        %vm2644 = vcmp.gt.f32.partialorder %v1712, 0.0
        %vm2645 = vcmp.gt.f32.partialorder %v1715, 0.0
        %vm2646 = vcmp.gt.f32.partialorder %v1720, 0.0
        %vm2647 = vcmp.gt.f32.partialorder %v1723, 0.0
        %vm2648 = vcmp.gt.f32.partialorder %v1728, 0.0
        %vm2649 = vcmp.gt.f32.partialorder %v1731, 0.0
        %vm2650 = vcmp.gt.f32.partialorder %v1736, 0.0
        %vm2651 = vcmp.gt.f32.partialorder %v1739, 0.0
        %vm2652 = vcmp.gt.f32.partialorder %v1744, 0.0
        %vm2653 = vcmp.gt.f32.partialorder %v1747, 0.0
        %vm2654 = vcmp.gt.f32.partialorder %v1752, 0.0
        %vm2655 = vcmp.gt.f32.partialorder %v1755, 0.0
        %vm2656 = vcmp.gt.f32.partialorder %v1760, 0.0
        %vm2657 = vcmp.gt.f32.partialorder %v1763, 0.0
        %vm2658 = vcmp.gt.f32.partialorder %v1768, 0.0
        %vm2659 = vcmp.gt.f32.partialorder %v1771, 0.0
        %vm2660 = vcmp.gt.f32.partialorder %v1776, 0.0
        %vm2661 = vcmp.gt.f32.partialorder %v1779, 0.0
        %vm2662 = vcmp.gt.f32.partialorder %v1784, 0.0
        %vm2663 = vcmp.gt.f32.partialorder %v1787, 0.0
        %vm2664 = vcmp.gt.f32.partialorder %v1792, 0.0
        %vm2665 = vcmp.gt.f32.partialorder %v1795, 0.0
        %vm2666 = vcmp.gt.f32.partialorder %v1800, 0.0
        %vm2667 = vcmp.gt.f32.partialorder %v1803, 0.0
        %vm2668 = vcmp.gt.f32.partialorder %v1808, 0.0
        %vm2669 = vcmp.gt.f32.partialorder %v1811, 0.0
        %vm2670 = vcmp.gt.f32.partialorder %v1816, 0.0
        %vm2671 = vcmp.gt.f32.partialorder %v1819, 0.0
        %vm2672 = vcmp.gt.f32.partialorder %v1824, 0.0
        %vm2673 = vcmp.gt.f32.partialorder %v1827, 0.0
        %vm2674 = vcmp.gt.f32.partialorder %v1832, 0.0
        %vm2675 = vcmp.gt.f32.partialorder %v1835, 0.0
        %vm2676 = vcmp.gt.f32.partialorder %v1840, 0.0
        %vm2677 = vcmp.gt.f32.partialorder %v1843, 0.0
        %vm2678 = vcmp.gt.f32.partialorder %v1848, 0.0
        %vm2679 = vcmp.gt.f32.partialorder %v1851, 0.0
        %vm2680 = vcmp.gt.f32.partialorder %v1856, 0.0
        %vm2681 = vcmp.gt.f32.partialorder %v1859, 0.0
        %vm2682 = vcmp.gt.f32.partialorder %v1864, 0.0
        %vm2683 = vcmp.gt.f32.partialorder %v1867, 0.0
        %vm2684 = vcmp.gt.f32.partialorder %v1872, 0.0
        %vm2685 = vcmp.gt.f32.partialorder %v1875, 0.0
        %vm2686 = vcmp.gt.f32.partialorder %v1880, 0.0
        %vm2687 = vcmp.gt.f32.partialorder %v1883, 0.0
        %vm2688 = vcmp.gt.f32.partialorder %v1888, 0.0
        %vm2689 = vcmp.gt.f32.partialorder %v1891, 0.0
        %vm2690 = vcmp.gt.f32.partialorder %v1896, 0.0
        %vm2691 = vcmp.gt.f32.partialorder %v1899, 0.0
        %vm2692 = vcmp.gt.f32.partialorder %v1904, 0.0
        %vm2693 = vcmp.gt.f32.partialorder %v1907, 0.0
        %vm2694 = vcmp.gt.f32.partialorder %v1912, 0.0
        %vm2695 = vcmp.gt.f32.partialorder %v1915, 0.0
        %vm2696 = vcmp.gt.f32.partialorder %v1920, 0.0
        %vm2697 = vcmp.gt.f32.partialorder %v1923, 0.0
        %vm2698 = vcmp.gt.f32.partialorder %v1928, 0.0
        %vm2699 = vcmp.gt.f32.partialorder %v1931, 0.0
        %vm2700 = vcmp.gt.f32.partialorder %v1936, 0.0
        %vm2701 = vcmp.gt.f32.partialorder %v1939, 0.0
        %vm2702 = vcmp.gt.f32.partialorder %v1944, 0.0
        %vm2703 = vcmp.gt.f32.partialorder %v1947, 0.0
        %vm2704 = vcmp.gt.f32.partialorder %v1952, 0.0
        %vm2705 = vcmp.gt.f32.partialorder %v1955, 0.0
        %vm2706 = vcmp.gt.f32.partialorder %v1960, 0.0
        %vm2707 = vcmp.gt.f32.partialorder %v1963, 0.0
        %vm2708 = vcmp.gt.f32.partialorder %v1968, 0.0
        %vm2709 = vcmp.gt.f32.partialorder %v1971, 0.0
        %vm2710 = vcmp.gt.f32.partialorder %v1976, 0.0
        %vm2711 = vcmp.gt.f32.partialorder %v1979, 0.0
        %vm2712 = vcmp.gt.f32.partialorder %v1984, 0.0
        %vm2713 = vcmp.gt.f32.partialorder %v1987, 0.0
        %vm2714 = vcmp.gt.f32.partialorder %v1992, 0.0
        %vm2715 = vcmp.gt.f32.partialorder %v1995, 0.0
        %vm2716 = vcmp.gt.f32.partialorder %v2000, 0.0
        %vm2717 = vcmp.gt.f32.partialorder %v2003, 0.0
        %vm2718 = vcmp.gt.f32.partialorder %v2008, 0.0
        %vm2719 = vcmp.gt.f32.partialorder %v2011, 0.0
        %vm2720 = vcmp.gt.f32.partialorder %v2016, 0.0
        %vm2721 = vcmp.gt.f32.partialorder %v2019, 0.0
        %vm2722 = vcmp.gt.f32.partialorder %v2024, 0.0
        %vm2723 = vcmp.gt.f32.partialorder %v2027, 0.0
        %vm2724 = vcmp.gt.f32.partialorder %v2032, 0.0
        %vm2725 = vcmp.gt.f32.partialorder %v2035, 0.0
        %vm2726 = vcmp.gt.f32.partialorder %v2040, 0.0
        %vm2727 = vcmp.gt.f32.partialorder %v2043, 0.0
        %vm2728 = vcmp.gt.f32.partialorder %v2048, 0.0
        %vm2729 = vcmp.gt.f32.partialorder %v2051, 0.0
        %vm2730 = vcmp.gt.f32.partialorder %v2056, 0.0
        %vm2731 = vcmp.gt.f32.partialorder %v2059, 0.0
        %vm2732 = vcmp.gt.f32.partialorder %v2064, 0.0
        %vm2733 = vcmp.gt.f32.partialorder %v2067, 0.0
        %vm2734 = vcmp.gt.f32.partialorder %v2072, 0.0
        %vm2735 = vcmp.gt.f32.partialorder %v2075, 0.0
        %vm2736 = vcmp.gt.f32.partialorder %v2080, 0.0
        %vm2737 = vcmp.gt.f32.partialorder %v2083, 0.0
        %vm2738 = vcmp.gt.f32.partialorder %v2088, 0.0
        %vm2739 = vcmp.gt.f32.partialorder %v2091, 0.0
        %vm2740 = vcmp.gt.f32.partialorder %v2096, 0.0
        %vm2741 = vcmp.gt.f32.partialorder %v2099, 0.0
        %vm2742 = vcmp.gt.f32.partialorder %v2104, 0.0
        %vm2743 = vcmp.gt.f32.partialorder %v2107, 0.0
        %vm2744 = vcmp.gt.f32.partialorder %v2112, 0.0
        %vm2745 = vcmp.gt.f32.partialorder %v2115, 0.0
        %vm2746 = vcmp.gt.f32.partialorder %v2120, 0.0
        %vm2747 = vcmp.gt.f32.partialorder %v2123, 0.0
        %vm2748 = vcmp.gt.f32.partialorder %v2128, 0.0
        %vm2749 = vcmp.gt.f32.partialorder %v2131, 0.0
        %vm2750 = vcmp.gt.f32.partialorder %v2136, 0.0
        %vm2751 = vcmp.gt.f32.partialorder %v2139, 0.0
        %vm2752 = vcmp.gt.f32.partialorder %v2144, 0.0
        %vm2753 = vcmp.gt.f32.partialorder %v2147, 0.0
        %vm2754 = vcmp.gt.f32.partialorder %v2152, 0.0
        %vm2755 = vcmp.gt.f32.partialorder %v2155, 0.0
        %vm2756 = vcmp.gt.f32.partialorder %v2160, 0.0
        %vm2757 = vcmp.gt.f32.partialorder %v2163, 0.0
        %vm2758 = vcmp.gt.f32.partialorder %v2168, 0.0
        %vm2759 = vcmp.gt.f32.partialorder %v2171, 0.0
        %vm2760 = vcmp.gt.f32.partialorder %v2176, 0.0
        %vm2761 = vcmp.gt.f32.partialorder %v2179, 0.0
        %vm2762 = vcmp.gt.f32.partialorder %v2184, 0.0
        %vm2763 = vcmp.gt.f32.partialorder %v2187, 0.0
        %vm2764 = vcmp.gt.f32.partialorder %v2192, 0.0
        %vm2765 = vcmp.gt.f32.partialorder %v2195, 0.0
        %vm2766 = vcmp.gt.f32.partialorder %v2200, 0.0
        %vm2767 = vcmp.gt.f32.partialorder %v2203, 0.0
        %vm2768 = vcmp.gt.f32.partialorder %v2208, 0.0
        %vm2769 = vcmp.gt.f32.partialorder %v2211, 0.0
        %vm2770 = vcmp.gt.f32.partialorder %v2216, 0.0
        %vm2771 = vcmp.gt.f32.partialorder %v2219, 0.0
        %vm2772 = vcmp.gt.f32.partialorder %v2224, 0.0
        %vm2773 = vcmp.gt.f32.partialorder %v2227, 0.0
        %vm2774 = vcmp.gt.f32.partialorder %v2232, 0.0
        %vm2775 = vcmp.gt.f32.partialorder %v2235, 0.0
        %vm2776 = vcmp.gt.f32.partialorder %v2240, 0.0
        %vm2777 = vcmp.gt.f32.partialorder %v2243, 0.0
        %vm2778 = vcmp.gt.f32.partialorder %v2248, 0.0
        %vm2779 = vcmp.gt.f32.partialorder %v2251, 0.0
        %vm2780 = vcmp.gt.f32.partialorder %v2256, 0.0
        %vm2781 = vcmp.gt.f32.partialorder %v2259, 0.0
        %vm2782 = vcmp.gt.f32.partialorder %v2264, 0.0
        %vm2783 = vcmp.gt.f32.partialorder %v2267, 0.0
        %vm2784 = vcmp.gt.f32.partialorder %v2272, 0.0
        %vm2785 = vcmp.gt.f32.partialorder %v2275, 0.0
        %vm2786 = vcmp.gt.f32.partialorder %v2280, 0.0
        %vm2787 = vcmp.gt.f32.partialorder %v2283, 0.0
        %vm2788 = vcmp.gt.f32.partialorder %v2288, 0.0
        %vm2789 = vcmp.gt.f32.partialorder %v2291, 0.0
        %vm2790 = vcmp.gt.f32.partialorder %v2296, 0.0
        %vm2791 = vcmp.gt.f32.partialorder %v2299, 0.0
        %vm2792 = vcmp.gt.f32.partialorder %v2304, 0.0
        %vm2793 = vcmp.gt.f32.partialorder %v2307, 0.0
        %vm2794 = vcmp.gt.f32.partialorder %v2312, 0.0
        %vm2795 = vcmp.gt.f32.partialorder %v2315, 0.0
        %vm2796 = vcmp.gt.f32.partialorder %v2320, 0.0
        %vm2797 = vcmp.gt.f32.partialorder %v2323, 0.0
        %vm2798 = vcmp.gt.f32.partialorder %v2328, 0.0
        %vm2799 = vcmp.gt.f32.partialorder %v2331, 0.0
        %vm2800 = vcmp.gt.f32.partialorder %v2336, 0.0
        %vm2801 = vcmp.gt.f32.partialorder %v2339, 0.0
        %vm2802 = vcmp.gt.f32.partialorder %v2344, 0.0
        %vm2803 = vcmp.gt.f32.partialorder %v2347, 0.0
        %vm2804 = vcmp.gt.f32.partialorder %v2352, 0.0
        %vm2805 = vcmp.gt.f32.partialorder %v2355, 0.0
        %vm2806 = vcmp.gt.f32.partialorder %v2360, 0.0
        %vm2807 = vcmp.gt.f32.partialorder %v2363, 0.0
        %vm2808 = vcmp.gt.f32.partialorder %v2368, 0.0
        %vm2809 = vcmp.gt.f32.partialorder %v2371, 0.0
        %vm2810 = vcmp.gt.f32.partialorder %v2376, 0.0
        %vm2811 = vcmp.gt.f32.partialorder %v2379, 0.0
        %vm2812 = vcmp.gt.f32.partialorder %v2384, 0.0
        %vm2813 = vcmp.gt.f32.partialorder %v2387, 0.0
        %vm2814 = vcmp.gt.f32.partialorder %v2392, 0.0
        %vm2815 = vcmp.gt.f32.partialorder %v2395, 0.0
        %vm2816 = vcmp.gt.f32.partialorder %v2400, 0.0
        %vm2817 = vcmp.gt.f32.partialorder %v2403, 0.0
        %vm2818 = vcmp.gt.f32.partialorder %v2408, 0.0
        %vm2819 = vcmp.gt.f32.partialorder %v2411, 0.0
        %vm2820 = vcmp.gt.f32.partialorder %v2416, 0.0
        %vm2821 = vcmp.gt.f32.partialorder %v2419, 0.0
        %vm2822 = vcmp.gt.f32.partialorder %v2424, 0.0
        %vm2823 = vcmp.gt.f32.partialorder %v2427, 0.0
        %vm2824 = vcmp.gt.f32.partialorder %v2432, 0.0
        %vm2825 = vcmp.gt.f32.partialorder %v2435, 0.0
        %vm2826 = vcmp.gt.f32.partialorder %v2440, 0.0
        %vm2827 = vcmp.gt.f32.partialorder %v2443, 0.0
        %vm2828 = vcmp.gt.f32.partialorder %v2448, 0.0
        %vm2829 = vcmp.gt.f32.partialorder %v2451, 0.0
        %vm2830 = vcmp.gt.f32.partialorder %v2456, 0.0
        %vm2831 = vcmp.gt.f32.partialorder %v2459, 0.0
        %vm2832 = vcmp.gt.f32.partialorder %v2464, 0.0
        %vm2833 = vcmp.gt.f32.partialorder %v2467, 0.0
        %vm2834 = vcmp.gt.f32.partialorder %v2472, 0.0
        %vm2835 = vcmp.gt.f32.partialorder %v2475, 0.0
        %vm2836 = vcmp.gt.f32.partialorder %v2480, 0.0
        %vm2837 = vcmp.gt.f32.partialorder %v2483, 0.0
        %vm2838 = vcmp.gt.f32.partialorder %v2488, 0.0
        %vm2839 = vcmp.gt.f32.partialorder %v2491, 0.0
        %vm2840 = vcmp.gt.f32.partialorder %v2496, 0.0
        %vm2841 = vcmp.gt.f32.partialorder %v2499, 0.0
        %vm2842 = vcmp.gt.f32.partialorder %v2504, 0.0
        %vm2843 = vcmp.gt.f32.partialorder %v2507, 0.0
        %vm2844 = vcmp.gt.f32.partialorder %v2512, 0.0
        %vm2845 = vcmp.gt.f32.partialorder %v2515, 0.0
        %vm2846 = vcmp.gt.f32.partialorder %v2520, 0.0
        %vm2847 = vcmp.gt.f32.partialorder %v2523, 0.0
        %vm2848 = vcmp.gt.f32.partialorder %v2528, 0.0
        %vm2849 = vcmp.gt.f32.partialorder %v2531, 0.0
        %vm2850 = vcmp.gt.f32.partialorder %v2536, 0.0
        %vm2851 = vcmp.gt.f32.partialorder %v2539, 0.0
        %vm2852 = vcmp.gt.f32.partialorder %v2544, 0.0
        %vm2853 = vcmp.gt.f32.partialorder %v2547, 0.0
        %vm2854 = vcmp.gt.f32.partialorder %v2552, 0.0
        %vm2855 = vcmp.gt.f32.partialorder %v2555, 0.0
        %vm2856 = vcmp.gt.f32.partialorder %v2560, 0.0
        %vm2857 = vcmp.gt.f32.partialorder %v2563, 0.0
        %vm2858 = vcmp.gt.f32.partialorder %v2568, 0.0
        %vm2859 = vcmp.gt.f32.partialorder %v2571, 0.0
        %vm2860 = vcmp.gt.f32.partialorder %v2576, 0.0
        %vm2861 = vcmp.gt.f32.partialorder %v2579, 0.0
        %vm2862 = vcmp.gt.f32.partialorder %v2584, 0.0
        %vm2863 = vcmp.gt.f32.partialorder %v2587, 0.0
        %vm2864 = vcmp.gt.f32.partialorder %v2592, 0.0
        %vm2865 = vcmp.gt.f32.partialorder %v2595, 0.0
        %vm2866 = vcmp.gt.f32.partialorder %v2600, 0.0
        %vm2867 = vcmp.gt.f32.partialorder %v2603, 0.0
        %vm2868 = vcmp.gt.f32.partialorder %v2608, 0.0
        %vm2869 = vcmp.gt.f32.partialorder %v2611, 0.0
        %v2870 = vld [vmem:[%s3] sm:$0x1]
        %v2872 = vlaneseq
        %v2873 = vshrl.u32 %v2872, 7
        %v2874 = vsub.s32 0, %v2873
        %v2875 = vrot.slane %v2870, %v2874
        %v2877 = vmul.f32 %v2875, %v1592
        %v2878 = vmul.f32 %v2875, %v1595
        %v2879 = vmul.f32 %v2875, %v1600
        %v2880 = vmul.f32 %v2875, %v1603
        %v2881 = vmul.f32 %v2875, %v1608
        %v2882 = vmul.f32 %v2875, %v1611
        %v2883 = vmul.f32 %v2875, %v1616
        %v2884 = vmul.f32 %v2875, %v1619
        %v2885 = vmul.f32 %v2875, %v1624
        %v2886 = vmul.f32 %v2875, %v1627
        %v2887 = vmul.f32 %v2875, %v1632
        %v2888 = vmul.f32 %v2875, %v1635
        %v2889 = vmul.f32 %v2875, %v1640
        %v2890 = vmul.f32 %v2875, %v1643
        %v2891 = vmul.f32 %v2875, %v1648
        %v2892 = vmul.f32 %v2875, %v1651
        %v2893 = vmul.f32 %v2875, %v1656
        %v2894 = vmul.f32 %v2875, %v1659
        %v2895 = vmul.f32 %v2875, %v1664
        %v2896 = vmul.f32 %v2875, %v1667
        %v2897 = vmul.f32 %v2875, %v1672
        %v2898 = vmul.f32 %v2875, %v1675
        %v2899 = vmul.f32 %v2875, %v1680
        %v2900 = vmul.f32 %v2875, %v1683
        %v2901 = vmul.f32 %v2875, %v1688
        %v2902 = vmul.f32 %v2875, %v1691
        %v2903 = vmul.f32 %v2875, %v1696
        %v2904 = vmul.f32 %v2875, %v1699
        %v2905 = vmul.f32 %v2875, %v1704
        %v2906 = vmul.f32 %v2875, %v1707
        %v2907 = vmul.f32 %v2875, %v1712
        %v2908 = vmul.f32 %v2875, %v1715
        %v2909 = vmul.f32 %v2875, %v1720
        %v2910 = vmul.f32 %v2875, %v1723
        %v2911 = vmul.f32 %v2875, %v1728
        %v2912 = vmul.f32 %v2875, %v1731
        %v2913 = vmul.f32 %v2875, %v1736
        %v2914 = vmul.f32 %v2875, %v1739
        %v2915 = vmul.f32 %v2875, %v1744
        %v2916 = vmul.f32 %v2875, %v1747
        %v2917 = vmul.f32 %v2875, %v1752
        %v2918 = vmul.f32 %v2875, %v1755
        %v2919 = vmul.f32 %v2875, %v1760
        %v2920 = vmul.f32 %v2875, %v1763
        %v2921 = vmul.f32 %v2875, %v1768
        %v2922 = vmul.f32 %v2875, %v1771
        %v2923 = vmul.f32 %v2875, %v1776
        %v2924 = vmul.f32 %v2875, %v1779
        %v2925 = vmul.f32 %v2875, %v1784
        %v2926 = vmul.f32 %v2875, %v1787
        %v2927 = vmul.f32 %v2875, %v1792
        %v2928 = vmul.f32 %v2875, %v1795
        %v2929 = vmul.f32 %v2875, %v1800
        %v2930 = vmul.f32 %v2875, %v1803
        %v2931 = vmul.f32 %v2875, %v1808
        %v2932 = vmul.f32 %v2875, %v1811
        %v2933 = vmul.f32 %v2875, %v1816
        %v2934 = vmul.f32 %v2875, %v1819
        %v2935 = vmul.f32 %v2875, %v1824
        %v2936 = vmul.f32 %v2875, %v1827
        %v2937 = vmul.f32 %v2875, %v1832
        %v2938 = vmul.f32 %v2875, %v1835
        %v2939 = vmul.f32 %v2875, %v1840
        %v2940 = vmul.f32 %v2875, %v1843
        %v2941 = vmul.f32 %v2875, %v1848
        %v2942 = vmul.f32 %v2875, %v1851
        %v2943 = vmul.f32 %v2875, %v1856
        %v2944 = vmul.f32 %v2875, %v1859
        %v2945 = vmul.f32 %v2875, %v1864
        %v2946 = vmul.f32 %v2875, %v1867
        %v2947 = vmul.f32 %v2875, %v1872
        %v2948 = vmul.f32 %v2875, %v1875
        %v2949 = vmul.f32 %v2875, %v1880
        %v2950 = vmul.f32 %v2875, %v1883
        %v2951 = vmul.f32 %v2875, %v1888
        %v2952 = vmul.f32 %v2875, %v1891
        %v2953 = vmul.f32 %v2875, %v1896
        %v2954 = vmul.f32 %v2875, %v1899
        %v2955 = vmul.f32 %v2875, %v1904
        %v2956 = vmul.f32 %v2875, %v1907
        %v2957 = vmul.f32 %v2875, %v1912
        %v2958 = vmul.f32 %v2875, %v1915
        %v2959 = vmul.f32 %v2875, %v1920
        %v2960 = vmul.f32 %v2875, %v1923
        %v2961 = vmul.f32 %v2875, %v1928
        %v2962 = vmul.f32 %v2875, %v1931
        %v2963 = vmul.f32 %v2875, %v1936
        %v2964 = vmul.f32 %v2875, %v1939
        %v2965 = vmul.f32 %v2875, %v1944
        %v2966 = vmul.f32 %v2875, %v1947
        %v2967 = vmul.f32 %v2875, %v1952
        %v2968 = vmul.f32 %v2875, %v1955
        %v2969 = vmul.f32 %v2875, %v1960
        %v2970 = vmul.f32 %v2875, %v1963
        %v2971 = vmul.f32 %v2875, %v1968
        %v2972 = vmul.f32 %v2875, %v1971
        %v2973 = vmul.f32 %v2875, %v1976
        %v2974 = vmul.f32 %v2875, %v1979
        %v2975 = vmul.f32 %v2875, %v1984
        %v2976 = vmul.f32 %v2875, %v1987
        %v2977 = vmul.f32 %v2875, %v1992
        %v2978 = vmul.f32 %v2875, %v1995
        %v2979 = vmul.f32 %v2875, %v2000
        %v2980 = vmul.f32 %v2875, %v2003
        %v2981 = vmul.f32 %v2875, %v2008
        %v2982 = vmul.f32 %v2875, %v2011
        %v2983 = vmul.f32 %v2875, %v2016
        %v2984 = vmul.f32 %v2875, %v2019
        %v2985 = vmul.f32 %v2875, %v2024
        %v2986 = vmul.f32 %v2875, %v2027
        %v2987 = vmul.f32 %v2875, %v2032
        %v2988 = vmul.f32 %v2875, %v2035
        %v2989 = vmul.f32 %v2875, %v2040
        %v2990 = vmul.f32 %v2875, %v2043
        %v2991 = vmul.f32 %v2875, %v2048
        %v2992 = vmul.f32 %v2875, %v2051
        %v2993 = vmul.f32 %v2875, %v2056
        %v2994 = vmul.f32 %v2875, %v2059
        %v2995 = vmul.f32 %v2875, %v2064
        %v2996 = vmul.f32 %v2875, %v2067
        %v2997 = vmul.f32 %v2875, %v2072
        %v2998 = vmul.f32 %v2875, %v2075
        %v2999 = vmul.f32 %v2875, %v2080
        %v3000 = vmul.f32 %v2875, %v2083
        %v3001 = vmul.f32 %v2875, %v2088
        %v3002 = vmul.f32 %v2875, %v2091
        %v3003 = vmul.f32 %v2875, %v2096
        %v3004 = vmul.f32 %v2875, %v2099
        %v3005 = vmul.f32 %v2875, %v2104
        %v3006 = vmul.f32 %v2875, %v2107
        %v3007 = vmul.f32 %v2875, %v2112
        %v3008 = vmul.f32 %v2875, %v2115
        %v3009 = vmul.f32 %v2875, %v2120
        %v3010 = vmul.f32 %v2875, %v2123
        %v3011 = vmul.f32 %v2875, %v2128
        %v3012 = vmul.f32 %v2875, %v2131
        %v3013 = vmul.f32 %v2875, %v2136
        %v3014 = vmul.f32 %v2875, %v2139
        %v3015 = vmul.f32 %v2875, %v2144
        %v3016 = vmul.f32 %v2875, %v2147
        %v3017 = vmul.f32 %v2875, %v2152
        %v3018 = vmul.f32 %v2875, %v2155
        %v3019 = vmul.f32 %v2875, %v2160
        %v3020 = vmul.f32 %v2875, %v2163
        %v3021 = vmul.f32 %v2875, %v2168
        %v3022 = vmul.f32 %v2875, %v2171
        %v3023 = vmul.f32 %v2875, %v2176
        %v3024 = vmul.f32 %v2875, %v2179
        %v3025 = vmul.f32 %v2875, %v2184
        %v3026 = vmul.f32 %v2875, %v2187
        %v3027 = vmul.f32 %v2875, %v2192
        %v3028 = vmul.f32 %v2875, %v2195
        %v3029 = vmul.f32 %v2875, %v2200
        %v3030 = vmul.f32 %v2875, %v2203
        %v3031 = vmul.f32 %v2875, %v2208
        %v3032 = vmul.f32 %v2875, %v2211
        %v3033 = vmul.f32 %v2875, %v2216
        %v3034 = vmul.f32 %v2875, %v2219
        %v3035 = vmul.f32 %v2875, %v2224
        %v3036 = vmul.f32 %v2875, %v2227
        %v3037 = vmul.f32 %v2875, %v2232
        %v3038 = vmul.f32 %v2875, %v2235
        %v3039 = vmul.f32 %v2875, %v2240
        %v3040 = vmul.f32 %v2875, %v2243
        %v3041 = vmul.f32 %v2875, %v2248
        %v3042 = vmul.f32 %v2875, %v2251
        %v3043 = vmul.f32 %v2875, %v2256
        %v3044 = vmul.f32 %v2875, %v2259
        %v3045 = vmul.f32 %v2875, %v2264
        %v3046 = vmul.f32 %v2875, %v2267
        %v3047 = vmul.f32 %v2875, %v2272
        %v3048 = vmul.f32 %v2875, %v2275
        %v3049 = vmul.f32 %v2875, %v2280
        %v3050 = vmul.f32 %v2875, %v2283
        %v3051 = vmul.f32 %v2875, %v2288
        %v3052 = vmul.f32 %v2875, %v2291
        %v3053 = vmul.f32 %v2875, %v2296
        %v3054 = vmul.f32 %v2875, %v2299
        %v3055 = vmul.f32 %v2875, %v2304
        %v3056 = vmul.f32 %v2875, %v2307
        %v3057 = vmul.f32 %v2875, %v2312
        %v3058 = vmul.f32 %v2875, %v2315
        %v3059 = vmul.f32 %v2875, %v2320
        %v3060 = vmul.f32 %v2875, %v2323
        %v3061 = vmul.f32 %v2875, %v2328
        %v3062 = vmul.f32 %v2875, %v2331
        %v3063 = vmul.f32 %v2875, %v2336
        %v3064 = vmul.f32 %v2875, %v2339
        %v3065 = vmul.f32 %v2875, %v2344
        %v3066 = vmul.f32 %v2875, %v2347
        %v3067 = vmul.f32 %v2875, %v2352
        %v3068 = vmul.f32 %v2875, %v2355
        %v3069 = vmul.f32 %v2875, %v2360
        %v3070 = vmul.f32 %v2875, %v2363
        %v3071 = vmul.f32 %v2875, %v2368
        %v3072 = vmul.f32 %v2875, %v2371
        %v3073 = vmul.f32 %v2875, %v2376
        %v3074 = vmul.f32 %v2875, %v2379
        %v3075 = vmul.f32 %v2875, %v2384
        %v3076 = vmul.f32 %v2875, %v2387
        %v3077 = vmul.f32 %v2875, %v2392
        %v3078 = vmul.f32 %v2875, %v2395
        %v3079 = vmul.f32 %v2875, %v2400
        %v3080 = vmul.f32 %v2875, %v2403
        %v3081 = vmul.f32 %v2875, %v2408
        %v3082 = vmul.f32 %v2875, %v2411
        %v3083 = vmul.f32 %v2875, %v2416
        %v3084 = vmul.f32 %v2875, %v2419
        %v3085 = vmul.f32 %v2875, %v2424
        %v3086 = vmul.f32 %v2875, %v2427
        %v3087 = vmul.f32 %v2875, %v2432
        %v3088 = vmul.f32 %v2875, %v2435
        %v3089 = vmul.f32 %v2875, %v2440
        %v3090 = vmul.f32 %v2875, %v2443
        %v3091 = vmul.f32 %v2875, %v2448
        %v3092 = vmul.f32 %v2875, %v2451
        %v3093 = vmul.f32 %v2875, %v2456
        %v3094 = vmul.f32 %v2875, %v2459
        %v3095 = vmul.f32 %v2875, %v2464
        %v3096 = vmul.f32 %v2875, %v2467
        %v3097 = vmul.f32 %v2875, %v2472
        %v3098 = vmul.f32 %v2875, %v2475
        %v3099 = vmul.f32 %v2875, %v2480
        %v3100 = vmul.f32 %v2875, %v2483
        %v3101 = vmul.f32 %v2875, %v2488
        %v3102 = vmul.f32 %v2875, %v2491
        %v3103 = vmul.f32 %v2875, %v2496
        %v3104 = vmul.f32 %v2875, %v2499
        %v3105 = vmul.f32 %v2875, %v2504
        %v3106 = vmul.f32 %v2875, %v2507
        %v3107 = vmul.f32 %v2875, %v2512
        %v3108 = vmul.f32 %v2875, %v2515
        %v3109 = vmul.f32 %v2875, %v2520
        %v3110 = vmul.f32 %v2875, %v2523
        %v3111 = vmul.f32 %v2875, %v2528
        %v3112 = vmul.f32 %v2875, %v2531
        %v3113 = vmul.f32 %v2875, %v2536
        %v3114 = vmul.f32 %v2875, %v2539
        %v3115 = vmul.f32 %v2875, %v2544
        %v3116 = vmul.f32 %v2875, %v2547
        %v3117 = vmul.f32 %v2875, %v2552
        %v3118 = vmul.f32 %v2875, %v2555
        %v3119 = vmul.f32 %v2875, %v2560
        %v3120 = vmul.f32 %v2875, %v2563
        %v3121 = vmul.f32 %v2875, %v2568
        %v3122 = vmul.f32 %v2875, %v2571
        %v3123 = vmul.f32 %v2875, %v2576
        %v3124 = vmul.f32 %v2875, %v2579
        %v3125 = vmul.f32 %v2875, %v2584
        %v3126 = vmul.f32 %v2875, %v2587
        %v3127 = vmul.f32 %v2875, %v2592
        %v3128 = vmul.f32 %v2875, %v2595
        %v3129 = vmul.f32 %v2875, %v2600
        %v3130 = vmul.f32 %v2875, %v2603
        %v3131 = vmul.f32 %v2875, %v2608
        %v3132 = vmul.f32 %v2875, %v2611
        %v3133 = vsel %vm2614, %v1592, %v2877
        %v3134 = vsel %vm2615, %v1595, %v2878
        %v3135 = vsel %vm2616, %v1600, %v2879
        %v3136 = vsel %vm2617, %v1603, %v2880
        %v3137 = vsel %vm2618, %v1608, %v2881
        %v3138 = vsel %vm2619, %v1611, %v2882
        %v3139 = vsel %vm2620, %v1616, %v2883
        %v3140 = vsel %vm2621, %v1619, %v2884
        %v3141 = vsel %vm2622, %v1624, %v2885
        %v3142 = vsel %vm2623, %v1627, %v2886
        %v3143 = vsel %vm2624, %v1632, %v2887
        %v3144 = vsel %vm2625, %v1635, %v2888
        %v3145 = vsel %vm2626, %v1640, %v2889
        %v3146 = vsel %vm2627, %v1643, %v2890
        %v3147 = vsel %vm2628, %v1648, %v2891
        %v3148 = vsel %vm2629, %v1651, %v2892
        %v3149 = vsel %vm2630, %v1656, %v2893
        %v3150 = vsel %vm2631, %v1659, %v2894
        %v3151 = vsel %vm2632, %v1664, %v2895
        %v3152 = vsel %vm2633, %v1667, %v2896
        %v3153 = vsel %vm2634, %v1672, %v2897
        %v3154 = vsel %vm2635, %v1675, %v2898
        %v3155 = vsel %vm2636, %v1680, %v2899
        %v3156 = vsel %vm2637, %v1683, %v2900
        %v3157 = vsel %vm2638, %v1688, %v2901
        %v3158 = vsel %vm2639, %v1691, %v2902
        %v3159 = vsel %vm2640, %v1696, %v2903
        %v3160 = vsel %vm2641, %v1699, %v2904
        %v3161 = vsel %vm2642, %v1704, %v2905
        %v3162 = vsel %vm2643, %v1707, %v2906
        %v3163 = vsel %vm2644, %v1712, %v2907
        %v3164 = vsel %vm2645, %v1715, %v2908
        %v3165 = vsel %vm2646, %v1720, %v2909
        %v3166 = vsel %vm2647, %v1723, %v2910
        %v3167 = vsel %vm2648, %v1728, %v2911
        %v3168 = vsel %vm2649, %v1731, %v2912
        %v3169 = vsel %vm2650, %v1736, %v2913
        %v3170 = vsel %vm2651, %v1739, %v2914
        %v3171 = vsel %vm2652, %v1744, %v2915
        %v3172 = vsel %vm2653, %v1747, %v2916
        %v3173 = vsel %vm2654, %v1752, %v2917
        %v3174 = vsel %vm2655, %v1755, %v2918
        %v3175 = vsel %vm2656, %v1760, %v2919
        %v3176 = vsel %vm2657, %v1763, %v2920
        %v3177 = vsel %vm2658, %v1768, %v2921
        %v3178 = vsel %vm2659, %v1771, %v2922
        %v3179 = vsel %vm2660, %v1776, %v2923
        %v3180 = vsel %vm2661, %v1779, %v2924
        %v3181 = vsel %vm2662, %v1784, %v2925
        %v3182 = vsel %vm2663, %v1787, %v2926
        %v3183 = vsel %vm2664, %v1792, %v2927
        %v3184 = vsel %vm2665, %v1795, %v2928
        %v3185 = vsel %vm2666, %v1800, %v2929
        %v3186 = vsel %vm2667, %v1803, %v2930
        %v3187 = vsel %vm2668, %v1808, %v2931
        %v3188 = vsel %vm2669, %v1811, %v2932
        %v3189 = vsel %vm2670, %v1816, %v2933
        %v3190 = vsel %vm2671, %v1819, %v2934
        %v3191 = vsel %vm2672, %v1824, %v2935
        %v3192 = vsel %vm2673, %v1827, %v2936
        %v3193 = vsel %vm2674, %v1832, %v2937
        %v3194 = vsel %vm2675, %v1835, %v2938
        %v3195 = vsel %vm2676, %v1840, %v2939
        %v3196 = vsel %vm2677, %v1843, %v2940
        %v3197 = vsel %vm2678, %v1848, %v2941
        %v3198 = vsel %vm2679, %v1851, %v2942
        %v3199 = vsel %vm2680, %v1856, %v2943
        %v3200 = vsel %vm2681, %v1859, %v2944
        %v3201 = vsel %vm2682, %v1864, %v2945
        %v3202 = vsel %vm2683, %v1867, %v2946
        %v3203 = vsel %vm2684, %v1872, %v2947
        %v3204 = vsel %vm2685, %v1875, %v2948
        %v3205 = vsel %vm2686, %v1880, %v2949
        %v3206 = vsel %vm2687, %v1883, %v2950
        %v3207 = vsel %vm2688, %v1888, %v2951
        %v3208 = vsel %vm2689, %v1891, %v2952
        %v3209 = vsel %vm2690, %v1896, %v2953
        %v3210 = vsel %vm2691, %v1899, %v2954
        %v3211 = vsel %vm2692, %v1904, %v2955
        %v3212 = vsel %vm2693, %v1907, %v2956
        %v3213 = vsel %vm2694, %v1912, %v2957
        %v3214 = vsel %vm2695, %v1915, %v2958
        %v3215 = vsel %vm2696, %v1920, %v2959
        %v3216 = vsel %vm2697, %v1923, %v2960
        %v3217 = vsel %vm2698, %v1928, %v2961
        %v3218 = vsel %vm2699, %v1931, %v2962
        %v3219 = vsel %vm2700, %v1936, %v2963
        %v3220 = vsel %vm2701, %v1939, %v2964
        %v3221 = vsel %vm2702, %v1944, %v2965
        %v3222 = vsel %vm2703, %v1947, %v2966
        %v3223 = vsel %vm2704, %v1952, %v2967
        %v3224 = vsel %vm2705, %v1955, %v2968
        %v3225 = vsel %vm2706, %v1960, %v2969
        %v3226 = vsel %vm2707, %v1963, %v2970
        %v3227 = vsel %vm2708, %v1968, %v2971
        %v3228 = vsel %vm2709, %v1971, %v2972
        %v3229 = vsel %vm2710, %v1976, %v2973
        %v3230 = vsel %vm2711, %v1979, %v2974
        %v3231 = vsel %vm2712, %v1984, %v2975
        %v3232 = vsel %vm2713, %v1987, %v2976
        %v3233 = vsel %vm2714, %v1992, %v2977
        %v3234 = vsel %vm2715, %v1995, %v2978
        %v3235 = vsel %vm2716, %v2000, %v2979
        %v3236 = vsel %vm2717, %v2003, %v2980
        %v3237 = vsel %vm2718, %v2008, %v2981
        %v3238 = vsel %vm2719, %v2011, %v2982
        %v3239 = vsel %vm2720, %v2016, %v2983
        %v3240 = vsel %vm2721, %v2019, %v2984
        %v3241 = vsel %vm2722, %v2024, %v2985
        %v3242 = vsel %vm2723, %v2027, %v2986
        %v3243 = vsel %vm2724, %v2032, %v2987
        %v3244 = vsel %vm2725, %v2035, %v2988
        %v3245 = vsel %vm2726, %v2040, %v2989
        %v3246 = vsel %vm2727, %v2043, %v2990
        %v3247 = vsel %vm2728, %v2048, %v2991
        %v3248 = vsel %vm2729, %v2051, %v2992
        %v3249 = vsel %vm2730, %v2056, %v2993
        %v3250 = vsel %vm2731, %v2059, %v2994
        %v3251 = vsel %vm2732, %v2064, %v2995
        %v3252 = vsel %vm2733, %v2067, %v2996
        %v3253 = vsel %vm2734, %v2072, %v2997
        %v3254 = vsel %vm2735, %v2075, %v2998
        %v3255 = vsel %vm2736, %v2080, %v2999
        %v3256 = vsel %vm2737, %v2083, %v3000
        %v3257 = vsel %vm2738, %v2088, %v3001
        %v3258 = vsel %vm2739, %v2091, %v3002
        %v3259 = vsel %vm2740, %v2096, %v3003
        %v3260 = vsel %vm2741, %v2099, %v3004
        %v3261 = vsel %vm2742, %v2104, %v3005
        %v3262 = vsel %vm2743, %v2107, %v3006
        %v3263 = vsel %vm2744, %v2112, %v3007
        %v3264 = vsel %vm2745, %v2115, %v3008
        %v3265 = vsel %vm2746, %v2120, %v3009
        %v3266 = vsel %vm2747, %v2123, %v3010
        %v3267 = vsel %vm2748, %v2128, %v3011
        %v3268 = vsel %vm2749, %v2131, %v3012
        %v3269 = vsel %vm2750, %v2136, %v3013
        %v3270 = vsel %vm2751, %v2139, %v3014
        %v3271 = vsel %vm2752, %v2144, %v3015
        %v3272 = vsel %vm2753, %v2147, %v3016
        %v3273 = vsel %vm2754, %v2152, %v3017
        %v3274 = vsel %vm2755, %v2155, %v3018
        %v3275 = vsel %vm2756, %v2160, %v3019
        %v3276 = vsel %vm2757, %v2163, %v3020
        %v3277 = vsel %vm2758, %v2168, %v3021
        %v3278 = vsel %vm2759, %v2171, %v3022
        %v3279 = vsel %vm2760, %v2176, %v3023
        %v3280 = vsel %vm2761, %v2179, %v3024
        %v3281 = vsel %vm2762, %v2184, %v3025
        %v3282 = vsel %vm2763, %v2187, %v3026
        %v3283 = vsel %vm2764, %v2192, %v3027
        %v3284 = vsel %vm2765, %v2195, %v3028
        %v3285 = vsel %vm2766, %v2200, %v3029
        %v3286 = vsel %vm2767, %v2203, %v3030
        %v3287 = vsel %vm2768, %v2208, %v3031
        %v3288 = vsel %vm2769, %v2211, %v3032
        %v3289 = vsel %vm2770, %v2216, %v3033
        %v3290 = vsel %vm2771, %v2219, %v3034
        %v3291 = vsel %vm2772, %v2224, %v3035
        %v3292 = vsel %vm2773, %v2227, %v3036
        %v3293 = vsel %vm2774, %v2232, %v3037
        %v3294 = vsel %vm2775, %v2235, %v3038
        %v3295 = vsel %vm2776, %v2240, %v3039
        %v3296 = vsel %vm2777, %v2243, %v3040
        %v3297 = vsel %vm2778, %v2248, %v3041
        %v3298 = vsel %vm2779, %v2251, %v3042
        %v3299 = vsel %vm2780, %v2256, %v3043
        %v3300 = vsel %vm2781, %v2259, %v3044
        %v3301 = vsel %vm2782, %v2264, %v3045
        %v3302 = vsel %vm2783, %v2267, %v3046
        %v3303 = vsel %vm2784, %v2272, %v3047
        %v3304 = vsel %vm2785, %v2275, %v3048
        %v3305 = vsel %vm2786, %v2280, %v3049
        %v3306 = vsel %vm2787, %v2283, %v3050
        %v3307 = vsel %vm2788, %v2288, %v3051
        %v3308 = vsel %vm2789, %v2291, %v3052
        %v3309 = vsel %vm2790, %v2296, %v3053
        %v3310 = vsel %vm2791, %v2299, %v3054
        %v3311 = vsel %vm2792, %v2304, %v3055
        %v3312 = vsel %vm2793, %v2307, %v3056
        %v3313 = vsel %vm2794, %v2312, %v3057
        %v3314 = vsel %vm2795, %v2315, %v3058
        %v3315 = vsel %vm2796, %v2320, %v3059
        %v3316 = vsel %vm2797, %v2323, %v3060
        %v3317 = vsel %vm2798, %v2328, %v3061
        %v3318 = vsel %vm2799, %v2331, %v3062
        %v3319 = vsel %vm2800, %v2336, %v3063
        %v3320 = vsel %vm2801, %v2339, %v3064
        %v3321 = vsel %vm2802, %v2344, %v3065
        %v3322 = vsel %vm2803, %v2347, %v3066
        %v3323 = vsel %vm2804, %v2352, %v3067
        %v3324 = vsel %vm2805, %v2355, %v3068
        %v3325 = vsel %vm2806, %v2360, %v3069
        %v3326 = vsel %vm2807, %v2363, %v3070
        %v3327 = vsel %vm2808, %v2368, %v3071
        %v3328 = vsel %vm2809, %v2371, %v3072
        %v3329 = vsel %vm2810, %v2376, %v3073
        %v3330 = vsel %vm2811, %v2379, %v3074
        %v3331 = vsel %vm2812, %v2384, %v3075
        %v3332 = vsel %vm2813, %v2387, %v3076
        %v3333 = vsel %vm2814, %v2392, %v3077
        %v3334 = vsel %vm2815, %v2395, %v3078
        %v3335 = vsel %vm2816, %v2400, %v3079
        %v3336 = vsel %vm2817, %v2403, %v3080
        %v3337 = vsel %vm2818, %v2408, %v3081
        %v3338 = vsel %vm2819, %v2411, %v3082
        %v3339 = vsel %vm2820, %v2416, %v3083
        %v3340 = vsel %vm2821, %v2419, %v3084
        %v3341 = vsel %vm2822, %v2424, %v3085
        %v3342 = vsel %vm2823, %v2427, %v3086
        %v3343 = vsel %vm2824, %v2432, %v3087
        %v3344 = vsel %vm2825, %v2435, %v3088
        %v3345 = vsel %vm2826, %v2440, %v3089
        %v3346 = vsel %vm2827, %v2443, %v3090
        %v3347 = vsel %vm2828, %v2448, %v3091
        %v3348 = vsel %vm2829, %v2451, %v3092
        %v3349 = vsel %vm2830, %v2456, %v3093
        %v3350 = vsel %vm2831, %v2459, %v3094
        %v3351 = vsel %vm2832, %v2464, %v3095
        %v3352 = vsel %vm2833, %v2467, %v3096
        %v3353 = vsel %vm2834, %v2472, %v3097
        %v3354 = vsel %vm2835, %v2475, %v3098
        %v3355 = vsel %vm2836, %v2480, %v3099
        %v3356 = vsel %vm2837, %v2483, %v3100
        %v3357 = vsel %vm2838, %v2488, %v3101
        %v3358 = vsel %vm2839, %v2491, %v3102
        %v3359 = vsel %vm2840, %v2496, %v3103
        %v3360 = vsel %vm2841, %v2499, %v3104
        %v3361 = vsel %vm2842, %v2504, %v3105
        %v3362 = vsel %vm2843, %v2507, %v3106
        %v3363 = vsel %vm2844, %v2512, %v3107
        %v3364 = vsel %vm2845, %v2515, %v3108
        %v3365 = vsel %vm2846, %v2520, %v3109
        %v3366 = vsel %vm2847, %v2523, %v3110
        %v3367 = vsel %vm2848, %v2528, %v3111
        %v3368 = vsel %vm2849, %v2531, %v3112
        %v3369 = vsel %vm2850, %v2536, %v3113
        %v3370 = vsel %vm2851, %v2539, %v3114
        %v3371 = vsel %vm2852, %v2544, %v3115
        %v3372 = vsel %vm2853, %v2547, %v3116
        %v3373 = vsel %vm2854, %v2552, %v3117
        %v3374 = vsel %vm2855, %v2555, %v3118
        %v3375 = vsel %vm2856, %v2560, %v3119
        %v3376 = vsel %vm2857, %v2563, %v3120
        %v3377 = vsel %vm2858, %v2568, %v3121
        %v3378 = vsel %vm2859, %v2571, %v3122
        %v3379 = vsel %vm2860, %v2576, %v3123
        %v3380 = vsel %vm2861, %v2579, %v3124
        %v3381 = vsel %vm2862, %v2584, %v3125
        %v3382 = vsel %vm2863, %v2587, %v3126
        %v3383 = vsel %vm2864, %v2592, %v3127
        %v3384 = vsel %vm2865, %v2595, %v3128
        %v3385 = vsel %vm2866, %v2600, %v3129
        %v3386 = vsel %vm2867, %v2603, %v3130
        %v3387 = vsel %vm2868, %v2608, %v3131
        %v3388 = vsel %vm2869, %v2611, %v3132
        %v3389 = vadd.f32 %v3133, %v3134
        %v3390 = vadd.f32 %v3389, %v3135
        %v3391 = vadd.f32 %v3390, %v3136
        %v3392 = vadd.f32 %v3391, %v3137
        %v3393 = vadd.f32 %v3392, %v3138
        %v3394 = vadd.f32 %v3393, %v3139
        %v3395 = vadd.f32 %v3394, %v3140
        %v3396 = vadd.f32 %v3395, %v3141
        %v3397 = vadd.f32 %v3396, %v3142
        %v3398 = vadd.f32 %v3397, %v3143
        %v3399 = vadd.f32 %v3398, %v3144
        %v3400 = vadd.f32 %v3399, %v3145
        %v3401 = vadd.f32 %v3400, %v3146
        %v3402 = vadd.f32 %v3401, %v3147
        %v3403 = vadd.f32 %v3402, %v3148
        %v3404 = vadd.f32 %v3403, %v3149
        %v3405 = vadd.f32 %v3404, %v3150
        %v3406 = vadd.f32 %v3405, %v3151
        %v3407 = vadd.f32 %v3406, %v3152
        %v3408 = vadd.f32 %v3407, %v3153
        %v3409 = vadd.f32 %v3408, %v3154
        %v3410 = vadd.f32 %v3409, %v3155
        %v3411 = vadd.f32 %v3410, %v3156
        %v3412 = vadd.f32 %v3411, %v3157
        %v3413 = vadd.f32 %v3412, %v3158
        %v3414 = vadd.f32 %v3413, %v3159
        %v3415 = vadd.f32 %v3414, %v3160
        %v3416 = vadd.f32 %v3415, %v3161
        %v3417 = vadd.f32 %v3416, %v3162
        %v3418 = vadd.f32 %v3417, %v3163
        %v3419 = vadd.f32 %v3418, %v3164
        %v3420 = vrot.slane %v3419, 4
        %v3421 = vadd.f32 %v3419, %v3420
        %v3422 = vrot.slane %v3421, 2
        %v3423 = vadd.f32 %v3421, %v3422
        %v3424 = vrot.slane %v3423, 1
        %v3425 = vadd.f32 %v3423, %v3424
        %v3426 = vadd.f32 %v3165, %v3166
        %v3427 = vadd.f32 %v3426, %v3167
        %v3428 = vadd.f32 %v3427, %v3168
        %v3429 = vadd.f32 %v3428, %v3169
        %v3430 = vadd.f32 %v3429, %v3170
        %v3431 = vadd.f32 %v3430, %v3171
        %v3432 = vadd.f32 %v3431, %v3172
        %v3433 = vadd.f32 %v3432, %v3173
        %v3434 = vadd.f32 %v3433, %v3174
        %v3435 = vadd.f32 %v3434, %v3175
        %v3436 = vadd.f32 %v3435, %v3176
        %v3437 = vadd.f32 %v3436, %v3177
        %v3438 = vadd.f32 %v3437, %v3178
        %v3439 = vadd.f32 %v3438, %v3179
        %v3440 = vadd.f32 %v3439, %v3180
        %v3441 = vadd.f32 %v3440, %v3181
        %v3442 = vadd.f32 %v3441, %v3182
        %v3443 = vadd.f32 %v3442, %v3183
        %v3444 = vadd.f32 %v3443, %v3184
        %v3445 = vadd.f32 %v3444, %v3185
        %v3446 = vadd.f32 %v3445, %v3186
        %v3447 = vadd.f32 %v3446, %v3187
        %v3448 = vadd.f32 %v3447, %v3188
        %v3449 = vadd.f32 %v3448, %v3189
        %v3450 = vadd.f32 %v3449, %v3190
        %v3451 = vadd.f32 %v3450, %v3191
        %v3452 = vadd.f32 %v3451, %v3192
        %v3453 = vadd.f32 %v3452, %v3193
        %v3454 = vadd.f32 %v3453, %v3194
        %v3455 = vadd.f32 %v3454, %v3195
        %v3456 = vadd.f32 %v3455, %v3196
        %v3457 = vrot.slane %v3456, 4
        %v3458 = vadd.f32 %v3456, %v3457
        %v3459 = vrot.slane %v3458, 2
        %v3460 = vadd.f32 %v3458, %v3459
        %v3461 = vrot.slane %v3460, 1
        %v3462 = vadd.f32 %v3460, %v3461
        %v3463 = vadd.f32 %v3197, %v3198
        %v3464 = vadd.f32 %v3463, %v3199
        %v3465 = vadd.f32 %v3464, %v3200
        %v3466 = vadd.f32 %v3465, %v3201
        %v3467 = vadd.f32 %v3466, %v3202
        %v3468 = vadd.f32 %v3467, %v3203
        %v3469 = vadd.f32 %v3468, %v3204
        %v3470 = vadd.f32 %v3469, %v3205
        %v3471 = vadd.f32 %v3470, %v3206
        %v3472 = vadd.f32 %v3471, %v3207
        %v3473 = vadd.f32 %v3472, %v3208
        %v3474 = vadd.f32 %v3473, %v3209
        %v3475 = vadd.f32 %v3474, %v3210
        %v3476 = vadd.f32 %v3475, %v3211
        %v3477 = vadd.f32 %v3476, %v3212
        %v3478 = vadd.f32 %v3477, %v3213
        %v3479 = vadd.f32 %v3478, %v3214
        %v3480 = vadd.f32 %v3479, %v3215
        %v3481 = vadd.f32 %v3480, %v3216
        %v3482 = vadd.f32 %v3481, %v3217
        %v3483 = vadd.f32 %v3482, %v3218
        %v3484 = vadd.f32 %v3483, %v3219
        %v3485 = vadd.f32 %v3484, %v3220
        %v3486 = vadd.f32 %v3485, %v3221
        %v3487 = vadd.f32 %v3486, %v3222
        %v3488 = vadd.f32 %v3487, %v3223
        %v3489 = vadd.f32 %v3488, %v3224
        %v3490 = vadd.f32 %v3489, %v3225
        %v3491 = vadd.f32 %v3490, %v3226
        %v3492 = vadd.f32 %v3491, %v3227
        %v3493 = vadd.f32 %v3492, %v3228
        %v3494 = vrot.slane %v3493, 4
        %v3495 = vadd.f32 %v3493, %v3494
        %v3496 = vrot.slane %v3495, 2
        %v3497 = vadd.f32 %v3495, %v3496
        %v3498 = vrot.slane %v3497, 1
        %v3499 = vadd.f32 %v3497, %v3498
        %v3500 = vadd.f32 %v3229, %v3230
        %v3501 = vadd.f32 %v3500, %v3231
        %v3502 = vadd.f32 %v3501, %v3232
        %v3503 = vadd.f32 %v3502, %v3233
        %v3504 = vadd.f32 %v3503, %v3234
        %v3505 = vadd.f32 %v3504, %v3235
        %v3506 = vadd.f32 %v3505, %v3236
        %v3507 = vadd.f32 %v3506, %v3237
        %v3508 = vadd.f32 %v3507, %v3238
        %v3509 = vadd.f32 %v3508, %v3239
        %v3510 = vadd.f32 %v3509, %v3240
        %v3511 = vadd.f32 %v3510, %v3241
        %v3512 = vadd.f32 %v3511, %v3242
        %v3513 = vadd.f32 %v3512, %v3243
        %v3514 = vadd.f32 %v3513, %v3244
        %v3515 = vadd.f32 %v3514, %v3245
        %v3516 = vadd.f32 %v3515, %v3246
        %v3517 = vadd.f32 %v3516, %v3247
        %v3518 = vadd.f32 %v3517, %v3248
        %v3519 = vadd.f32 %v3518, %v3249
        %v3520 = vadd.f32 %v3519, %v3250
        %v3521 = vadd.f32 %v3520, %v3251
        %v3522 = vadd.f32 %v3521, %v3252
        %v3523 = vadd.f32 %v3522, %v3253
        %v3524 = vadd.f32 %v3523, %v3254
        %v3525 = vadd.f32 %v3524, %v3255
        %v3526 = vadd.f32 %v3525, %v3256
        %v3527 = vadd.f32 %v3526, %v3257
        %v3528 = vadd.f32 %v3527, %v3258
        %v3529 = vadd.f32 %v3528, %v3259
        %v3530 = vadd.f32 %v3529, %v3260
        %v3531 = vrot.slane %v3530, 4
        %v3532 = vadd.f32 %v3530, %v3531
        %v3533 = vrot.slane %v3532, 2
        %v3534 = vadd.f32 %v3532, %v3533
        %v3535 = vrot.slane %v3534, 1
        %v3536 = vadd.f32 %v3534, %v3535
        %v3537 = vadd.f32 %v3261, %v3262
        %v3538 = vadd.f32 %v3537, %v3263
        %v3539 = vadd.f32 %v3538, %v3264
        %v3540 = vadd.f32 %v3539, %v3265
        %v3541 = vadd.f32 %v3540, %v3266
        %v3542 = vadd.f32 %v3541, %v3267
        %v3543 = vadd.f32 %v3542, %v3268
        %v3544 = vadd.f32 %v3543, %v3269
        %v3545 = vadd.f32 %v3544, %v3270
        %v3546 = vadd.f32 %v3545, %v3271
        %v3547 = vadd.f32 %v3546, %v3272
        %v3548 = vadd.f32 %v3547, %v3273
        %v3549 = vadd.f32 %v3548, %v3274
        %v3550 = vadd.f32 %v3549, %v3275
        %v3551 = vadd.f32 %v3550, %v3276
        %v3552 = vadd.f32 %v3551, %v3277
        %v3553 = vadd.f32 %v3552, %v3278
        %v3554 = vadd.f32 %v3553, %v3279
        %v3555 = vadd.f32 %v3554, %v3280
        %v3556 = vadd.f32 %v3555, %v3281
        %v3557 = vadd.f32 %v3556, %v3282
        %v3558 = vadd.f32 %v3557, %v3283
        %v3559 = vadd.f32 %v3558, %v3284
        %v3560 = vadd.f32 %v3559, %v3285
        %v3561 = vadd.f32 %v3560, %v3286
        %v3562 = vadd.f32 %v3561, %v3287
        %v3563 = vadd.f32 %v3562, %v3288
        %v3564 = vadd.f32 %v3563, %v3289
        %v3565 = vadd.f32 %v3564, %v3290
        %v3566 = vadd.f32 %v3565, %v3291
        %v3567 = vadd.f32 %v3566, %v3292
        %v3568 = vrot.slane %v3567, 4
        %v3569 = vadd.f32 %v3567, %v3568
        %v3570 = vrot.slane %v3569, 2
        %v3571 = vadd.f32 %v3569, %v3570
        %v3572 = vrot.slane %v3571, 1
        %v3573 = vadd.f32 %v3571, %v3572
        %v3574 = vadd.f32 %v3293, %v3294
        %v3575 = vadd.f32 %v3574, %v3295
        %v3576 = vadd.f32 %v3575, %v3296
        %v3577 = vadd.f32 %v3576, %v3297
        %v3578 = vadd.f32 %v3577, %v3298
        %v3579 = vadd.f32 %v3578, %v3299
        %v3580 = vadd.f32 %v3579, %v3300
        %v3581 = vadd.f32 %v3580, %v3301
        %v3582 = vadd.f32 %v3581, %v3302
        %v3583 = vadd.f32 %v3582, %v3303
        %v3584 = vadd.f32 %v3583, %v3304
        %v3585 = vadd.f32 %v3584, %v3305
        %v3586 = vadd.f32 %v3585, %v3306
        %v3587 = vadd.f32 %v3586, %v3307
        %v3588 = vadd.f32 %v3587, %v3308
        %v3589 = vadd.f32 %v3588, %v3309
        %v3590 = vadd.f32 %v3589, %v3310
        %v3591 = vadd.f32 %v3590, %v3311
        %v3592 = vadd.f32 %v3591, %v3312
        %v3593 = vadd.f32 %v3592, %v3313
        %v3594 = vadd.f32 %v3593, %v3314
        %v3595 = vadd.f32 %v3594, %v3315
        %v3596 = vadd.f32 %v3595, %v3316
        %v3597 = vadd.f32 %v3596, %v3317
        %v3598 = vadd.f32 %v3597, %v3318
        %v3599 = vadd.f32 %v3598, %v3319
        %v3600 = vadd.f32 %v3599, %v3320
        %v3601 = vadd.f32 %v3600, %v3321
        %v3602 = vadd.f32 %v3601, %v3322
        %v3603 = vadd.f32 %v3602, %v3323
        %v3604 = vadd.f32 %v3603, %v3324
        %v3605 = vrot.slane %v3604, 4
        %v3606 = vadd.f32 %v3604, %v3605
        %v3607 = vrot.slane %v3606, 2
        %v3608 = vadd.f32 %v3606, %v3607
        %v3609 = vrot.slane %v3608, 1
        %v3610 = vadd.f32 %v3608, %v3609
        %v3611 = vadd.f32 %v3325, %v3326
        %v3612 = vadd.f32 %v3611, %v3327
        %v3613 = vadd.f32 %v3612, %v3328
        %v3614 = vadd.f32 %v3613, %v3329
        %v3615 = vadd.f32 %v3614, %v3330
        %v3616 = vadd.f32 %v3615, %v3331
        %v3617 = vadd.f32 %v3616, %v3332
        %v3618 = vadd.f32 %v3617, %v3333
        %v3619 = vadd.f32 %v3618, %v3334
        %v3620 = vadd.f32 %v3619, %v3335
        %v3621 = vadd.f32 %v3620, %v3336
        %v3622 = vadd.f32 %v3621, %v3337
        %v3623 = vadd.f32 %v3622, %v3338
        %v3624 = vadd.f32 %v3623, %v3339
        %v3625 = vadd.f32 %v3624, %v3340
        %v3626 = vadd.f32 %v3625, %v3341
        %v3627 = vadd.f32 %v3626, %v3342
        %v3628 = vadd.f32 %v3627, %v3343
        %v3629 = vadd.f32 %v3628, %v3344
        %v3630 = vadd.f32 %v3629, %v3345
        %v3631 = vadd.f32 %v3630, %v3346
        %v3632 = vadd.f32 %v3631, %v3347
        %v3633 = vadd.f32 %v3632, %v3348
        %v3634 = vadd.f32 %v3633, %v3349
        %v3635 = vadd.f32 %v3634, %v3350
        %v3636 = vadd.f32 %v3635, %v3351
        %v3637 = vadd.f32 %v3636, %v3352
        %v3638 = vadd.f32 %v3637, %v3353
        %v3639 = vadd.f32 %v3638, %v3354
        %v3640 = vadd.f32 %v3639, %v3355
        %v3641 = vadd.f32 %v3640, %v3356
        %v3642 = vrot.slane %v3641, 4
        %v3643 = vadd.f32 %v3641, %v3642
        %v3644 = vrot.slane %v3643, 2
        %v3645 = vadd.f32 %v3643, %v3644
        %v3646 = vrot.slane %v3645, 1
        %v3647 = vadd.f32 %v3645, %v3646
        %v3648 = vadd.f32 %v3357, %v3358
        %v3649 = vadd.f32 %v3648, %v3359
        %v3650 = vadd.f32 %v3649, %v3360
        %v3651 = vadd.f32 %v3650, %v3361
        %v3652 = vadd.f32 %v3651, %v3362
        %v3653 = vadd.f32 %v3652, %v3363
        %v3654 = vadd.f32 %v3653, %v3364
        %v3655 = vadd.f32 %v3654, %v3365
        %v3656 = vadd.f32 %v3655, %v3366
        %v3657 = vadd.f32 %v3656, %v3367
        %v3658 = vadd.f32 %v3657, %v3368
        %v3659 = vadd.f32 %v3658, %v3369
        %v3660 = vadd.f32 %v3659, %v3370
        %v3661 = vadd.f32 %v3660, %v3371
        %v3662 = vadd.f32 %v3661, %v3372
        %v3663 = vadd.f32 %v3662, %v3373
        %v3664 = vadd.f32 %v3663, %v3374
        %v3665 = vadd.f32 %v3664, %v3375
        %v3666 = vadd.f32 %v3665, %v3376
        %v3667 = vadd.f32 %v3666, %v3377
        %v3668 = vadd.f32 %v3667, %v3378
        %v3669 = vadd.f32 %v3668, %v3379
        %v3670 = vadd.f32 %v3669, %v3380
        %v3671 = vadd.f32 %v3670, %v3381
        %v3672 = vadd.f32 %v3671, %v3382
        %v3673 = vadd.f32 %v3672, %v3383
        %v3674 = vadd.f32 %v3673, %v3384
        %v3675 = vadd.f32 %v3674, %v3385
        %v3676 = vadd.f32 %v3675, %v3386
        %v3677 = vadd.f32 %v3676, %v3387
        %v3678 = vadd.f32 %v3677, %v3388
        %v3679 = vrot.slane %v3678, 4
        %v3680 = vadd.f32 %v3678, %v3679
        %v3681 = vrot.slane %v3680, 2
        %v3682 = vadd.f32 %v3680, %v3681
        %v3683 = vrot.slane %v3682, 1
        %v3684 = vadd.f32 %v3682, %v3683
        %v3685 = vld [vmem:[%s4] sm:$0xff]
        %v3686 = vld [vmem:[%s4 + $0x8] sm:$0xff]
        %v3687 = vld [vmem:[%s4 + $0x10] sm:$0xff]
        %v3688 = vld [vmem:[%s4 + $0x18] sm:$0xff]
        %v3689 = vld [vmem:[%s4 + $0x20] sm:$0xff]
        %v3690 = vld [vmem:[%s4 + $0x28] sm:$0xff]
        %v3691 = vld [vmem:[%s4 + $0x30] sm:$0xff]
        %v3692 = vld [vmem:[%s4 + $0x38] sm:$0xff]
        %v3693 = vld [vmem:[%s4 + $0x40] sm:$0xff]
        %v3694 = vld [vmem:[%s4 + $0x48] sm:$0xff]
        %v3695 = vld [vmem:[%s4 + $0x50] sm:$0xff]
        %v3696 = vld [vmem:[%s4 + $0x58] sm:$0xff]
        %v3697 = vld [vmem:[%s4 + $0x60] sm:$0xff]
        %v3698 = vld [vmem:[%s4 + $0x68] sm:$0xff]
        %v3699 = vld [vmem:[%s4 + $0x70] sm:$0xff]
        %v3700 = vld [vmem:[%s4 + $0x78] sm:$0xff]
        %v3701 = vld [vmem:[%s5] sm:$0x1]
        %v3703 = vlaneseq
        %v3704 = vshrl.u32 %v3703, 7
        %v3705 = vsub.s32 0, %v3704
        %v3706 = vrot.slane %v3701, %v3705
        %vm3716 = vcmask 1041409
        %v3717 = vsel %vm3716, %v3462, %v3425
        %vm3718 = vcmask 1042434
        %v3719 = vsel %vm3718, %v3499, %v3717
        %vm3720 = vcmask 1043459
        %v3721 = vsel %vm3720, %v3536, %v3719
        %vm3722 = vcmask 1044484
        %v3723 = vsel %vm3722, %v3573, %v3721
        %vm3724 = vcmask 1045509
        %v3725 = vsel %vm3724, %v3610, %v3723
        %vm3726 = vcmask 1046534
        %v3727 = vsel %vm3726, %v3647, %v3725
        %vm3728 = vcmask 1047559
        %v3729 = vsel %vm3728, %v3684, %v3727
        %3731 = vmatprep.subr.mxu0 0.0
        %3732 = vmatpush1.msra.mxu0 %v3685
        %3733 = vmatprep.subr.mxu0 0.0
        %3734 = vmatpush1.msra.mxu0 %v3686
        %3735 = vmatprep.subr.mxu0 0.0
        %3736 = vmatpush1.msra.mxu0 %v3687
        %3737 = vmatprep.subr.mxu0 0.0
        %3738 = vmatpush1.msra.mxu0 %v3688
        %3739 = vmatprep.subr.mxu0 0.0
        %3740 = vmatpush1.msra.mxu0 %v3689
        %3741 = vmatprep.subr.mxu0 0.0
        %3742 = vmatpush1.msra.mxu0 %v3690
        %3743 = vmatprep.subr.mxu0 0.0
        %3744 = vmatpush1.msra.mxu0 %v3691
        %3745 = vmatprep.subr.mxu0 0.0
        %3746 = vmatpush1.msra.mxu0 %v3692
        %3747 = vmatprep.subr.mxu0 0.0
        %3748 = vmatpush1.msra.mxu0 %v3693
        %3749 = vmatprep.subr.mxu0 0.0
        %3750 = vmatpush1.msra.mxu0 %v3694
        %3751 = vmatprep.subr.mxu0 0.0
        %3752 = vmatpush1.msra.mxu0 %v3695
        %3753 = vmatprep.subr.mxu0 0.0
        %3754 = vmatpush1.msra.mxu0 %v3696
        %3755 = vmatprep.subr.mxu0 0.0
        %3756 = vmatpush1.msra.mxu0 %v3697
        %3757 = vmatprep.subr.mxu0 0.0
        %3758 = vmatpush1.msra.mxu0 %v3698
        %3759 = vmatprep.subr.mxu0 0.0
        %3760 = vmatpush1.msra.mxu0 %v3699
        %3761 = vmatprep.subr.mxu0 0.0
        %3762 = vmatpush1.msra.mxu0 %v3700
        %3763 = vmatprep.subr.mxu0 0.0
        %3764 = vmatpush1.msra.mxu0 0.0
        %3765 = vmatprep.subr.mxu0 0.0
        %3766 = vmatpush1.msra.mxu0 0.0
        %3767 = vmatprep.subr.mxu0 0.0
        %3768 = vmatpush1.msra.mxu0 0.0
        %3769 = vmatprep.subr.mxu0 0.0
        %3770 = vmatpush1.msra.mxu0 0.0
        %3771 = vmatprep.subr.mxu0 0.0
        %3772 = vmatpush1.msra.mxu0 0.0
        %3773 = vmatprep.subr.mxu0 0.0
        %3774 = vmatpush1.msra.mxu0 0.0
        %3775 = vmatprep.subr.mxu0 0.0
        %3776 = vmatpush1.msra.mxu0 0.0
        %3777 = vmatprep.subr.mxu0 0.0
        %3778 = vmatpush1.msra.mxu0 0.0
        %3779 = vmatprep.subr.mxu0 0.0
        %3780 = vmatpush1.msra.mxu0 0.0
        %3781 = vmatprep.subr.mxu0 0.0
        %3782 = vmatpush1.msra.mxu0 0.0
        %3783 = vmatprep.subr.mxu0 0.0
        %3784 = vmatpush1.msra.mxu0 0.0
        %3785 = vmatprep.subr.mxu0 0.0
        %3786 = vmatpush1.msra.mxu0 0.0
        %3787 = vmatprep.subr.mxu0 0.0
        %3788 = vmatpush1.msra.mxu0 0.0
        %3789 = vmatprep.subr.mxu0 0.0
        %3790 = vmatpush1.msra.mxu0 0.0
        %3791 = vmatprep.subr.mxu0 0.0
        %3792 = vmatpush1.msra.mxu0 0.0
        %3793 = vmatprep.subr.mxu0 0.0
        %3794 = vmatpush1.msra.mxu0 0.0
        %3795 = vmatprep.mubr.f32.mxu0 0.0
        %3796 = vmatmul.mubr.f32.gmra.mrb[0].mxu0 %v3729
        %v3797 = vpop.f32.mrb[0].mxu0
        %v3798 = vadd.f32 %v3706, %v3797
        %v3799 = vpop.f32.mrb[0].mxu0
        %3800 = vdwg.mxu0
        %3801 = vst [vmem:[%s245] sm:$0xff] %v3798
        %s3802 = sand.u32 %s159, 1
        %s3803 = scalar_lea.sflag [#allocation3], %s3802
        %s3804 = sand.u32 %s159, 1
        %s3805 = smul.addr %s3804, 8
        %s3806 = scalar_lea.vmem [#allocation2], %s3805
        // Predicated region
        $region45: #{tpu_custom_call.1} parent=43 // pred_check
          %p3807 = pneg %p169
        $region46: #{tpu_custom_call.1} parent=43 // pred_check_branch
          %3809 = sbr.rel (%p3807) target = $region48
        $region47: #{tpu_custom_call.1} parent=43 // pred_region
          %s3811 = ssub.s32 128, 128
          %3812 = vsyncadd %s3803, %s3811
          %s3813 = smul.addr %s20, 128
          %s3814 = scalar_lea.hbm %s6, %s3813
          %s3816 = sshll.u32 %s3806, 4
          %s3817 = int_to_ptr.vmem [resolvable:$true] %s3816
          %3819 = dma.vmem_to_hbm [thread:$0]  %s3817, 128, %s3814, %s3803
        $region48: #{tpu_custom_call.1} parent=43 // pred_fallthru
          _
      $region44: #{tpu_custom_call.1} parent=5 // pred_fallthru
        _
      %p3820 = scmp.le.s32.totalorder 2, %s15
      // Predicated region
      $region49: #{tpu_custom_call.1} parent=5 // pred_check
        %p3821 = pneg %p3820
      $region50: #{tpu_custom_call.1} parent=5 // pred_check_branch
        %3823 = sbr.rel (%p3821) target = $region52
      $region51: #{tpu_custom_call.1} parent=5 // pred_region
        %s3824 = ssub.s32 %s15, 2
        // Predicated region
        $region53: #{tpu_custom_call.1} parent=51 // pred_check
          %p3825 = pneg %p175
        $region54: #{tpu_custom_call.1} parent=51 // pred_check_branch
          %3827 = sbr.rel (%p3825) target = $region56
        $region55: #{tpu_custom_call.1} parent=51 // pred_region
          %s3828 = sand.u32 %s160, 1
          %s3829 = scalar_lea.sflag [#allocation3], %s3828
          %s3830 = sand.u32 %s160, 1
          %s3831 = smul.addr %s3830, 8
          %s3832 = scalar_lea.vmem [#allocation2], %s3831
          %3833 = dma.done %s3829, 128
        $region56: #{tpu_custom_call.1} parent=51 // pred_fallthru
          _
      $region52: #{tpu_custom_call.1} parent=5 // pred_fallthru
        _
    $region6: #{tpu_custom_call.1} parent=1 // loop_footer
      %s19 = sadd.s32 1, %s15
    $region7: #{tpu_custom_call.1} parent=1 // loop_footer_branch
      %14 = sbr.rel target = $region3
    $region8: #{tpu_custom_call.1} parent=1 // loop_exit
      _
    %3834 = vsyncpa [#allocation3], 1
    %s3835 = scalar_lea.sflag [#allocation3], 1
    %3836 = vsyncpa %s3835, 1

</llo_original>
